<compile_context>
chip_gen: v7x
topology: tpu7x:2x2x1
jax: 0.10.0
libtpu: 0.0.40
codegen_flags: <defaults>
</compile_context>

<pallas_src>
import functools

import jax
import jax.numpy as jnp
from jax import lax
from jax.experimental import pallas as pl
from jax.experimental.pallas import tpu as pltpu

LANE = 128
KH = 5  # conv kernel height/width


def _round_up(n, m):
    return ((n + m - 1) // m) * m


def _geometry(num_channel, img_size, pd):
    """Static geometry shared by prepare_params and the forward wrapper."""
    H = img_size + 2 * pd
    OH1 = H - 4
    PH1 = OH1 // 2
    OH2 = PH1 - 4
    PH2 = OH2 // 2
    # pad input channels so a full row (H * ci_pad) is lane-aligned (3 -> 4 for H=32)
    if LANE % H == 0:
        ci_pad = _round_up(num_channel, LANE // H)
    else:
        ci_pad = num_channel
    k1p = _round_up(H * ci_pad, LANE)
    return H, OH1, PH1, OH2, PH2, ci_pad, k1p


# ----------------------------- one-time weight prep -----------------------------

def _row_conv_mats(w, in_w, ci_pad, out_positions, k_pad, n_pad):
    """Banded ("Toeplitz") row-matmul matrices for a 2-D conv, one per kernel row kh.

    Input rows are laid out as lane = x*ci_pad + ci (length in_w*ci_pad, zero-padded to
    k_pad); each matrix produces output columns (j*Co + co) for j over `out_positions`
    (zero-padded to n_pad).  conv:  y[oh, j*Co+co] = sum_kh x_row[oh+kh] @ M[kh][:, j*Co+co].
    Returns (KH, k_pad, n_pad)."""
    co, ci, kh_n, kw_n = w.shape
    mats = []
    for kh in range(kh_n):
        wk = jnp.transpose(w[:, :, kh, :], (2, 1, 0))            # (KW, Ci, Co)
        cols = []
        for ow in out_positions:
            blk = jnp.zeros((in_w, ci_pad, co), w.dtype)
            blk = blk.at[ow:ow + kw_n, :ci, :].set(wk)           # band at input x = ow..ow+KW-1
            cols.append(blk.reshape(in_w * ci_pad, co))
        m = jnp.concatenate(cols, axis=1)                        # (in_w*ci_pad, npos*co)
        m = jnp.pad(m, ((0, k_pad - in_w * ci_pad),
                        (0, n_pad - len(out_positions) * co)))
        mats.append(m)
    return jnp.stack(mats, axis=0)


def prepare_params(params, *, img_size=32, pd=0):
    """Transform PyTorch-layout LeNet params into kernel-ready arrays (run ONCE)."""
    Cin = params["w1"].shape[1]
    C1 = params["w1"].shape[0]                 # 6
    C2 = params["w2"].shape[0]                 # 16
    nco = params["fc3_w"].shape[0]             # num_class * num_output
    H, OH1, PH1, OH2, PH2, ci_pad, k1p = _geometry(Cin, img_size, pd)

    assert OH1 % 2 == 0 and OH2 % 2 == 0, "strided 2x2 pooling needs even conv outputs"
    fc1_in = params["fc1_w"].shape[1]
    assert fc1_in == C2 * PH2 * PH2, (fc1_in, C2, PH2)

    even1 = list(range(0, 2 * PH1, 2))
    odd1 = [p + 1 for p in even1]
    even2 = list(range(0, 2 * PH2, 2))
    odd2 = [p + 1 for p in even2]

    # conv1: even|odd width-pooled output columns fused into one (KH, k1p, 256) weight
    w1c = jnp.concatenate(
        [_row_conv_mats(params["w1"], H, ci_pad, even1, k1p, LANE),
         _row_conv_mats(params["w1"], H, ci_pad, odd1, k1p, LANE)], axis=2)
    b1r = jnp.pad(jnp.tile(params["b1"], PH1), (0, LANE - PH1 * C1))

    # conv2: K rows (PH1*C1 = 84) and output columns (PH2*C2 = 80) both padded to 128
    w2c = jnp.concatenate(
        [_row_conv_mats(params["w2"], PH1, C1, even2, LANE, LANE),
         _row_conv_mats(params["w2"], PH1, C1, odd2, LANE, LANE)], axis=2)
    b2r = jnp.pad(jnp.tile(params["b2"], PH2), (0, LANE - PH2 * C2))

    H1 = params["fc1_w"].shape[0]              # 120
    H2 = params["fc2_w"].shape[0]              # 84

    # fc1: torch flatten order is (c, h, w); kernel features are blocks of 128 lanes per
    # pooled row h, lane = w*C2 + c (lanes >= 80 are zero).
    wf1 = params["fc1_w"].reshape(H1, C2, PH2, PH2)              # (j, c, h, w)
    wf1 = jnp.transpose(wf1, (2, 3, 1, 0)).reshape(PH2, PH2 * C2, H1)
    wf1 = jnp.pad(wf1, ((0, 0), (0, LANE - PH2 * C2), (0, LANE - H1)))
    wf1 = wf1.reshape(PH2 * LANE, LANE)                          # (640, 128)
    bf1 = jnp.pad(params["fc1_b"], (0, LANE - H1))

    wf2 = jnp.pad(params["fc2_w"].T, ((0, LANE - H1), (0, LANE - H2)))   # (128, 128)
    bf2 = jnp.pad(params["fc2_b"], (0, LANE - H2))
    wf3 = jnp.pad(params["fc3_w"].T, ((0, LANE - H2), (0, LANE - nco)))  # (128, 128)
    bf3 = jnp.pad(params["fc3_b"], (0, LANE - nco))
    wf23 = jnp.concatenate([wf2, wf3], axis=1)                   # (128, 256)

    bias = jnp.stack([b1r, b2r, bf1, bf2, bf3], axis=0)          # (5, 128)

    return {"w1": w1c, "w2": w2c, "wf1": wf1, "wf23": wf23, "bias": bias}


# ----------------------------- fused forward -----------------------------

@functools.partial(jax.jit,
                   static_argnames=("num_class", "num_output", "img_size", "pd"))
def lenet_forward(prepped, x_nchw, *, num_class, num_output, img_size, pd):
    B, Cin = x_nchw.shape[0], x_nchw.shape[1]
    H, OH1, PH1, OH2, PH2, ci_pad, K1P = _geometry(Cin, img_size, pd)

    # NCHW -> (B, H, W*ci_pad) lane-dense "row matrix" layout (tiny glue on ~24 KB input)
    x = jnp.transpose(x_nchw.astype(jnp.float32), (0, 2, 3, 1))
    if pd > 0:
        x = jnp.pad(x, ((0, 0), (pd, pd), (pd, pd), (0, 0)))
    if ci_pad > Cin:
        x = jnp.pad(x, ((0, 0), (0, 0), (0, 0), (0, ci_pad - Cin)))
    x3 = x.reshape(B, H, H * ci_pad)
    if K1P > H * ci_pad:
        x3 = jnp.pad(x3, ((0, 0), (0, 0), (0, K1P - H * ci_pad)))

    def kernel(x_ref, w1_ref, w2_ref, wf1_ref, wf23_ref, bias_ref,
               out_ref, s1_ref, p1_ref, s2_ref, fcin_ref):
        b1 = bias_ref[0:1, :]
        b2 = bias_ref[1:2, :]

        # ---- whole batch in ONE grid step: static unroll over samples ----
        for b in range(B):
            # conv1 + bias + relu, width-pool fused via even|odd columns of w1
            y1 = jnp.zeros((OH1, 2 * LANE), jnp.float32)
            for kh in range(KH):
                xs = x_ref[b, pl.ds(kh, OH1), :]                 # (OH1, K1P) straight from VMEM
                y1 = y1 + jnp.dot(xs, w1_ref[kh], preferred_element_type=jnp.float32)
            s1_ref[...] = jnp.maximum(
                jnp.maximum(y1[:, :LANE], y1[:, LANE:]) + b1, 0.0)   # (OH1, 128)
            # height pooling: strided (stride=2) row reads from VMEM scratch
            p1_ref[...] = jnp.maximum(s1_ref[pl.ds(0, PH1, stride=2), :],
                                      s1_ref[pl.ds(1, PH1, stride=2), :])  # (PH1, 128)

            # conv2 + bias + relu + 2x2 pool (same scheme, K rows zero-padded to 128)
            y2 = jnp.zeros((OH2, 2 * LANE), jnp.float32)
            for kh in range(KH):
                xs2 = p1_ref[pl.ds(kh, OH2), :]                  # (OH2, 128)
                y2 = y2 + jnp.dot(xs2, w2_ref[kh], preferred_element_type=jnp.float32)
            s2_ref[...] = jnp.maximum(
                jnp.maximum(y2[:, :LANE], y2[:, LANE:]) + b2, 0.0)   # (OH2, 128)
            p2 = jnp.maximum(s2_ref[pl.ds(0, PH2, stride=2), :],
                             s2_ref[pl.ds(1, PH2, stride=2), :])     # (PH2, 128)

            # scatter pooled rows into a lane-major (B, PH2*128) layout for a single fc1 dot
            for h in range(PH2):
                fcin_ref[b:b + 1, h * LANE:(h + 1) * LANE] = p2[h:h + 1, :]

        # ---- fully-connected head, whole batch at once (M = B, all 128/256-lane dense) ----
        f = fcin_ref[...]                                        # (B, PH2*128)
        h1 = jnp.maximum(
            jnp.dot(f, wf1_ref[...], preferred_element_type=jnp.float32)
            + bias_ref[2:3, :], 0.0)
        h2 = jnp.maximum(
            jnp.dot(h1, wf23_ref[:, :LANE], preferred_element_type=jnp.float32)
            + bias_ref[3:4, :], 0.0)
        out_ref[...] = (jnp.dot(h2, wf23_ref[:, LANE:], preferred_element_type=jnp.float32)
                        + bias_ref[4:5, :])

    out = pl.pallas_call(
        kernel,
        out_shape=jax.ShapeDtypeStruct((B, LANE), jnp.float32),
        grid=(1,),
        in_specs=[
            pl.BlockSpec((B, H, K1P), lambda i: (0, 0, 0)),
            pl.BlockSpec((KH, K1P, 2 * LANE), lambda i: (0, 0, 0)),
            pl.BlockSpec((KH, LANE, 2 * LANE), lambda i: (0, 0, 0)),
            pl.BlockSpec((PH2 * LANE, LANE), lambda i: (0, 0)),
            pl.BlockSpec((LANE, 2 * LANE), lambda i: (0, 0)),
            pl.BlockSpec((5, LANE), lambda i: (0, 0)),
        ],
        out_specs=pl.BlockSpec((B, LANE), lambda i: (0, 0)),
        scratch_shapes=[pltpu.VMEM((OH1, LANE), jnp.float32),
                        pltpu.VMEM((PH1, LANE), jnp.float32),
                        pltpu.VMEM((OH2, LANE), jnp.float32),
                        pltpu.VMEM((B, PH2 * LANE), jnp.float32)],
        compiler_params=pltpu.CompilerParams(
            dimension_semantics=("arbitrary",)),
    )(x3, prepped["w1"], prepped["w2"], prepped["wf1"], prepped["wf23"], prepped["bias"])

    nco = num_class * num_output
    return out[:, :nco].reshape(B, num_class, num_output)


# ----------------------------- pure-JAX reference (for self-check) -----------------------------

def reference_forward(params, x_nchw, *, pd, num_class, num_output):
    x = x_nchw
    if pd > 0:
        x = jnp.pad(x, ((0, 0), (0, 0), (pd, pd), (pd, pd)))

    def conv(y, w, b):
        y = lax.conv_general_dilated(y, w, (1, 1), "VALID",
                                     dimension_numbers=("NCHW", "OIHW", "NCHW"))
        return y + b[None, :, None, None]

    y = jax.nn.relu(conv(x, params["w1"], params["b1"]))
    y = lax.reduce_window(y, -jnp.inf, lax.max, (1, 1, 2, 2), (1, 1, 2, 2), "VALID")
    y = jax.nn.relu(conv(y, params["w2"], params["b2"]))
    y = lax.reduce_window(y, -jnp.inf, lax.max, (1, 1, 2, 2), (1, 1, 2, 2), "VALID")
    f = y.reshape(y.shape[0], -1)
    h = jax.nn.relu(f @ params["fc1_w"].T + params["fc1_b"])
    h = jax.nn.relu(h @ params["fc2_w"].T + params["fc2_b"])
    o = h @ params["fc3_w"].T + params["fc3_b"]
    return o.reshape(-1, num_class, num_output)


# ----------------------------- params (PyTorch layout) -----------------------------

def init_params(key, num_channel=3, num_class=5, num_output=3, img_size=32):
    pd = max(0, (32 - img_size) // 2)
    sz = ((img_size + pd * 2 - 3) // 2 - 3) // 2   # torch formula (matches geometry here)

    def uni(k, shape, fan_in):
        bound = 1.0 / jnp.sqrt(jnp.asarray(fan_in, jnp.float32))
        return jax.random.uniform(k, shape, jnp.float32, -bound, bound)

    ks = jax.random.split(key, 10)
    params = {
        "w1": uni(ks[0], (6, num_channel, 5, 5), num_channel * 25),
        "b1": uni(ks[1], (6,), num_channel * 25),
        "w2": uni(ks[2], (16, 6, 5, 5), 6 * 25),
        "b2": uni(ks[3], (16,), 6 * 25),
        "fc1_w": uni(ks[4], (120, 16 * sz * sz), 16 * sz * sz),
        "fc1_b": uni(ks[5], (120,), 16 * sz * sz),
        "fc2_w": uni(ks[6], (84, 120), 120),
        "fc2_b": uni(ks[7], (84,), 120),
        "fc3_w": uni(ks[8], (num_class * num_output, 84), 84),
        "fc3_b": uni(ks[9], (num_class * num_output,), 84),
    }
    return params, pd


if __name__ == "__main__":
    NUM_CHANNEL, NUM_CLASS, NUM_OUTPUT, IMG_SIZE, BATCH = 3, 5, 3, 32, 2

    key = jax.random.PRNGKey(0)
    kx, kp = jax.random.split(key)
    x = jax.random.normal(kx, (BATCH, NUM_CHANNEL, IMG_SIZE, IMG_SIZE), jnp.float32)
    params, pd = init_params(kp, NUM_CHANNEL, NUM_CLASS, NUM_OUTPUT, IMG_SIZE)

    # one-time weight transformation (outside the per-call path)
    prepped = prepare_params(params, img_size=IMG_SIZE, pd=pd)

    out = lenet_forward(prepped, x, num_class=NUM_CLASS, num_output=NUM_OUTPUT,
                        img_size=IMG_SIZE, pd=pd)
    out = jax.block_until_ready(out)

    assert out.shape == (BATCH, NUM_CLASS, NUM_OUTPUT), out.shape
    assert out.dtype == jnp.float32

    ref = jax.block_until_ready(
        reference_forward(params, x, pd=pd, num_class=NUM_CLASS, num_output=NUM_OUTPUT))
    max_err = float(jnp.max(jnp.abs(out - ref)))
    assert max_err < 2e-3, f"mismatch vs reference: {max_err}"

    print("KERNEL_OK")
</pallas_src>

<mosaic_0001>
module attributes {stable_mosaic.version = 11 : i64} {
  func.func @kernel(%arg0: i32, %arg1: memref<2x32x128xf32, #tpu.memory_space<vmem>>, %arg2: memref<5x128x256xf32, #tpu.memory_space<vmem>>, %arg3: memref<5x128x256xf32, #tpu.memory_space<vmem>>, %arg4: memref<640x128xf32, #tpu.memory_space<vmem>>, %arg5: memref<128x256xf32, #tpu.memory_space<vmem>>, %arg6: memref<5x128xf32, #tpu.memory_space<vmem>>, %arg7: memref<2x128xf32, #tpu.memory_space<vmem>>, %arg8: memref<28x128xf32, #tpu.memory_space<vmem>>, %arg9: memref<14x128xf32, #tpu.memory_space<vmem>>, %arg10: memref<10x128xf32, #tpu.memory_space<vmem>>, %arg11: memref<2x640xf32, #tpu.memory_space<vmem>>) attributes {dimension_semantics = [#tpu.dimension_semantics<arbitrary>], iteration_bounds = array<i64: 1>, scalar_prefetch = 0 : i64, scratch_operands = 4 : i64, tpu.core_type = #tpu.core_type<tc>, window_params = [{pipeline_mode = #tpu.pipeline_mode<synchronous>, transform_indices = @transform_0, window_bounds = array<i64: 2, 32, 128>}, {pipeline_mode = #tpu.pipeline_mode<synchronous>, transform_indices = @transform_1, window_bounds = array<i64: 5, 128, 256>}, {pipeline_mode = #tpu.pipeline_mode<synchronous>, transform_indices = @transform_2, window_bounds = array<i64: 5, 128, 256>}, {pipeline_mode = #tpu.pipeline_mode<synchronous>, transform_indices = @transform_3, window_bounds = array<i64: 640, 128>}, {pipeline_mode = #tpu.pipeline_mode<synchronous>, transform_indices = @transform_4, window_bounds = array<i64: 128, 256>}, {pipeline_mode = #tpu.pipeline_mode<synchronous>, transform_indices = @transform_5, window_bounds = array<i64: 5, 128>}, {pipeline_mode = #tpu.pipeline_mode<synchronous>, transform_indices = @transform_6, window_bounds = array<i64: 2, 128>}]} {
    %c0 = arith.constant 0 : index
    %c0_0 = arith.constant 0 : index
    %0 = vector.load %arg6[%c0, %c0_0] : memref<5x128xf32, #tpu.memory_space<vmem>>, vector<1x128xf32>
    %c1 = arith.constant 1 : index
    %c0_1 = arith.constant 0 : index
    %1 = vector.load %arg6[%c1, %c0_1] : memref<5x128xf32, #tpu.memory_space<vmem>>, vector<1x128xf32>
    %cst = arith.constant 0.000000e+00 : f32
    %2 = vector.broadcast %cst : f32 to vector<28x256xf32>
    %c0_2 = arith.constant 0 : index
    %c0_3 = arith.constant 0 : index
    %c0_4 = arith.constant 0 : index
    %3 = vector.load %arg1[%c0_2, %c0_3, %c0_4] : memref<2x32x128xf32, #tpu.memory_space<vmem>>, vector<1x28x128xf32>
    %4 = vector.shape_cast %3 : vector<1x28x128xf32> to vector<28x128xf32>
    %c0_5 = arith.constant 0 : index
    %c0_6 = arith.constant 0 : index
    %c0_7 = arith.constant 0 : index
    %5 = vector.load %arg2[%c0_5, %c0_6, %c0_7] : memref<5x128x256xf32, #tpu.memory_space<vmem>>, vector<1x128x256xf32>
    %6 = vector.shape_cast %5 : vector<1x128x256xf32> to vector<128x256xf32>
    %cst_8 = arith.constant dense<0.000000e+00> : vector<28x256xf32>
    %7 = tpu.matmul %4, %6, %cst_8 {dimension_numbers = #tpu.dot_dimension_numbers<[1], [0], [0], [1], [0, 0, 1, 1], [], []>} : vector<28x128xf32>, vector<128x256xf32>, vector<28x256xf32> -> vector<28x256xf32>
    %8 = arith.addf %2, %7 : vector<28x256xf32>
    %c0_9 = arith.constant 0 : index
    %c1_10 = arith.constant 1 : index
    %c0_11 = arith.constant 0 : index
    %9 = vector.load %arg1[%c0_9, %c1_10, %c0_11] : memref<2x32x128xf32, #tpu.memory_space<vmem>>, vector<1x28x128xf32>
    %10 = vector.shape_cast %9 : vector<1x28x128xf32> to vector<28x128xf32>
    %c1_12 = arith.constant 1 : index
    %c0_13 = arith.constant 0 : index
    %c0_14 = arith.constant 0 : index
    %11 = vector.load %arg2[%c1_12, %c0_13, %c0_14] : memref<5x128x256xf32, #tpu.memory_space<vmem>>, vector<1x128x256xf32>
    %12 = vector.shape_cast %11 : vector<1x128x256xf32> to vector<128x256xf32>
    %cst_15 = arith.constant dense<0.000000e+00> : vector<28x256xf32>
    %13 = tpu.matmul %10, %12, %cst_15 {dimension_numbers = #tpu.dot_dimension_numbers<[1], [0], [0], [1], [0, 0, 1, 1], [], []>} : vector<28x128xf32>, vector<128x256xf32>, vector<28x256xf32> -> vector<28x256xf32>
    %14 = arith.addf %8, %13 : vector<28x256xf32>
    %c0_16 = arith.constant 0 : index
    %c2 = arith.constant 2 : index
    %c0_17 = arith.constant 0 : index
    %15 = vector.load %arg1[%c0_16, %c2, %c0_17] : memref<2x32x128xf32, #tpu.memory_space<vmem>>, vector<1x28x128xf32>
    %16 = vector.shape_cast %15 : vector<1x28x128xf32> to vector<28x128xf32>
    %c2_18 = arith.constant 2 : index
    %c0_19 = arith.constant 0 : index
    %c0_20 = arith.constant 0 : index
    %17 = vector.load %arg2[%c2_18, %c0_19, %c0_20] : memref<5x128x256xf32, #tpu.memory_space<vmem>>, vector<1x128x256xf32>
    %18 = vector.shape_cast %17 : vector<1x128x256xf32> to vector<128x256xf32>
    %cst_21 = arith.constant dense<0.000000e+00> : vector<28x256xf32>
    %19 = tpu.matmul %16, %18, %cst_21 {dimension_numbers = #tpu.dot_dimension_numbers<[1], [0], [0], [1], [0, 0, 1, 1], [], []>} : vector<28x128xf32>, vector<128x256xf32>, vector<28x256xf32> -> vector<28x256xf32>
    %20 = arith.addf %14, %19 : vector<28x256xf32>
    %c0_22 = arith.constant 0 : index
    %c3 = arith.constant 3 : index
    %c0_23 = arith.constant 0 : index
    %21 = vector.load %arg1[%c0_22, %c3, %c0_23] : memref<2x32x128xf32, #tpu.memory_space<vmem>>, vector<1x28x128xf32>
    %22 = vector.shape_cast %21 : vector<1x28x128xf32> to vector<28x128xf32>
    %c3_24 = arith.constant 3 : index
    %c0_25 = arith.constant 0 : index
    %c0_26 = arith.constant 0 : index
    %23 = vector.load %arg2[%c3_24, %c0_25, %c0_26] : memref<5x128x256xf32, #tpu.memory_space<vmem>>, vector<1x128x256xf32>
    %24 = vector.shape_cast %23 : vector<1x128x256xf32> to vector<128x256xf32>
    %cst_27 = arith.constant dense<0.000000e+00> : vector<28x256xf32>
    %25 = tpu.matmul %22, %24, %cst_27 {dimension_numbers = #tpu.dot_dimension_numbers<[1], [0], [0], [1], [0, 0, 1, 1], [], []>} : vector<28x128xf32>, vector<128x256xf32>, vector<28x256xf32> -> vector<28x256xf32>
    %26 = arith.addf %20, %25 : vector<28x256xf32>
    %c0_28 = arith.constant 0 : index
    %c4 = arith.constant 4 : index
    %c0_29 = arith.constant 0 : index
    %27 = vector.load %arg1[%c0_28, %c4, %c0_29] : memref<2x32x128xf32, #tpu.memory_space<vmem>>, vector<1x28x128xf32>
    %28 = vector.shape_cast %27 : vector<1x28x128xf32> to vector<28x128xf32>
    %c4_30 = arith.constant 4 : index
    %c0_31 = arith.constant 0 : index
    %c0_32 = arith.constant 0 : index
    %29 = vector.load %arg2[%c4_30, %c0_31, %c0_32] : memref<5x128x256xf32, #tpu.memory_space<vmem>>, vector<1x128x256xf32>
    %30 = vector.shape_cast %29 : vector<1x128x256xf32> to vector<128x256xf32>
    %cst_33 = arith.constant dense<0.000000e+00> : vector<28x256xf32>
    %31 = tpu.matmul %28, %30, %cst_33 {dimension_numbers = #tpu.dot_dimension_numbers<[1], [0], [0], [1], [0, 0, 1, 1], [], []>} : vector<28x128xf32>, vector<128x256xf32>, vector<28x256xf32> -> vector<28x256xf32>
    %32 = arith.addf %26, %31 : vector<28x256xf32>
    %33 = vector.extract_strided_slice %32 {offsets = [0, 0], sizes = [28, 128], strides = [1, 1]} : vector<28x256xf32> to vector<28x128xf32>
    %34 = vector.extract_strided_slice %32 {offsets = [0, 128], sizes = [28, 128], strides = [1, 1]} : vector<28x256xf32> to vector<28x128xf32>
    %35 = arith.maximumf %33, %34 : vector<28x128xf32>
    %36 = vector.broadcast %0 : vector<1x128xf32> to vector<28x128xf32>
    %37 = arith.addf %35, %36 : vector<28x128xf32>
    %cst_34 = arith.constant 0.000000e+00 : f32
    %38 = vector.broadcast %cst_34 : f32 to vector<28x128xf32>
    %39 = arith.maximumf %37, %38 : vector<28x128xf32>
    %c0_35 = arith.constant 0 : index
    %c0_36 = arith.constant 0 : index
    %40 = vector.load %arg8[%c0_35, %c0_36] : memref<28x128xf32, #tpu.memory_space<vmem>>, vector<28x128xf32>
    tpu.vector_store %arg8[%c0_35, %c0_36], %39 {strides = array<i32>} : memref<28x128xf32, #tpu.memory_space<vmem>>, vector<28x128xf32>,
    %c0_37 = arith.constant 0 : index
    %c0_38 = arith.constant 0 : index
    %41 = tpu.strided_load %arg8[%c0_37, %c0_38] {strides = array<i32: 2, 1>} : memref<28x128xf32, #tpu.memory_space<vmem>>, vector<14x128xf32>
    %c1_39 = arith.constant 1 : index
    %c0_40 = arith.constant 0 : index
    %42 = tpu.strided_load %arg8[%c1_39, %c0_40] {strides = array<i32: 2, 1>} : memref<28x128xf32, #tpu.memory_space<vmem>>, vector<14x128xf32>
    %43 = arith.maximumf %41, %42 : vector<14x128xf32>
    %c0_41 = arith.constant 0 : index
    %c0_42 = arith.constant 0 : index
    %44 = vector.load %arg9[%c0_41, %c0_42] : memref<14x128xf32, #tpu.memory_space<vmem>>, vector<14x128xf32>
    tpu.vector_store %arg9[%c0_41, %c0_42], %43 {strides = array<i32>} : memref<14x128xf32, #tpu.memory_space<vmem>>, vector<14x128xf32>,
    %cst_43 = arith.constant 0.000000e+00 : f32
    %45 = vector.broadcast %cst_43 : f32 to vector<10x256xf32>
    %c0_44 = arith.constant 0 : index
    %c0_45 = arith.constant 0 : index
    %46 = vector.load %arg9[%c0_44, %c0_45] : memref<14x128xf32, #tpu.memory_space<vmem>>, vector<10x128xf32>
    %c0_46 = arith.constant 0 : index
    %c0_47 = arith.constant 0 : index
    %c0_48 = arith.constant 0 : index
    %47 = vector.load %arg3[%c0_46, %c0_47, %c0_48] : memref<5x128x256xf32, #tpu.memory_space<vmem>>, vector<1x128x256xf32>
    %48 = vector.shape_cast %47 : vector<1x128x256xf32> to vector<128x256xf32>
    %cst_49 = arith.constant dense<0.000000e+00> : vector<10x256xf32>
    %49 = tpu.matmul %46, %48, %cst_49 {dimension_numbers = #tpu.dot_dimension_numbers<[1], [0], [0], [1], [0, 0, 1, 1], [], []>} : vector<10x128xf32>, vector<128x256xf32>, vector<10x256xf32> -> vector<10x256xf32>
    %50 = arith.addf %45, %49 : vector<10x256xf32>
    %c1_50 = arith.constant 1 : index
    %c0_51 = arith.constant 0 : index
    %51 = vector.load %arg9[%c1_50, %c0_51] : memref<14x128xf32, #tpu.memory_space<vmem>>, vector<10x128xf32>
    %c1_52 = arith.constant 1 : index
    %c0_53 = arith.constant 0 : index
    %c0_54 = arith.constant 0 : index
    %52 = vector.load %arg3[%c1_52, %c0_53, %c0_54] : memref<5x128x256xf32, #tpu.memory_space<vmem>>, vector<1x128x256xf32>
    %53 = vector.shape_cast %52 : vector<1x128x256xf32> to vector<128x256xf32>
    %cst_55 = arith.constant dense<0.000000e+00> : vector<10x256xf32>
    %54 = tpu.matmul %51, %53, %cst_55 {dimension_numbers = #tpu.dot_dimension_numbers<[1], [0], [0], [1], [0, 0, 1, 1], [], []>} : vector<10x128xf32>, vector<128x256xf32>, vector<10x256xf32> -> vector<10x256xf32>
    %55 = arith.addf %50, %54 : vector<10x256xf32>
    %c2_56 = arith.constant 2 : index
    %c0_57 = arith.constant 0 : index
    %56 = vector.load %arg9[%c2_56, %c0_57] : memref<14x128xf32, #tpu.memory_space<vmem>>, vector<10x128xf32>
    %c2_58 = arith.constant 2 : index
    %c0_59 = arith.constant 0 : index
    %c0_60 = arith.constant 0 : index
    %57 = vector.load %arg3[%c2_58, %c0_59, %c0_60] : memref<5x128x256xf32, #tpu.memory_space<vmem>>, vector<1x128x256xf32>
    %58 = vector.shape_cast %57 : vector<1x128x256xf32> to vector<128x256xf32>
    %cst_61 = arith.constant dense<0.000000e+00> : vector<10x256xf32>
    %59 = tpu.matmul %56, %58, %cst_61 {dimension_numbers = #tpu.dot_dimension_numbers<[1], [0], [0], [1], [0, 0, 1, 1], [], []>} : vector<10x128xf32>, vector<128x256xf32>, vector<10x256xf32> -> vector<10x256xf32>
    %60 = arith.addf %55, %59 : vector<10x256xf32>
    %c3_62 = arith.constant 3 : index
    %c0_63 = arith.constant 0 : index
    %61 = vector.load %arg9[%c3_62, %c0_63] : memref<14x128xf32, #tpu.memory_space<vmem>>, vector<10x128xf32>
    %c3_64 = arith.constant 3 : index
    %c0_65 = arith.constant 0 : index
    %c0_66 = arith.constant 0 : index
    %62 = vector.load %arg3[%c3_64, %c0_65, %c0_66] : memref<5x128x256xf32, #tpu.memory_space<vmem>>, vector<1x128x256xf32>
    %63 = vector.shape_cast %62 : vector<1x128x256xf32> to vector<128x256xf32>
    %cst_67 = arith.constant dense<0.000000e+00> : vector<10x256xf32>
    %64 = tpu.matmul %61, %63, %cst_67 {dimension_numbers = #tpu.dot_dimension_numbers<[1], [0], [0], [1], [0, 0, 1, 1], [], []>} : vector<10x128xf32>, vector<128x256xf32>, vector<10x256xf32> -> vector<10x256xf32>
    %65 = arith.addf %60, %64 : vector<10x256xf32>
    %c4_68 = arith.constant 4 : index
    %c0_69 = arith.constant 0 : index
    %66 = vector.load %arg9[%c4_68, %c0_69] : memref<14x128xf32, #tpu.memory_space<vmem>>, vector<10x128xf32>
    %c4_70 = arith.constant 4 : index
    %c0_71 = arith.constant 0 : index
    %c0_72 = arith.constant 0 : index
    %67 = vector.load %arg3[%c4_70, %c0_71, %c0_72] : memref<5x128x256xf32, #tpu.memory_space<vmem>>, vector<1x128x256xf32>
    %68 = vector.shape_cast %67 : vector<1x128x256xf32> to vector<128x256xf32>
    %cst_73 = arith.constant dense<0.000000e+00> : vector<10x256xf32>
    %69 = tpu.matmul %66, %68, %cst_73 {dimension_numbers = #tpu.dot_dimension_numbers<[1], [0], [0], [1], [0, 0, 1, 1], [], []>} : vector<10x128xf32>, vector<128x256xf32>, vector<10x256xf32> -> vector<10x256xf32>
    %70 = arith.addf %65, %69 : vector<10x256xf32>
    %71 = vector.extract_strided_slice %70 {offsets = [0, 0], sizes = [10, 128], strides = [1, 1]} : vector<10x256xf32> to vector<10x128xf32>
    %72 = vector.extract_strided_slice %70 {offsets = [0, 128], sizes = [10, 128], strides = [1, 1]} : vector<10x256xf32> to vector<10x128xf32>
    %73 = arith.maximumf %71, %72 : vector<10x128xf32>
    %74 = vector.broadcast %1 : vector<1x128xf32> to vector<10x128xf32>
    %75 = arith.addf %73, %74 : vector<10x128xf32>
    %cst_74 = arith.constant 0.000000e+00 : f32
    %76 = vector.broadcast %cst_74 : f32 to vector<10x128xf32>
    %77 = arith.maximumf %75, %76 : vector<10x128xf32>
    %c0_75 = arith.constant 0 : index
    %c0_76 = arith.constant 0 : index
    %78 = vector.load %arg10[%c0_75, %c0_76] : memref<10x128xf32, #tpu.memory_space<vmem>>, vector<10x128xf32>
    tpu.vector_store %arg10[%c0_75, %c0_76], %77 {strides = array<i32>} : memref<10x128xf32, #tpu.memory_space<vmem>>, vector<10x128xf32>,
    %c0_77 = arith.constant 0 : index
    %c0_78 = arith.constant 0 : index
    %79 = tpu.strided_load %arg10[%c0_77, %c0_78] {strides = array<i32: 2, 1>} : memref<10x128xf32, #tpu.memory_space<vmem>>, vector<5x128xf32>
    %c1_79 = arith.constant 1 : index
    %c0_80 = arith.constant 0 : index
    %80 = tpu.strided_load %arg10[%c1_79, %c0_80] {strides = array<i32: 2, 1>} : memref<10x128xf32, #tpu.memory_space<vmem>>, vector<5x128xf32>
    %81 = arith.maximumf %79, %80 : vector<5x128xf32>
    %82 = vector.extract_strided_slice %81 {offsets = [0, 0], sizes = [1, 128], strides = [1, 1]} : vector<5x128xf32> to vector<1x128xf32>
    %c0_81 = arith.constant 0 : index
    %c0_82 = arith.constant 0 : index
    %83 = vector.load %arg11[%c0_81, %c0_82] : memref<2x640xf32, #tpu.memory_space<vmem>>, vector<1x128xf32>
    tpu.vector_store %arg11[%c0_81, %c0_82], %82 {strides = array<i32>} : memref<2x640xf32, #tpu.memory_space<vmem>>, vector<1x128xf32>,
    %84 = vector.extract_strided_slice %81 {offsets = [1, 0], sizes = [1, 128], strides = [1, 1]} : vector<5x128xf32> to vector<1x128xf32>
    %c0_83 = arith.constant 0 : index
    %c128 = arith.constant 128 : index
    %85 = vector.load %arg11[%c0_83, %c128] : memref<2x640xf32, #tpu.memory_space<vmem>>, vector<1x128xf32>
    tpu.vector_store %arg11[%c0_83, %c128], %84 {strides = array<i32>} : memref<2x640xf32, #tpu.memory_space<vmem>>, vector<1x128xf32>,
    %86 = vector.extract_strided_slice %81 {offsets = [2, 0], sizes = [1, 128], strides = [1, 1]} : vector<5x128xf32> to vector<1x128xf32>
    %c0_84 = arith.constant 0 : index
    %c256 = arith.constant 256 : index
    %87 = vector.load %arg11[%c0_84, %c256] : memref<2x640xf32, #tpu.memory_space<vmem>>, vector<1x128xf32>
    tpu.vector_store %arg11[%c0_84, %c256], %86 {strides = array<i32>} : memref<2x640xf32, #tpu.memory_space<vmem>>, vector<1x128xf32>,
    %88 = vector.extract_strided_slice %81 {offsets = [3, 0], sizes = [1, 128], strides = [1, 1]} : vector<5x128xf32> to vector<1x128xf32>
    %c0_85 = arith.constant 0 : index
    %c384 = arith.constant 384 : index
    %89 = vector.load %arg11[%c0_85, %c384] : memref<2x640xf32, #tpu.memory_space<vmem>>, vector<1x128xf32>
    tpu.vector_store %arg11[%c0_85, %c384], %88 {strides = array<i32>} : memref<2x640xf32, #tpu.memory_space<vmem>>, vector<1x128xf32>,
    %90 = vector.extract_strided_slice %81 {offsets = [4, 0], sizes = [1, 128], strides = [1, 1]} : vector<5x128xf32> to vector<1x128xf32>
    %c0_86 = arith.constant 0 : index
    %c512 = arith.constant 512 : index
    %91 = vector.load %arg11[%c0_86, %c512] : memref<2x640xf32, #tpu.memory_space<vmem>>, vector<1x128xf32>
    tpu.vector_store %arg11[%c0_86, %c512], %90 {strides = array<i32>} : memref<2x640xf32, #tpu.memory_space<vmem>>, vector<1x128xf32>,
    %cst_87 = arith.constant 0.000000e+00 : f32
    %92 = vector.broadcast %cst_87 : f32 to vector<28x256xf32>
    %c1_88 = arith.constant 1 : index
    %c0_89 = arith.constant 0 : index
    %c0_90 = arith.constant 0 : index
    %93 = vector.load %arg1[%c1_88, %c0_89, %c0_90] : memref<2x32x128xf32, #tpu.memory_space<vmem>>, vector<1x28x128xf32>
    %94 = vector.shape_cast %93 : vector<1x28x128xf32> to vector<28x128xf32>
    %c0_91 = arith.constant 0 : index
    %c0_92 = arith.constant 0 : index
    %c0_93 = arith.constant 0 : index
    %95 = vector.load %arg2[%c0_91, %c0_92, %c0_93] : memref<5x128x256xf32, #tpu.memory_space<vmem>>, vector<1x128x256xf32>
    %96 = vector.shape_cast %95 : vector<1x128x256xf32> to vector<128x256xf32>
    %cst_94 = arith.constant dense<0.000000e+00> : vector<28x256xf32>
    %97 = tpu.matmul %94, %96, %cst_94 {dimension_numbers = #tpu.dot_dimension_numbers<[1], [0], [0], [1], [0, 0, 1, 1], [], []>} : vector<28x128xf32>, vector<128x256xf32>, vector<28x256xf32> -> vector<28x256xf32>
    %98 = arith.addf %92, %97 : vector<28x256xf32>
    %c1_95 = arith.constant 1 : index
    %c1_96 = arith.constant 1 : index
    %c0_97 = arith.constant 0 : index
    %99 = vector.load %arg1[%c1_95, %c1_96, %c0_97] : memref<2x32x128xf32, #tpu.memory_space<vmem>>, vector<1x28x128xf32>
    %100 = vector.shape_cast %99 : vector<1x28x128xf32> to vector<28x128xf32>
    %c1_98 = arith.constant 1 : index
    %c0_99 = arith.constant 0 : index
    %c0_100 = arith.constant 0 : index
    %101 = vector.load %arg2[%c1_98, %c0_99, %c0_100] : memref<5x128x256xf32, #tpu.memory_space<vmem>>, vector<1x128x256xf32>
    %102 = vector.shape_cast %101 : vector<1x128x256xf32> to vector<128x256xf32>
    %cst_101 = arith.constant dense<0.000000e+00> : vector<28x256xf32>
    %103 = tpu.matmul %100, %102, %cst_101 {dimension_numbers = #tpu.dot_dimension_numbers<[1], [0], [0], [1], [0, 0, 1, 1], [], []>} : vector<28x128xf32>, vector<128x256xf32>, vector<28x256xf32> -> vector<28x256xf32>
    %104 = arith.addf %98, %103 : vector<28x256xf32>
    %c1_102 = arith.constant 1 : index
    %c2_103 = arith.constant 2 : index
    %c0_104 = arith.constant 0 : index
    %105 = vector.load %arg1[%c1_102, %c2_103, %c0_104] : memref<2x32x128xf32, #tpu.memory_space<vmem>>, vector<1x28x128xf32>
    %106 = vector.shape_cast %105 : vector<1x28x128xf32> to vector<28x128xf32>
    %c2_105 = arith.constant 2 : index
    %c0_106 = arith.constant 0 : index
    %c0_107 = arith.constant 0 : index
    %107 = vector.load %arg2[%c2_105, %c0_106, %c0_107] : memref<5x128x256xf32, #tpu.memory_space<vmem>>, vector<1x128x256xf32>
    %108 = vector.shape_cast %107 : vector<1x128x256xf32> to vector<128x256xf32>
    %cst_108 = arith.constant dense<0.000000e+00> : vector<28x256xf32>
    %109 = tpu.matmul %106, %108, %cst_108 {dimension_numbers = #tpu.dot_dimension_numbers<[1], [0], [0], [1], [0, 0, 1, 1], [], []>} : vector<28x128xf32>, vector<128x256xf32>, vector<28x256xf32> -> vector<28x256xf32>
    %110 = arith.addf %104, %109 : vector<28x256xf32>
    %c1_109 = arith.constant 1 : index
    %c3_110 = arith.constant 3 : index
    %c0_111 = arith.constant 0 : index
    %111 = vector.load %arg1[%c1_109, %c3_110, %c0_111] : memref<2x32x128xf32, #tpu.memory_space<vmem>>, vector<1x28x128xf32>
    %112 = vector.shape_cast %111 : vector<1x28x128xf32> to vector<28x128xf32>
    %c3_112 = arith.constant 3 : index
    %c0_113 = arith.constant 0 : index
    %c0_114 = arith.constant 0 : index
    %113 = vector.load %arg2[%c3_112, %c0_113, %c0_114] : memref<5x128x256xf32, #tpu.memory_space<vmem>>, vector<1x128x256xf32>
    %114 = vector.shape_cast %113 : vector<1x128x256xf32> to vector<128x256xf32>
    %cst_115 = arith.constant dense<0.000000e+00> : vector<28x256xf32>
    %115 = tpu.matmul %112, %114, %cst_115 {dimension_numbers = #tpu.dot_dimension_numbers<[1], [0], [0], [1], [0, 0, 1, 1], [], []>} : vector<28x128xf32>, vector<128x256xf32>, vector<28x256xf32> -> vector<28x256xf32>
    %116 = arith.addf %110, %115 : vector<28x256xf32>
    %c1_116 = arith.constant 1 : index
    %c4_117 = arith.constant 4 : index
    %c0_118 = arith.constant 0 : index
    %117 = vector.load %arg1[%c1_116, %c4_117, %c0_118] : memref<2x32x128xf32, #tpu.memory_space<vmem>>, vector<1x28x128xf32>
    %118 = vector.shape_cast %117 : vector<1x28x128xf32> to vector<28x128xf32>
    %c4_119 = arith.constant 4 : index
    %c0_120 = arith.constant 0 : index
    %c0_121 = arith.constant 0 : index
    %119 = vector.load %arg2[%c4_119, %c0_120, %c0_121] : memref<5x128x256xf32, #tpu.memory_space<vmem>>, vector<1x128x256xf32>
    %120 = vector.shape_cast %119 : vector<1x128x256xf32> to vector<128x256xf32>
    %cst_122 = arith.constant dense<0.000000e+00> : vector<28x256xf32>
    %121 = tpu.matmul %118, %120, %cst_122 {dimension_numbers = #tpu.dot_dimension_numbers<[1], [0], [0], [1], [0, 0, 1, 1], [], []>} : vector<28x128xf32>, vector<128x256xf32>, vector<28x256xf32> -> vector<28x256xf32>
    %122 = arith.addf %116, %121 : vector<28x256xf32>
    %123 = vector.extract_strided_slice %122 {offsets = [0, 0], sizes = [28, 128], strides = [1, 1]} : vector<28x256xf32> to vector<28x128xf32>
    %124 = vector.extract_strided_slice %122 {offsets = [0, 128], sizes = [28, 128], strides = [1, 1]} : vector<28x256xf32> to vector<28x128xf32>
    %125 = arith.maximumf %123, %124 : vector<28x128xf32>
    %126 = vector.broadcast %0 : vector<1x128xf32> to vector<28x128xf32>
    %127 = arith.addf %125, %126 : vector<28x128xf32>
    %cst_123 = arith.constant 0.000000e+00 : f32
    %128 = vector.broadcast %cst_123 : f32 to vector<28x128xf32>
    %129 = arith.maximumf %127, %128 : vector<28x128xf32>
    %c0_124 = arith.constant 0 : index
    %c0_125 = arith.constant 0 : index
    %130 = vector.load %arg8[%c0_124, %c0_125] : memref<28x128xf32, #tpu.memory_space<vmem>>, vector<28x128xf32>
    tpu.vector_store %arg8[%c0_124, %c0_125], %129 {strides = array<i32>} : memref<28x128xf32, #tpu.memory_space<vmem>>, vector<28x128xf32>,
    %c0_126 = arith.constant 0 : index
    %c0_127 = arith.constant 0 : index
    %131 = tpu.strided_load %arg8[%c0_126, %c0_127] {strides = array<i32: 2, 1>} : memref<28x128xf32, #tpu.memory_space<vmem>>, vector<14x128xf32>
    %c1_128 = arith.constant 1 : index
    %c0_129 = arith.constant 0 : index
    %132 = tpu.strided_load %arg8[%c1_128, %c0_129] {strides = array<i32: 2, 1>} : memref<28x128xf32, #tpu.memory_space<vmem>>, vector<14x128xf32>
    %133 = arith.maximumf %131, %132 : vector<14x128xf32>
    %c0_130 = arith.constant 0 : index
    %c0_131 = arith.constant 0 : index
    %134 = vector.load %arg9[%c0_130, %c0_131] : memref<14x128xf32, #tpu.memory_space<vmem>>, vector<14x128xf32>
    tpu.vector_store %arg9[%c0_130, %c0_131], %133 {strides = array<i32>} : memref<14x128xf32, #tpu.memory_space<vmem>>, vector<14x128xf32>,
    %cst_132 = arith.constant 0.000000e+00 : f32
    %135 = vector.broadcast %cst_132 : f32 to vector<10x256xf32>
    %c0_133 = arith.constant 0 : index
    %c0_134 = arith.constant 0 : index
    %136 = vector.load %arg9[%c0_133, %c0_134] : memref<14x128xf32, #tpu.memory_space<vmem>>, vector<10x128xf32>
    %c0_135 = arith.constant 0 : index
    %c0_136 = arith.constant 0 : index
    %c0_137 = arith.constant 0 : index
    %137 = vector.load %arg3[%c0_135, %c0_136, %c0_137] : memref<5x128x256xf32, #tpu.memory_space<vmem>>, vector<1x128x256xf32>
    %138 = vector.shape_cast %137 : vector<1x128x256xf32> to vector<128x256xf32>
    %cst_138 = arith.constant dense<0.000000e+00> : vector<10x256xf32>
    %139 = tpu.matmul %136, %138, %cst_138 {dimension_numbers = #tpu.dot_dimension_numbers<[1], [0], [0], [1], [0, 0, 1, 1], [], []>} : vector<10x128xf32>, vector<128x256xf32>, vector<10x256xf32> -> vector<10x256xf32>
    %140 = arith.addf %135, %139 : vector<10x256xf32>
    %c1_139 = arith.constant 1 : index
    %c0_140 = arith.constant 0 : index
    %141 = vector.load %arg9[%c1_139, %c0_140] : memref<14x128xf32, #tpu.memory_space<vmem>>, vector<10x128xf32>
    %c1_141 = arith.constant 1 : index
    %c0_142 = arith.constant 0 : index
    %c0_143 = arith.constant 0 : index
    %142 = vector.load %arg3[%c1_141, %c0_142, %c0_143] : memref<5x128x256xf32, #tpu.memory_space<vmem>>, vector<1x128x256xf32>
    %143 = vector.shape_cast %142 : vector<1x128x256xf32> to vector<128x256xf32>
    %cst_144 = arith.constant dense<0.000000e+00> : vector<10x256xf32>
    %144 = tpu.matmul %141, %143, %cst_144 {dimension_numbers = #tpu.dot_dimension_numbers<[1], [0], [0], [1], [0, 0, 1, 1], [], []>} : vector<10x128xf32>, vector<128x256xf32>, vector<10x256xf32> -> vector<10x256xf32>
    %145 = arith.addf %140, %144 : vector<10x256xf32>
    %c2_145 = arith.constant 2 : index
    %c0_146 = arith.constant 0 : index
    %146 = vector.load %arg9[%c2_145, %c0_146] : memref<14x128xf32, #tpu.memory_space<vmem>>, vector<10x128xf32>
    %c2_147 = arith.constant 2 : index
    %c0_148 = arith.constant 0 : index
    %c0_149 = arith.constant 0 : index
    %147 = vector.load %arg3[%c2_147, %c0_148, %c0_149] : memref<5x128x256xf32, #tpu.memory_space<vmem>>, vector<1x128x256xf32>
    %148 = vector.shape_cast %147 : vector<1x128x256xf32> to vector<128x256xf32>
    %cst_150 = arith.constant dense<0.000000e+00> : vector<10x256xf32>
    %149 = tpu.matmul %146, %148, %cst_150 {dimension_numbers = #tpu.dot_dimension_numbers<[1], [0], [0], [1], [0, 0, 1, 1], [], []>} : vector<10x128xf32>, vector<128x256xf32>, vector<10x256xf32> -> vector<10x256xf32>
    %150 = arith.addf %145, %149 : vector<10x256xf32>
    %c3_151 = arith.constant 3 : index
    %c0_152 = arith.constant 0 : index
    %151 = vector.load %arg9[%c3_151, %c0_152] : memref<14x128xf32, #tpu.memory_space<vmem>>, vector<10x128xf32>
    %c3_153 = arith.constant 3 : index
    %c0_154 = arith.constant 0 : index
    %c0_155 = arith.constant 0 : index
    %152 = vector.load %arg3[%c3_153, %c0_154, %c0_155] : memref<5x128x256xf32, #tpu.memory_space<vmem>>, vector<1x128x256xf32>
    %153 = vector.shape_cast %152 : vector<1x128x256xf32> to vector<128x256xf32>
    %cst_156 = arith.constant dense<0.000000e+00> : vector<10x256xf32>
    %154 = tpu.matmul %151, %153, %cst_156 {dimension_numbers = #tpu.dot_dimension_numbers<[1], [0], [0], [1], [0, 0, 1, 1], [], []>} : vector<10x128xf32>, vector<128x256xf32>, vector<10x256xf32> -> vector<10x256xf32>
    %155 = arith.addf %150, %154 : vector<10x256xf32>
    %c4_157 = arith.constant 4 : index
    %c0_158 = arith.constant 0 : index
    %156 = vector.load %arg9[%c4_157, %c0_158] : memref<14x128xf32, #tpu.memory_space<vmem>>, vector<10x128xf32>
    %c4_159 = arith.constant 4 : index
    %c0_160 = arith.constant 0 : index
    %c0_161 = arith.constant 0 : index
    %157 = vector.load %arg3[%c4_159, %c0_160, %c0_161] : memref<5x128x256xf32, #tpu.memory_space<vmem>>, vector<1x128x256xf32>
    %158 = vector.shape_cast %157 : vector<1x128x256xf32> to vector<128x256xf32>
    %cst_162 = arith.constant dense<0.000000e+00> : vector<10x256xf32>
    %159 = tpu.matmul %156, %158, %cst_162 {dimension_numbers = #tpu.dot_dimension_numbers<[1], [0], [0], [1], [0, 0, 1, 1], [], []>} : vector<10x128xf32>, vector<128x256xf32>, vector<10x256xf32> -> vector<10x256xf32>
    %160 = arith.addf %155, %159 : vector<10x256xf32>
    %161 = vector.extract_strided_slice %160 {offsets = [0, 0], sizes = [10, 128], strides = [1, 1]} : vector<10x256xf32> to vector<10x128xf32>
    %162 = vector.extract_strided_slice %160 {offsets = [0, 128], sizes = [10, 128], strides = [1, 1]} : vector<10x256xf32> to vector<10x128xf32>
    %163 = arith.maximumf %161, %162 : vector<10x128xf32>
    %164 = vector.broadcast %1 : vector<1x128xf32> to vector<10x128xf32>
    %165 = arith.addf %163, %164 : vector<10x128xf32>
    %cst_163 = arith.constant 0.000000e+00 : f32
    %166 = vector.broadcast %cst_163 : f32 to vector<10x128xf32>
    %167 = arith.maximumf %165, %166 : vector<10x128xf32>
    %c0_164 = arith.constant 0 : index
    %c0_165 = arith.constant 0 : index
    %168 = vector.load %arg10[%c0_164, %c0_165] : memref<10x128xf32, #tpu.memory_space<vmem>>, vector<10x128xf32>
    tpu.vector_store %arg10[%c0_164, %c0_165], %167 {strides = array<i32>} : memref<10x128xf32, #tpu.memory_space<vmem>>, vector<10x128xf32>,
    %c0_166 = arith.constant 0 : index
    %c0_167 = arith.constant 0 : index
    %169 = tpu.strided_load %arg10[%c0_166, %c0_167] {strides = array<i32: 2, 1>} : memref<10x128xf32, #tpu.memory_space<vmem>>, vector<5x128xf32>
    %c1_168 = arith.constant 1 : index
    %c0_169 = arith.constant 0 : index
    %170 = tpu.strided_load %arg10[%c1_168, %c0_169] {strides = array<i32: 2, 1>} : memref<10x128xf32, #tpu.memory_space<vmem>>, vector<5x128xf32>
    %171 = arith.maximumf %169, %170 : vector<5x128xf32>
    %172 = vector.extract_strided_slice %171 {offsets = [0, 0], sizes = [1, 128], strides = [1, 1]} : vector<5x128xf32> to vector<1x128xf32>
    %c1_170 = arith.constant 1 : index
    %c0_171 = arith.constant 0 : index
    %173 = vector.load %arg11[%c1_170, %c0_171] : memref<2x640xf32, #tpu.memory_space<vmem>>, vector<1x128xf32>
    tpu.vector_store %arg11[%c1_170, %c0_171], %172 {strides = array<i32>} : memref<2x640xf32, #tpu.memory_space<vmem>>, vector<1x128xf32>,
    %174 = vector.extract_strided_slice %171 {offsets = [1, 0], sizes = [1, 128], strides = [1, 1]} : vector<5x128xf32> to vector<1x128xf32>
    %c1_172 = arith.constant 1 : index
    %c128_173 = arith.constant 128 : index
    %175 = vector.load %arg11[%c1_172, %c128_173] : memref<2x640xf32, #tpu.memory_space<vmem>>, vector<1x128xf32>
    tpu.vector_store %arg11[%c1_172, %c128_173], %174 {strides = array<i32>} : memref<2x640xf32, #tpu.memory_space<vmem>>, vector<1x128xf32>,
    %176 = vector.extract_strided_slice %171 {offsets = [2, 0], sizes = [1, 128], strides = [1, 1]} : vector<5x128xf32> to vector<1x128xf32>
    %c1_174 = arith.constant 1 : index
    %c256_175 = arith.constant 256 : index
    %177 = vector.load %arg11[%c1_174, %c256_175] : memref<2x640xf32, #tpu.memory_space<vmem>>, vector<1x128xf32>
    tpu.vector_store %arg11[%c1_174, %c256_175], %176 {strides = array<i32>} : memref<2x640xf32, #tpu.memory_space<vmem>>, vector<1x128xf32>,
    %178 = vector.extract_strided_slice %171 {offsets = [3, 0], sizes = [1, 128], strides = [1, 1]} : vector<5x128xf32> to vector<1x128xf32>
    %c1_176 = arith.constant 1 : index
    %c384_177 = arith.constant 384 : index
    %179 = vector.load %arg11[%c1_176, %c384_177] : memref<2x640xf32, #tpu.memory_space<vmem>>, vector<1x128xf32>
    tpu.vector_store %arg11[%c1_176, %c384_177], %178 {strides = array<i32>} : memref<2x640xf32, #tpu.memory_space<vmem>>, vector<1x128xf32>,
    %180 = vector.extract_strided_slice %171 {offsets = [4, 0], sizes = [1, 128], strides = [1, 1]} : vector<5x128xf32> to vector<1x128xf32>
    %c1_178 = arith.constant 1 : index
    %c512_179 = arith.constant 512 : index
    %181 = vector.load %arg11[%c1_178, %c512_179] : memref<2x640xf32, #tpu.memory_space<vmem>>, vector<1x128xf32>
    tpu.vector_store %arg11[%c1_178, %c512_179], %180 {strides = array<i32>} : memref<2x640xf32, #tpu.memory_space<vmem>>, vector<1x128xf32>,
    %c0_180 = arith.constant 0 : index
    %c0_181 = arith.constant 0 : index
    %182 = vector.load %arg11[%c0_180, %c0_181] : memref<2x640xf32, #tpu.memory_space<vmem>>, vector<2x640xf32>
    %c0_182 = arith.constant 0 : index
    %c0_183 = arith.constant 0 : index
    %183 = vector.load %arg4[%c0_182, %c0_183] : memref<640x128xf32, #tpu.memory_space<vmem>>, vector<640x128xf32>
    %cst_184 = arith.constant dense<0.000000e+00> : vector<2x128xf32>
    %184 = tpu.matmul %182, %183, %cst_184 {dimension_numbers = #tpu.dot_dimension_numbers<[1], [0], [0], [1], [0, 0, 1, 1], [], []>} : vector<2x640xf32>, vector<640x128xf32>, vector<2x128xf32> -> vector<2x128xf32>
    %c2_185 = arith.constant 2 : index
    %c0_186 = arith.constant 0 : index
    %185 = vector.load %arg6[%c2_185, %c0_186] : memref<5x128xf32, #tpu.memory_space<vmem>>, vector<1x128xf32>
    %186 = vector.broadcast %185 : vector<1x128xf32> to vector<2x128xf32>
    %187 = arith.addf %184, %186 : vector<2x128xf32>
    %cst_187 = arith.constant 0.000000e+00 : f32
    %188 = vector.broadcast %cst_187 : f32 to vector<2x128xf32>
    %189 = arith.maximumf %187, %188 : vector<2x128xf32>
    %c0_188 = arith.constant 0 : index
    %c0_189 = arith.constant 0 : index
    %190 = vector.load %arg5[%c0_188, %c0_189] : memref<128x256xf32, #tpu.memory_space<vmem>>, vector<128x128xf32>
    %cst_190 = arith.constant dense<0.000000e+00> : vector<2x128xf32>
    %191 = tpu.matmul %189, %190, %cst_190 {dimension_numbers = #tpu.dot_dimension_numbers<[1], [0], [0], [1], [0, 0, 1, 1], [], []>} : vector<2x128xf32>, vector<128x128xf32>, vector<2x128xf32> -> vector<2x128xf32>
    %c3_191 = arith.constant 3 : index
    %c0_192 = arith.constant 0 : index
    %192 = vector.load %arg6[%c3_191, %c0_192] : memref<5x128xf32, #tpu.memory_space<vmem>>, vector<1x128xf32>
    %193 = vector.broadcast %192 : vector<1x128xf32> to vector<2x128xf32>
    %194 = arith.addf %191, %193 : vector<2x128xf32>
    %cst_193 = arith.constant 0.000000e+00 : f32
    %195 = vector.broadcast %cst_193 : f32 to vector<2x128xf32>
    %196 = arith.maximumf %194, %195 : vector<2x128xf32>
    %c0_194 = arith.constant 0 : index
    %c128_195 = arith.constant 128 : index
    %197 = vector.load %arg5[%c0_194, %c128_195] : memref<128x256xf32, #tpu.memory_space<vmem>>, vector<128x128xf32>
    %cst_196 = arith.constant dense<0.000000e+00> : vector<2x128xf32>
    %198 = tpu.matmul %196, %197, %cst_196 {dimension_numbers = #tpu.dot_dimension_numbers<[1], [0], [0], [1], [0, 0, 1, 1], [], []>} : vector<2x128xf32>, vector<128x128xf32>, vector<2x128xf32> -> vector<2x128xf32>
    %c4_197 = arith.constant 4 : index
    %c0_198 = arith.constant 0 : index
    %199 = vector.load %arg6[%c4_197, %c0_198] : memref<5x128xf32, #tpu.memory_space<vmem>>, vector<1x128xf32>
    %200 = vector.broadcast %199 : vector<1x128xf32> to vector<2x128xf32>
    %201 = arith.addf %198, %200 : vector<2x128xf32>
    %c0_199 = arith.constant 0 : index
    %c0_200 = arith.constant 0 : index
    %202 = vector.load %arg7[%c0_199, %c0_200] : memref<2x128xf32, #tpu.memory_space<vmem>>, vector<2x128xf32>
    tpu.vector_store %arg7[%c0_199, %c0_200], %201 {strides = array<i32>} : memref<2x128xf32, #tpu.memory_space<vmem>>, vector<2x128xf32>,
    return
  }
  func.func @transform_0(%arg0: i32) -> (i32, i32, i32) {
    %c0_i32 = arith.constant 0 : i32
    %c0_i32_0 = arith.constant 0 : i32
    %c0_i32_1 = arith.constant 0 : i32
    %c0_i32_2 = arith.constant 0 : i32
    return %c0_i32, %c0_i32_0, %c0_i32_1 : i32, i32, i32
  }
  func.func @transform_1(%arg0: i32) -> (i32, i32, i32) {
    %c0_i32 = arith.constant 0 : i32
    %c0_i32_0 = arith.constant 0 : i32
    %c0_i32_1 = arith.constant 0 : i32
    %c0_i32_2 = arith.constant 0 : i32
    return %c0_i32, %c0_i32_0, %c0_i32_1 : i32, i32, i32
  }
  func.func @transform_2(%arg0: i32) -> (i32, i32, i32) {
    %c0_i32 = arith.constant 0 : i32
    %c0_i32_0 = arith.constant 0 : i32
    %c0_i32_1 = arith.constant 0 : i32
    %c0_i32_2 = arith.constant 0 : i32
    return %c0_i32, %c0_i32_0, %c0_i32_1 : i32, i32, i32
  }
  func.func @transform_3(%arg0: i32) -> (i32, i32) {
    %c0_i32 = arith.constant 0 : i32
    %c0_i32_0 = arith.constant 0 : i32
    %c0_i32_1 = arith.constant 0 : i32
    return %c0_i32, %c0_i32_0 : i32, i32
  }
  func.func @transform_4(%arg0: i32) -> (i32, i32) {
    %c0_i32 = arith.constant 0 : i32
    %c0_i32_0 = arith.constant 0 : i32
    %c0_i32_1 = arith.constant 0 : i32
    return %c0_i32, %c0_i32_0 : i32, i32
  }
  func.func @transform_5(%arg0: i32) -> (i32, i32) {
    %c0_i32 = arith.constant 0 : i32
    %c0_i32_0 = arith.constant 0 : i32
    %c0_i32_1 = arith.constant 0 : i32
    return %c0_i32, %c0_i32_0 : i32, i32
  }
  func.func @transform_6(%arg0: i32) -> (i32, i32) {
    %c0_i32 = arith.constant 0 : i32
    %c0_i32_0 = arith.constant 0 : i32
    %c0_i32_1 = arith.constant 0 : i32
    return %c0_i32, %c0_i32_0 : i32, i32
  }
}

</mosaic_0001>

<llo_original>
// kernel: lenet_forward.1
$region0: #{lenet_forward.1}
  #allocation0 [shape = 'u32[]', space=smem, size = 0x4, offset = 0x4, fixed_abs, tag = 'smem constant byte address 0x4 - core index']
  #allocation1 [shape = 'u32[144,128]{1,0:T(1,128)}', space=vmem, size = 0x12000, scoped, tag = 'internal scratch']
  #allocation2 [shape = 'f32[28,128]{1,0:T(8,128)}', space=vmem, size = 0x4000, scoped, tag = 'scratch operand']
  #allocation3 [shape = 'f32[14,128]{1,0:T(8,128)}', space=vmem, size = 0x2000, scoped, tag = 'scratch operand']
  #allocation4 [shape = 'f32[10,128]{1,0:T(8,128)}', space=vmem, size = 0x2000, scoped, tag = 'scratch operand']
  #allocation5 [shape = 'f32[2,640]{1,0:T(2,128)}', space=vmem, size = 0x1400, scoped, tag = 'scratch operand']
  %s0 = inlined_call_operand.vmem [shape: f32[2,32,128], index: 0, kind: input, shape index: {}]
  %s1 = inlined_call_operand.vmem [shape: f32[5,128,256], index: 1, kind: input, shape index: {}]
  %s2 = inlined_call_operand.hbm [shape: f32[5,128,256], index: 2, kind: input, shape index: {}]
  %s3 = inlined_call_operand.hbm [shape: f32[640,128], index: 3, kind: input, shape index: {}]
  %s4 = inlined_call_operand.hbm [shape: f32[128,256], index: 4, kind: input, shape index: {}]
  %s5 = inlined_call_operand.vmem [shape: f32[5,128], index: 5, kind: input, shape index: {}]
  %s6 = inlined_call_operand.vmem [shape: f32[2,128], index: 6, kind: output, shape index: {}]
  %s7 = sld [smem:[#allocation0]]
  $region46: #{lenet_forward.1} parent=0
    _
  %s9 = ssub.s32 1, %s7
  %s10 = scalar_select 0, %s9, %s7
  $region1: #{lenet_forward.1} parent=0
    #allocation6 [shape = 'u8[655360]{0}', space=vmem, size = 0xa0000, scoped, tag = 'input window, operand 2, single buffered']
    #allocation7 [shape = 's32[1]{0}', space=sflag, size = 0x4, scoped, tag = 'scoped memory for lenet_forward.1']
    #allocation8 [shape = 'u8[327680]{0}', space=vmem, size = 0x50000, scoped, tag = 'input window, operand 3, single buffered']
    #allocation9 [shape = 's32[1]{0}', space=sflag, size = 0x4, scoped, tag = 'scoped memory for lenet_forward.1']
    #allocation10 [shape = 'u8[131072]{0}', space=vmem, size = 0x20000, scoped, tag = 'input window, operand 4, single buffered']
    %11 = vsyncpa [#allocation7], 0
    %12 = vsyncpa [#allocation9], 0
    // Predicated region
    $region2: #{lenet_forward.1} parent=1 // pred_check
      _
    $region3: #{lenet_forward.1} parent=1 // pred_check_branch
      %14 = sbr.rel (0) target = $region5
    $region4: #{lenet_forward.1} parent=1 // pred_region
      _
    $region5: #{lenet_forward.1} parent=1 // pred_fallthru
      _
    // Predicated region
    $region6: #{lenet_forward.1} parent=1 // pred_check
      _
    $region7: #{lenet_forward.1} parent=1 // pred_check_branch
      %16 = sbr.rel (0) target = $region9
    $region8: #{lenet_forward.1} parent=1 // pred_region
      _
    $region9: #{lenet_forward.1} parent=1 // pred_fallthru
      _
    // Predicated region
    $region10: #{lenet_forward.1} parent=1 // pred_check
      _
    $region11: #{lenet_forward.1} parent=1 // pred_check_branch
      %18 = sbr.rel (0) target = $region13
    $region12: #{lenet_forward.1} parent=1 // pred_region
      %s20 = ssub.s32 20480, 20480
      %21 = vsyncadd [#allocation7], %s20
      %s22 = sshll.u32 [#allocation6], 4
      %s23 = int_to_ptr.vmem [resolvable:$true] %s22
      %28 = dma.hbm_to_vmem [thread:$0]  %s2, 20480, %s23, [#allocation7], 256, 256, 16
    $region13: #{lenet_forward.1} parent=1 // pred_fallthru
      _
    // Predicated region
    $region14: #{lenet_forward.1} parent=1 // pred_check
      _
    $region15: #{lenet_forward.1} parent=1 // pred_check_branch
      %30 = sbr.rel (0) target = $region17
    $region16: #{lenet_forward.1} parent=1 // pred_region
      %s32 = ssub.s32 10240, 10240
      %33 = vsyncadd [#allocation9], %s32
      %s34 = sshll.u32 [#allocation8], 4
      %s35 = int_to_ptr.vmem [resolvable:$true] %s34
      %40 = dma.hbm_to_vmem [thread:$0]  %s3, 10240, %s35, [#allocation9], 128, 128, 8
    $region17: #{lenet_forward.1} parent=1 // pred_fallthru
      _
    // Predicated region
    $region18: #{lenet_forward.1} parent=1 // pred_check
      _
    $region19: #{lenet_forward.1} parent=1 // pred_check_branch
      %42 = sbr.rel (0) target = $region21
    $region20: #{lenet_forward.1} parent=1 // pred_region
      %s44 = ssub.s32 4096, 4096
      %45 = vsyncadd [#allocation9], %s44
      %s46 = sshll.u32 [#allocation10], 4
      %s47 = int_to_ptr.vmem [resolvable:$true] %s46
      %52 = dma.hbm_to_vmem [thread:$0]  %s4, 4096, %s47, [#allocation9], 256, 256, 16
    $region21: #{lenet_forward.1} parent=1 // pred_fallthru
      _
    // Predicated region
    $region22: #{lenet_forward.1} parent=1 // pred_check
      _
    $region23: #{lenet_forward.1} parent=1 // pred_check_branch
      %54 = sbr.rel (0) target = $region25
    $region24: #{lenet_forward.1} parent=1 // pred_region
      _
    $region25: #{lenet_forward.1} parent=1 // pred_fallthru
      _
    // Predicated region
    $region26: #{lenet_forward.1} parent=1 // pred_check
      _
    $region27: #{lenet_forward.1} parent=1 // pred_check_branch
      %56 = sbr.rel (0) target = $region29
    $region28: #{lenet_forward.1} parent=1 // pred_region
      %57 = dma.done [#allocation7], 20480
    $region29: #{lenet_forward.1} parent=1 // pred_fallthru
      _
    // Predicated region
    $region30: #{lenet_forward.1} parent=1 // pred_check
      _
    $region31: #{lenet_forward.1} parent=1 // pred_check_branch
      %59 = sbr.rel (0) target = $region33
    $region32: #{lenet_forward.1} parent=1 // pred_region
      %60 = dma.done [#allocation9], 10240
    $region33: #{lenet_forward.1} parent=1 // pred_fallthru
      _
    // Predicated region
    $region34: #{lenet_forward.1} parent=1 // pred_check
      _
    $region35: #{lenet_forward.1} parent=1 // pred_check_branch
      %62 = sbr.rel (0) target = $region37
    $region36: #{lenet_forward.1} parent=1 // pred_region
      %63 = dma.done [#allocation9], 4096
    $region37: #{lenet_forward.1} parent=1 // pred_fallthru
      _
    %v64 = vld [vmem:[%s5] sm:$0x1]
    %v65 = vld [vmem:[%s5 + $0x1] sm:$0x1]
    %v66 = vld [vmem:[%s0] sm:$0xff]
    %v67 = vld [vmem:[%s0 + $0x8] sm:$0xff]
    %v68 = vld [vmem:[%s0 + $0x10] sm:$0xff]
    %v69 = vld [vmem:[%s0 + $0x18] sm:$0xf]
    %v70 = vld [vmem:[%s1] sm:$0xff]
    %v71 = vld [vmem:[%s1 + $0x8] sm:$0xff]
    %v72 = vld [vmem:[%s1 + $0x10] sm:$0xff]
    %v73 = vld [vmem:[%s1 + $0x18] sm:$0xff]
    %v74 = vld [vmem:[%s1 + $0x20] sm:$0xff]
    %v75 = vld [vmem:[%s1 + $0x28] sm:$0xff]
    %v76 = vld [vmem:[%s1 + $0x30] sm:$0xff]
    %v77 = vld [vmem:[%s1 + $0x38] sm:$0xff]
    %v78 = vld [vmem:[%s1 + $0x40] sm:$0xff]
    %v79 = vld [vmem:[%s1 + $0x48] sm:$0xff]
    %v80 = vld [vmem:[%s1 + $0x50] sm:$0xff]
    %v81 = vld [vmem:[%s1 + $0x58] sm:$0xff]
    %v82 = vld [vmem:[%s1 + $0x60] sm:$0xff]
    %v83 = vld [vmem:[%s1 + $0x68] sm:$0xff]
    %v84 = vld [vmem:[%s1 + $0x70] sm:$0xff]
    %v85 = vld [vmem:[%s1 + $0x78] sm:$0xff]
    %v86 = vld [vmem:[%s1 + $0x80] sm:$0xff]
    %v87 = vld [vmem:[%s1 + $0x88] sm:$0xff]
    %v88 = vld [vmem:[%s1 + $0x90] sm:$0xff]
    %v89 = vld [vmem:[%s1 + $0x98] sm:$0xff]
    %v90 = vld [vmem:[%s1 + $0xa0] sm:$0xff]
    %v91 = vld [vmem:[%s1 + $0xa8] sm:$0xff]
    %v92 = vld [vmem:[%s1 + $0xb0] sm:$0xff]
    %v93 = vld [vmem:[%s1 + $0xb8] sm:$0xff]
    %v94 = vld [vmem:[%s1 + $0xc0] sm:$0xff]
    %v95 = vld [vmem:[%s1 + $0xc8] sm:$0xff]
    %v96 = vld [vmem:[%s1 + $0xd0] sm:$0xff]
    %v97 = vld [vmem:[%s1 + $0xd8] sm:$0xff]
    %v98 = vld [vmem:[%s1 + $0xe0] sm:$0xff]
    %v99 = vld [vmem:[%s1 + $0xe8] sm:$0xff]
    %v100 = vld [vmem:[%s1 + $0xf0] sm:$0xff]
    %v101 = vld [vmem:[%s1 + $0xf8] sm:$0xff]
    %v102 = vld [vmem:[%s0 + $0x1] sm:$0xff]
    %v103 = vld [vmem:[%s0 + $0x9] sm:$0xff]
    %v104 = vld [vmem:[%s0 + $0x11] sm:$0xff]
    %v105 = vld [vmem:[%s0 + $0x19] sm:$0xf]
    %s106 = scalar_lea.vmem %s1, 256
    %v107 = vld [vmem:[%s106] sm:$0xff]
    %v108 = vld [vmem:[%s106 + $0x8] sm:$0xff]
    %v109 = vld [vmem:[%s106 + $0x10] sm:$0xff]
    %v110 = vld [vmem:[%s106 + $0x18] sm:$0xff]
    %v111 = vld [vmem:[%s106 + $0x20] sm:$0xff]
    %v112 = vld [vmem:[%s106 + $0x28] sm:$0xff]
    %v113 = vld [vmem:[%s106 + $0x30] sm:$0xff]
    %v114 = vld [vmem:[%s106 + $0x38] sm:$0xff]
    %v115 = vld [vmem:[%s106 + $0x40] sm:$0xff]
    %v116 = vld [vmem:[%s106 + $0x48] sm:$0xff]
    %v117 = vld [vmem:[%s106 + $0x50] sm:$0xff]
    %v118 = vld [vmem:[%s106 + $0x58] sm:$0xff]
    %v119 = vld [vmem:[%s106 + $0x60] sm:$0xff]
    %v120 = vld [vmem:[%s106 + $0x68] sm:$0xff]
    %v121 = vld [vmem:[%s106 + $0x70] sm:$0xff]
    %v122 = vld [vmem:[%s106 + $0x78] sm:$0xff]
    %v123 = vld [vmem:[%s106 + $0x80] sm:$0xff]
    %v124 = vld [vmem:[%s106 + $0x88] sm:$0xff]
    %v125 = vld [vmem:[%s106 + $0x90] sm:$0xff]
    %v126 = vld [vmem:[%s106 + $0x98] sm:$0xff]
    %v127 = vld [vmem:[%s106 + $0xa0] sm:$0xff]
    %v128 = vld [vmem:[%s106 + $0xa8] sm:$0xff]
    %v129 = vld [vmem:[%s106 + $0xb0] sm:$0xff]
    %v130 = vld [vmem:[%s106 + $0xb8] sm:$0xff]
    %v131 = vld [vmem:[%s106 + $0xc0] sm:$0xff]
    %v132 = vld [vmem:[%s106 + $0xc8] sm:$0xff]
    %v133 = vld [vmem:[%s106 + $0xd0] sm:$0xff]
    %v134 = vld [vmem:[%s106 + $0xd8] sm:$0xff]
    %v135 = vld [vmem:[%s106 + $0xe0] sm:$0xff]
    %v136 = vld [vmem:[%s106 + $0xe8] sm:$0xff]
    %v137 = vld [vmem:[%s106 + $0xf0] sm:$0xff]
    %v138 = vld [vmem:[%s106 + $0xf8] sm:$0xff]
    %139 = vmatprep.subr.mxu0 %v108
    %140 = vmatpush1.msra.mxu0 %v107
    %141 = vmatprep.subr.mxu0 %v110
    %142 = vmatpush1.msra.mxu0 %v109
    %143 = vmatprep.subr.mxu0 %v112
    %144 = vmatpush1.msra.mxu0 %v111
    %145 = vmatprep.subr.mxu0 %v114
    %146 = vmatpush1.msra.mxu0 %v113
    %147 = vmatprep.subr.mxu0 %v116
    %148 = vmatpush1.msra.mxu0 %v115
    %149 = vmatprep.subr.mxu0 %v118
    %150 = vmatpush1.msra.mxu0 %v117
    %151 = vmatprep.subr.mxu0 %v120
    %152 = vmatpush1.msra.mxu0 %v119
    %153 = vmatprep.subr.mxu0 %v122
    %154 = vmatpush1.msra.mxu0 %v121
    %155 = vmatprep.subr.mxu0 %v124
    %156 = vmatpush1.msra.mxu0 %v123
    %157 = vmatprep.subr.mxu0 %v126
    %158 = vmatpush1.msra.mxu0 %v125
    %159 = vmatprep.subr.mxu0 %v128
    %160 = vmatpush1.msra.mxu0 %v127
    %161 = vmatprep.subr.mxu0 %v130
    %162 = vmatpush1.msra.mxu0 %v129
    %163 = vmatprep.subr.mxu0 %v132
    %164 = vmatpush1.msra.mxu0 %v131
    %165 = vmatprep.subr.mxu0 %v134
    %166 = vmatpush1.msra.mxu0 %v133
    %167 = vmatprep.subr.mxu0 %v136
    %168 = vmatpush1.msra.mxu0 %v135
    %169 = vmatprep.subr.mxu0 %v138
    %170 = vmatpush1.msra.mxu0 %v137
    %171 = vmatprep.subr.mxu0 0.0
    %172 = vmatpush1.msra.mxu0 0.0
    %173 = vmatprep.subr.mxu0 0.0
    %174 = vmatpush1.msra.mxu0 0.0
    %175 = vmatprep.subr.mxu0 0.0
    %176 = vmatpush1.msra.mxu0 0.0
    %177 = vmatprep.subr.mxu0 0.0
    %178 = vmatpush1.msra.mxu0 0.0
    %179 = vmatprep.subr.mxu0 0.0
    %180 = vmatpush1.msra.mxu0 0.0
    %181 = vmatprep.subr.mxu0 0.0
    %182 = vmatpush1.msra.mxu0 0.0
    %183 = vmatprep.subr.mxu0 0.0
    %184 = vmatpush1.msra.mxu0 0.0
    %185 = vmatprep.subr.mxu0 0.0
    %186 = vmatpush1.msra.mxu0 0.0
    %187 = vmatprep.subr.mxu0 0.0
    %188 = vmatpush1.msra.mxu0 0.0
    %189 = vmatprep.subr.mxu0 0.0
    %190 = vmatpush1.msra.mxu0 0.0
    %191 = vmatprep.subr.mxu0 0.0
    %192 = vmatpush1.msra.mxu0 0.0
    %193 = vmatprep.subr.mxu0 0.0
    %194 = vmatpush1.msra.mxu0 0.0
    %195 = vmatprep.subr.mxu0 0.0
    %196 = vmatpush1.msra.mxu0 0.0
    %197 = vmatprep.subr.mxu0 0.0
    %198 = vmatpush1.msra.mxu0 0.0
    %199 = vmatprep.subr.mxu0 0.0
    %200 = vmatpush1.msra.mxu0 0.0
    %201 = vmatprep.subr.mxu0 0.0
    %202 = vmatpush1.msra.mxu0 0.0
    %203 = vmatprep.mubr.f32.mxu0 0.0
    %204 = vmatmul.mubr.f32.gmra.mrb[0].mxu0 %v102
    %v205 = vpop.f32.mrb[0].mxu0
    %v206 = vadd.f32 0.0, %v205
    %v207 = vpop.f32.mrb[0].mxu0
    %v208 = vadd.f32 0.0, %v207
    %209 = vmatprep.mubr.f32.mxu0 0.0
    %210 = vmatmul.mubr.f32.gmra.mrb[0].mxu0 %v103
    %v211 = vpop.f32.mrb[0].mxu0
    %v212 = vadd.f32 0.0, %v211
    %v213 = vpop.f32.mrb[0].mxu0
    %v214 = vadd.f32 0.0, %v213
    %215 = vmatprep.mubr.f32.mxu0 0.0
    %216 = vmatmul.mubr.f32.gmra.mrb[0].mxu0 %v104
    %v217 = vpop.f32.mrb[0].mxu0
    %v218 = vadd.f32 0.0, %v217
    %v219 = vpop.f32.mrb[0].mxu0
    %v220 = vadd.f32 0.0, %v219
    %221 = vmatprep.mubr.f32.mxu0 0.0
    %222 = vmatmul.mubr.f32.gmra.mrb[0].mxu0 %v105
    %v223 = vpop.f32.mrb[0].mxu0
    %v224 = vadd.f32 0.0, %v223
    %v225 = vpop.f32.mrb[0].mxu0
    %v226 = vadd.f32 0.0, %v225
    %227 = vdwg.mxu0
    %228 = vmatprep.subr.mxu0 %v71
    %229 = vmatpush1.msra.mxu0 %v70
    %230 = vmatprep.subr.mxu0 %v73
    %231 = vmatpush1.msra.mxu0 %v72
    %232 = vmatprep.subr.mxu0 %v75
    %233 = vmatpush1.msra.mxu0 %v74
    %234 = vmatprep.subr.mxu0 %v77
    %235 = vmatpush1.msra.mxu0 %v76
    %236 = vmatprep.subr.mxu0 %v79
    %237 = vmatpush1.msra.mxu0 %v78
    %238 = vmatprep.subr.mxu0 %v81
    %239 = vmatpush1.msra.mxu0 %v80
    %240 = vmatprep.subr.mxu0 %v83
    %241 = vmatpush1.msra.mxu0 %v82
    %242 = vmatprep.subr.mxu0 %v85
    %243 = vmatpush1.msra.mxu0 %v84
    %244 = vmatprep.subr.mxu0 %v87
    %245 = vmatpush1.msra.mxu0 %v86
    %246 = vmatprep.subr.mxu0 %v89
    %247 = vmatpush1.msra.mxu0 %v88
    %248 = vmatprep.subr.mxu0 %v91
    %249 = vmatpush1.msra.mxu0 %v90
    %250 = vmatprep.subr.mxu0 %v93
    %251 = vmatpush1.msra.mxu0 %v92
    %252 = vmatprep.subr.mxu0 %v95
    %253 = vmatpush1.msra.mxu0 %v94
    %254 = vmatprep.subr.mxu0 %v97
    %255 = vmatpush1.msra.mxu0 %v96
    %256 = vmatprep.subr.mxu0 %v99
    %257 = vmatpush1.msra.mxu0 %v98
    %258 = vmatprep.subr.mxu0 %v101
    %259 = vmatpush1.msra.mxu0 %v100
    %260 = vmatprep.subr.mxu0 0.0
    %261 = vmatpush1.msra.mxu0 0.0
    %262 = vmatprep.subr.mxu0 0.0
    %263 = vmatpush1.msra.mxu0 0.0
    %264 = vmatprep.subr.mxu0 0.0
    %265 = vmatpush1.msra.mxu0 0.0
    %266 = vmatprep.subr.mxu0 0.0
    %267 = vmatpush1.msra.mxu0 0.0
    %268 = vmatprep.subr.mxu0 0.0
    %269 = vmatpush1.msra.mxu0 0.0
    %270 = vmatprep.subr.mxu0 0.0
    %271 = vmatpush1.msra.mxu0 0.0
    %272 = vmatprep.subr.mxu0 0.0
    %273 = vmatpush1.msra.mxu0 0.0
    %274 = vmatprep.subr.mxu0 0.0
    %275 = vmatpush1.msra.mxu0 0.0
    %276 = vmatprep.subr.mxu0 0.0
    %277 = vmatpush1.msra.mxu0 0.0
    %278 = vmatprep.subr.mxu0 0.0
    %279 = vmatpush1.msra.mxu0 0.0
    %280 = vmatprep.subr.mxu0 0.0
    %281 = vmatpush1.msra.mxu0 0.0
    %282 = vmatprep.subr.mxu0 0.0
    %283 = vmatpush1.msra.mxu0 0.0
    %284 = vmatprep.subr.mxu0 0.0
    %285 = vmatpush1.msra.mxu0 0.0
    %286 = vmatprep.subr.mxu0 0.0
    %287 = vmatpush1.msra.mxu0 0.0
    %288 = vmatprep.subr.mxu0 0.0
    %289 = vmatpush1.msra.mxu0 0.0
    %290 = vmatprep.subr.mxu0 0.0
    %291 = vmatpush1.msra.mxu0 0.0
    %292 = vmatprep.mubr.f32.mxu0 0.0
    %293 = vmatmul.mubr.f32.gmra.mrb[0].mxu0 %v66
    %v294 = vpop.f32.mrb[0].mxu0
    %v295 = vadd.f32 %v206, %v294
    %v296 = vpop.f32.mrb[0].mxu0
    %v297 = vadd.f32 %v208, %v296
    %298 = vmatprep.mubr.f32.mxu0 0.0
    %299 = vmatmul.mubr.f32.gmra.mrb[0].mxu0 %v67
    %v300 = vpop.f32.mrb[0].mxu0
    %v301 = vadd.f32 %v212, %v300
    %v302 = vpop.f32.mrb[0].mxu0
    %v303 = vadd.f32 %v214, %v302
    %304 = vmatprep.mubr.f32.mxu0 0.0
    %305 = vmatmul.mubr.f32.gmra.mrb[0].mxu0 %v68
    %v306 = vpop.f32.mrb[0].mxu0
    %v307 = vadd.f32 %v218, %v306
    %v308 = vpop.f32.mrb[0].mxu0
    %v309 = vadd.f32 %v220, %v308
    %310 = vmatprep.mubr.f32.mxu0 0.0
    %311 = vmatmul.mubr.f32.gmra.mrb[0].mxu0 %v69
    %v312 = vpop.f32.mrb[0].mxu0
    %v313 = vadd.f32 %v224, %v312
    %v314 = vpop.f32.mrb[0].mxu0
    %v315 = vadd.f32 %v226, %v314
    %316 = vdwg.mxu0
    %v317 = vld [vmem:[%s0 + $0x2] sm:$0xff]
    %v318 = vld [vmem:[%s0 + $0xa] sm:$0xff]
    %v319 = vld [vmem:[%s0 + $0x12] sm:$0xff]
    %v320 = vld [vmem:[%s0 + $0x1a] sm:$0xf]
    %s321 = scalar_lea.vmem %s1, 512
    %v322 = vld [vmem:[%s321] sm:$0xff]
    %v323 = vld [vmem:[%s321 + $0x8] sm:$0xff]
    %v324 = vld [vmem:[%s321 + $0x10] sm:$0xff]
    %v325 = vld [vmem:[%s321 + $0x18] sm:$0xff]
    %v326 = vld [vmem:[%s321 + $0x20] sm:$0xff]
    %v327 = vld [vmem:[%s321 + $0x28] sm:$0xff]
    %v328 = vld [vmem:[%s321 + $0x30] sm:$0xff]
    %v329 = vld [vmem:[%s321 + $0x38] sm:$0xff]
    %v330 = vld [vmem:[%s321 + $0x40] sm:$0xff]
    %v331 = vld [vmem:[%s321 + $0x48] sm:$0xff]
    %v332 = vld [vmem:[%s321 + $0x50] sm:$0xff]
    %v333 = vld [vmem:[%s321 + $0x58] sm:$0xff]
    %v334 = vld [vmem:[%s321 + $0x60] sm:$0xff]
    %v335 = vld [vmem:[%s321 + $0x68] sm:$0xff]
    %v336 = vld [vmem:[%s321 + $0x70] sm:$0xff]
    %v337 = vld [vmem:[%s321 + $0x78] sm:$0xff]
    %v338 = vld [vmem:[%s321 + $0x80] sm:$0xff]
    %v339 = vld [vmem:[%s321 + $0x88] sm:$0xff]
    %v340 = vld [vmem:[%s321 + $0x90] sm:$0xff]
    %v341 = vld [vmem:[%s321 + $0x98] sm:$0xff]
    %v342 = vld [vmem:[%s321 + $0xa0] sm:$0xff]
    %v343 = vld [vmem:[%s321 + $0xa8] sm:$0xff]
    %v344 = vld [vmem:[%s321 + $0xb0] sm:$0xff]
    %v345 = vld [vmem:[%s321 + $0xb8] sm:$0xff]
    %v346 = vld [vmem:[%s321 + $0xc0] sm:$0xff]
    %v347 = vld [vmem:[%s321 + $0xc8] sm:$0xff]
    %v348 = vld [vmem:[%s321 + $0xd0] sm:$0xff]
    %v349 = vld [vmem:[%s321 + $0xd8] sm:$0xff]
    %v350 = vld [vmem:[%s321 + $0xe0] sm:$0xff]
    %v351 = vld [vmem:[%s321 + $0xe8] sm:$0xff]
    %v352 = vld [vmem:[%s321 + $0xf0] sm:$0xff]
    %v353 = vld [vmem:[%s321 + $0xf8] sm:$0xff]
    %354 = vmatprep.subr.mxu0 %v323
    %355 = vmatpush1.msra.mxu0 %v322
    %356 = vmatprep.subr.mxu0 %v325
    %357 = vmatpush1.msra.mxu0 %v324
    %358 = vmatprep.subr.mxu0 %v327
    %359 = vmatpush1.msra.mxu0 %v326
    %360 = vmatprep.subr.mxu0 %v329
    %361 = vmatpush1.msra.mxu0 %v328
    %362 = vmatprep.subr.mxu0 %v331
    %363 = vmatpush1.msra.mxu0 %v330
    %364 = vmatprep.subr.mxu0 %v333
    %365 = vmatpush1.msra.mxu0 %v332
    %366 = vmatprep.subr.mxu0 %v335
    %367 = vmatpush1.msra.mxu0 %v334
    %368 = vmatprep.subr.mxu0 %v337
    %369 = vmatpush1.msra.mxu0 %v336
    %370 = vmatprep.subr.mxu0 %v339
    %371 = vmatpush1.msra.mxu0 %v338
    %372 = vmatprep.subr.mxu0 %v341
    %373 = vmatpush1.msra.mxu0 %v340
    %374 = vmatprep.subr.mxu0 %v343
    %375 = vmatpush1.msra.mxu0 %v342
    %376 = vmatprep.subr.mxu0 %v345
    %377 = vmatpush1.msra.mxu0 %v344
    %378 = vmatprep.subr.mxu0 %v347
    %379 = vmatpush1.msra.mxu0 %v346
    %380 = vmatprep.subr.mxu0 %v349
    %381 = vmatpush1.msra.mxu0 %v348
    %382 = vmatprep.subr.mxu0 %v351
    %383 = vmatpush1.msra.mxu0 %v350
    %384 = vmatprep.subr.mxu0 %v353
    %385 = vmatpush1.msra.mxu0 %v352
    %386 = vmatprep.subr.mxu0 0.0
    %387 = vmatpush1.msra.mxu0 0.0
    %388 = vmatprep.subr.mxu0 0.0
    %389 = vmatpush1.msra.mxu0 0.0
    %390 = vmatprep.subr.mxu0 0.0
    %391 = vmatpush1.msra.mxu0 0.0
    %392 = vmatprep.subr.mxu0 0.0
    %393 = vmatpush1.msra.mxu0 0.0
    %394 = vmatprep.subr.mxu0 0.0
    %395 = vmatpush1.msra.mxu0 0.0
    %396 = vmatprep.subr.mxu0 0.0
    %397 = vmatpush1.msra.mxu0 0.0
    %398 = vmatprep.subr.mxu0 0.0
    %399 = vmatpush1.msra.mxu0 0.0
    %400 = vmatprep.subr.mxu0 0.0
    %401 = vmatpush1.msra.mxu0 0.0
    %402 = vmatprep.subr.mxu0 0.0
    %403 = vmatpush1.msra.mxu0 0.0
    %404 = vmatprep.subr.mxu0 0.0
    %405 = vmatpush1.msra.mxu0 0.0
    %406 = vmatprep.subr.mxu0 0.0
    %407 = vmatpush1.msra.mxu0 0.0
    %408 = vmatprep.subr.mxu0 0.0
    %409 = vmatpush1.msra.mxu0 0.0
    %410 = vmatprep.subr.mxu0 0.0
    %411 = vmatpush1.msra.mxu0 0.0
    %412 = vmatprep.subr.mxu0 0.0
    %413 = vmatpush1.msra.mxu0 0.0
    %414 = vmatprep.subr.mxu0 0.0
    %415 = vmatpush1.msra.mxu0 0.0
    %416 = vmatprep.subr.mxu0 0.0
    %417 = vmatpush1.msra.mxu0 0.0
    %418 = vmatprep.mubr.f32.mxu0 0.0
    %419 = vmatmul.mubr.f32.gmra.mrb[0].mxu0 %v317
    %v420 = vpop.f32.mrb[0].mxu0
    %v421 = vadd.f32 0.0, %v420
    %v422 = vpop.f32.mrb[0].mxu0
    %v423 = vadd.f32 0.0, %v422
    %424 = vmatprep.mubr.f32.mxu0 0.0
    %425 = vmatmul.mubr.f32.gmra.mrb[0].mxu0 %v318
    %v426 = vpop.f32.mrb[0].mxu0
    %v427 = vadd.f32 0.0, %v426
    %v428 = vpop.f32.mrb[0].mxu0
    %v429 = vadd.f32 0.0, %v428
    %430 = vmatprep.mubr.f32.mxu0 0.0
    %431 = vmatmul.mubr.f32.gmra.mrb[0].mxu0 %v319
    %v432 = vpop.f32.mrb[0].mxu0
    %v433 = vadd.f32 0.0, %v432
    %v434 = vpop.f32.mrb[0].mxu0
    %v435 = vadd.f32 0.0, %v434
    %436 = vmatprep.mubr.f32.mxu0 0.0
    %437 = vmatmul.mubr.f32.gmra.mrb[0].mxu0 %v320
    %v438 = vpop.f32.mrb[0].mxu0
    %v439 = vadd.f32 0.0, %v438
    %v440 = vpop.f32.mrb[0].mxu0
    %v441 = vadd.f32 0.0, %v440
    %442 = vdwg.mxu0
    %v443 = vadd.f32 %v295, %v421
    %v444 = vadd.f32 %v297, %v423
    %v445 = vadd.f32 %v301, %v427
    %v446 = vadd.f32 %v303, %v429
    %v447 = vadd.f32 %v307, %v433
    %v448 = vadd.f32 %v309, %v435
    %v449 = vadd.f32 %v313, %v439
    %v450 = vadd.f32 %v315, %v441
    %v451 = vld [vmem:[%s0 + $0x3] sm:$0xff]
    %v452 = vld [vmem:[%s0 + $0xb] sm:$0xff]
    %v453 = vld [vmem:[%s0 + $0x13] sm:$0xff]
    %v454 = vld [vmem:[%s0 + $0x1b] sm:$0xf]
    %s455 = scalar_lea.vmem %s1, 768
    %v456 = vld [vmem:[%s455] sm:$0xff]
    %v457 = vld [vmem:[%s455 + $0x8] sm:$0xff]
    %v458 = vld [vmem:[%s455 + $0x10] sm:$0xff]
    %v459 = vld [vmem:[%s455 + $0x18] sm:$0xff]
    %v460 = vld [vmem:[%s455 + $0x20] sm:$0xff]
    %v461 = vld [vmem:[%s455 + $0x28] sm:$0xff]
    %v462 = vld [vmem:[%s455 + $0x30] sm:$0xff]
    %v463 = vld [vmem:[%s455 + $0x38] sm:$0xff]
    %v464 = vld [vmem:[%s455 + $0x40] sm:$0xff]
    %v465 = vld [vmem:[%s455 + $0x48] sm:$0xff]
    %v466 = vld [vmem:[%s455 + $0x50] sm:$0xff]
    %v467 = vld [vmem:[%s455 + $0x58] sm:$0xff]
    %v468 = vld [vmem:[%s455 + $0x60] sm:$0xff]
    %v469 = vld [vmem:[%s455 + $0x68] sm:$0xff]
    %v470 = vld [vmem:[%s455 + $0x70] sm:$0xff]
    %v471 = vld [vmem:[%s455 + $0x78] sm:$0xff]
    %v472 = vld [vmem:[%s455 + $0x80] sm:$0xff]
    %v473 = vld [vmem:[%s455 + $0x88] sm:$0xff]
    %v474 = vld [vmem:[%s455 + $0x90] sm:$0xff]
    %v475 = vld [vmem:[%s455 + $0x98] sm:$0xff]
    %v476 = vld [vmem:[%s455 + $0xa0] sm:$0xff]
    %v477 = vld [vmem:[%s455 + $0xa8] sm:$0xff]
    %v478 = vld [vmem:[%s455 + $0xb0] sm:$0xff]
    %v479 = vld [vmem:[%s455 + $0xb8] sm:$0xff]
    %v480 = vld [vmem:[%s455 + $0xc0] sm:$0xff]
    %v481 = vld [vmem:[%s455 + $0xc8] sm:$0xff]
    %v482 = vld [vmem:[%s455 + $0xd0] sm:$0xff]
    %v483 = vld [vmem:[%s455 + $0xd8] sm:$0xff]
    %v484 = vld [vmem:[%s455 + $0xe0] sm:$0xff]
    %v485 = vld [vmem:[%s455 + $0xe8] sm:$0xff]
    %v486 = vld [vmem:[%s455 + $0xf0] sm:$0xff]
    %v487 = vld [vmem:[%s455 + $0xf8] sm:$0xff]
    %488 = vmatprep.subr.mxu0 %v457
    %489 = vmatpush1.msra.mxu0 %v456
    %490 = vmatprep.subr.mxu0 %v459
    %491 = vmatpush1.msra.mxu0 %v458
    %492 = vmatprep.subr.mxu0 %v461
    %493 = vmatpush1.msra.mxu0 %v460
    %494 = vmatprep.subr.mxu0 %v463
    %495 = vmatpush1.msra.mxu0 %v462
    %496 = vmatprep.subr.mxu0 %v465
    %497 = vmatpush1.msra.mxu0 %v464
    %498 = vmatprep.subr.mxu0 %v467
    %499 = vmatpush1.msra.mxu0 %v466
    %500 = vmatprep.subr.mxu0 %v469
    %501 = vmatpush1.msra.mxu0 %v468
    %502 = vmatprep.subr.mxu0 %v471
    %503 = vmatpush1.msra.mxu0 %v470
    %504 = vmatprep.subr.mxu0 %v473
    %505 = vmatpush1.msra.mxu0 %v472
    %506 = vmatprep.subr.mxu0 %v475
    %507 = vmatpush1.msra.mxu0 %v474
    %508 = vmatprep.subr.mxu0 %v477
    %509 = vmatpush1.msra.mxu0 %v476
    %510 = vmatprep.subr.mxu0 %v479
    %511 = vmatpush1.msra.mxu0 %v478
    %512 = vmatprep.subr.mxu0 %v481
    %513 = vmatpush1.msra.mxu0 %v480
    %514 = vmatprep.subr.mxu0 %v483
    %515 = vmatpush1.msra.mxu0 %v482
    %516 = vmatprep.subr.mxu0 %v485
    %517 = vmatpush1.msra.mxu0 %v484
    %518 = vmatprep.subr.mxu0 %v487
    %519 = vmatpush1.msra.mxu0 %v486
    %520 = vmatprep.subr.mxu0 0.0
    %521 = vmatpush1.msra.mxu0 0.0
    %522 = vmatprep.subr.mxu0 0.0
    %523 = vmatpush1.msra.mxu0 0.0
    %524 = vmatprep.subr.mxu0 0.0
    %525 = vmatpush1.msra.mxu0 0.0
    %526 = vmatprep.subr.mxu0 0.0
    %527 = vmatpush1.msra.mxu0 0.0
    %528 = vmatprep.subr.mxu0 0.0
    %529 = vmatpush1.msra.mxu0 0.0
    %530 = vmatprep.subr.mxu0 0.0
    %531 = vmatpush1.msra.mxu0 0.0
    %532 = vmatprep.subr.mxu0 0.0
    %533 = vmatpush1.msra.mxu0 0.0
    %534 = vmatprep.subr.mxu0 0.0
    %535 = vmatpush1.msra.mxu0 0.0
    %536 = vmatprep.subr.mxu0 0.0
    %537 = vmatpush1.msra.mxu0 0.0
    %538 = vmatprep.subr.mxu0 0.0
    %539 = vmatpush1.msra.mxu0 0.0
    %540 = vmatprep.subr.mxu0 0.0
    %541 = vmatpush1.msra.mxu0 0.0
    %542 = vmatprep.subr.mxu0 0.0
    %543 = vmatpush1.msra.mxu0 0.0
    %544 = vmatprep.subr.mxu0 0.0
    %545 = vmatpush1.msra.mxu0 0.0
    %546 = vmatprep.subr.mxu0 0.0
    %547 = vmatpush1.msra.mxu0 0.0
    %548 = vmatprep.subr.mxu0 0.0
    %549 = vmatpush1.msra.mxu0 0.0
    %550 = vmatprep.subr.mxu0 0.0
    %551 = vmatpush1.msra.mxu0 0.0
    %552 = vmatprep.mubr.f32.mxu0 0.0
    %553 = vmatmul.mubr.f32.gmra.mrb[0].mxu0 %v451
    %v554 = vpop.f32.mrb[0].mxu0
    %v555 = vadd.f32 0.0, %v554
    %v556 = vpop.f32.mrb[0].mxu0
    %v557 = vadd.f32 0.0, %v556
    %558 = vmatprep.mubr.f32.mxu0 0.0
    %559 = vmatmul.mubr.f32.gmra.mrb[0].mxu0 %v452
    %v560 = vpop.f32.mrb[0].mxu0
    %v561 = vadd.f32 0.0, %v560
    %v562 = vpop.f32.mrb[0].mxu0
    %v563 = vadd.f32 0.0, %v562
    %564 = vmatprep.mubr.f32.mxu0 0.0
    %565 = vmatmul.mubr.f32.gmra.mrb[0].mxu0 %v453
    %v566 = vpop.f32.mrb[0].mxu0
    %v567 = vadd.f32 0.0, %v566
    %v568 = vpop.f32.mrb[0].mxu0
    %v569 = vadd.f32 0.0, %v568
    %570 = vmatprep.mubr.f32.mxu0 0.0
    %571 = vmatmul.mubr.f32.gmra.mrb[0].mxu0 %v454
    %v572 = vpop.f32.mrb[0].mxu0
    %v573 = vadd.f32 0.0, %v572
    %v574 = vpop.f32.mrb[0].mxu0
    %v575 = vadd.f32 0.0, %v574
    %576 = vdwg.mxu0
    %v577 = vadd.f32 %v443, %v555
    %v578 = vadd.f32 %v444, %v557
    %v579 = vadd.f32 %v445, %v561
    %v580 = vadd.f32 %v446, %v563
    %v581 = vadd.f32 %v447, %v567
    %v582 = vadd.f32 %v448, %v569
    %v583 = vadd.f32 %v449, %v573
    %v584 = vadd.f32 %v450, %v575
    %v585 = vld [vmem:[%s0 + $0x4] sm:$0xff]
    %v586 = vld [vmem:[%s0 + $0xc] sm:$0xff]
    %v587 = vld [vmem:[%s0 + $0x14] sm:$0xff]
    %v588 = vld [vmem:[%s0 + $0x1c] sm:$0xf]
    %s589 = scalar_lea.vmem %s1, 1024
    %v590 = vld [vmem:[%s589] sm:$0xff]
    %v591 = vld [vmem:[%s589 + $0x8] sm:$0xff]
    %v592 = vld [vmem:[%s589 + $0x10] sm:$0xff]
    %v593 = vld [vmem:[%s589 + $0x18] sm:$0xff]
    %v594 = vld [vmem:[%s589 + $0x20] sm:$0xff]
    %v595 = vld [vmem:[%s589 + $0x28] sm:$0xff]
    %v596 = vld [vmem:[%s589 + $0x30] sm:$0xff]
    %v597 = vld [vmem:[%s589 + $0x38] sm:$0xff]
    %v598 = vld [vmem:[%s589 + $0x40] sm:$0xff]
    %v599 = vld [vmem:[%s589 + $0x48] sm:$0xff]
    %v600 = vld [vmem:[%s589 + $0x50] sm:$0xff]
    %v601 = vld [vmem:[%s589 + $0x58] sm:$0xff]
    %v602 = vld [vmem:[%s589 + $0x60] sm:$0xff]
    %v603 = vld [vmem:[%s589 + $0x68] sm:$0xff]
    %v604 = vld [vmem:[%s589 + $0x70] sm:$0xff]
    %v605 = vld [vmem:[%s589 + $0x78] sm:$0xff]
    %v606 = vld [vmem:[%s589 + $0x80] sm:$0xff]
    %v607 = vld [vmem:[%s589 + $0x88] sm:$0xff]
    %v608 = vld [vmem:[%s589 + $0x90] sm:$0xff]
    %v609 = vld [vmem:[%s589 + $0x98] sm:$0xff]
    %v610 = vld [vmem:[%s589 + $0xa0] sm:$0xff]
    %v611 = vld [vmem:[%s589 + $0xa8] sm:$0xff]
    %v612 = vld [vmem:[%s589 + $0xb0] sm:$0xff]
    %v613 = vld [vmem:[%s589 + $0xb8] sm:$0xff]
    %v614 = vld [vmem:[%s589 + $0xc0] sm:$0xff]
    %v615 = vld [vmem:[%s589 + $0xc8] sm:$0xff]
    %v616 = vld [vmem:[%s589 + $0xd0] sm:$0xff]
    %v617 = vld [vmem:[%s589 + $0xd8] sm:$0xff]
    %v618 = vld [vmem:[%s589 + $0xe0] sm:$0xff]
    %v619 = vld [vmem:[%s589 + $0xe8] sm:$0xff]
    %v620 = vld [vmem:[%s589 + $0xf0] sm:$0xff]
    %v621 = vld [vmem:[%s589 + $0xf8] sm:$0xff]
    %622 = vmatprep.subr.mxu0 %v591
    %623 = vmatpush1.msra.mxu0 %v590
    %624 = vmatprep.subr.mxu0 %v593
    %625 = vmatpush1.msra.mxu0 %v592
    %626 = vmatprep.subr.mxu0 %v595
    %627 = vmatpush1.msra.mxu0 %v594
    %628 = vmatprep.subr.mxu0 %v597
    %629 = vmatpush1.msra.mxu0 %v596
    %630 = vmatprep.subr.mxu0 %v599
    %631 = vmatpush1.msra.mxu0 %v598
    %632 = vmatprep.subr.mxu0 %v601
    %633 = vmatpush1.msra.mxu0 %v600
    %634 = vmatprep.subr.mxu0 %v603
    %635 = vmatpush1.msra.mxu0 %v602
    %636 = vmatprep.subr.mxu0 %v605
    %637 = vmatpush1.msra.mxu0 %v604
    %638 = vmatprep.subr.mxu0 %v607
    %639 = vmatpush1.msra.mxu0 %v606
    %640 = vmatprep.subr.mxu0 %v609
    %641 = vmatpush1.msra.mxu0 %v608
    %642 = vmatprep.subr.mxu0 %v611
    %643 = vmatpush1.msra.mxu0 %v610
    %644 = vmatprep.subr.mxu0 %v613
    %645 = vmatpush1.msra.mxu0 %v612
    %646 = vmatprep.subr.mxu0 %v615
    %647 = vmatpush1.msra.mxu0 %v614
    %648 = vmatprep.subr.mxu0 %v617
    %649 = vmatpush1.msra.mxu0 %v616
    %650 = vmatprep.subr.mxu0 %v619
    %651 = vmatpush1.msra.mxu0 %v618
    %652 = vmatprep.subr.mxu0 %v621
    %653 = vmatpush1.msra.mxu0 %v620
    %654 = vmatprep.subr.mxu0 0.0
    %655 = vmatpush1.msra.mxu0 0.0
    %656 = vmatprep.subr.mxu0 0.0
    %657 = vmatpush1.msra.mxu0 0.0
    %658 = vmatprep.subr.mxu0 0.0
    %659 = vmatpush1.msra.mxu0 0.0
    %660 = vmatprep.subr.mxu0 0.0
    %661 = vmatpush1.msra.mxu0 0.0
    %662 = vmatprep.subr.mxu0 0.0
    %663 = vmatpush1.msra.mxu0 0.0
    %664 = vmatprep.subr.mxu0 0.0
    %665 = vmatpush1.msra.mxu0 0.0
    %666 = vmatprep.subr.mxu0 0.0
    %667 = vmatpush1.msra.mxu0 0.0
    %668 = vmatprep.subr.mxu0 0.0
    %669 = vmatpush1.msra.mxu0 0.0
    %670 = vmatprep.subr.mxu0 0.0
    %671 = vmatpush1.msra.mxu0 0.0
    %672 = vmatprep.subr.mxu0 0.0
    %673 = vmatpush1.msra.mxu0 0.0
    %674 = vmatprep.subr.mxu0 0.0
    %675 = vmatpush1.msra.mxu0 0.0
    %676 = vmatprep.subr.mxu0 0.0
    %677 = vmatpush1.msra.mxu0 0.0
    %678 = vmatprep.subr.mxu0 0.0
    %679 = vmatpush1.msra.mxu0 0.0
    %680 = vmatprep.subr.mxu0 0.0
    %681 = vmatpush1.msra.mxu0 0.0
    %682 = vmatprep.subr.mxu0 0.0
    %683 = vmatpush1.msra.mxu0 0.0
    %684 = vmatprep.subr.mxu0 0.0
    %685 = vmatpush1.msra.mxu0 0.0
    %686 = vmatprep.mubr.f32.mxu0 0.0
    %687 = vmatmul.mubr.f32.gmra.mrb[0].mxu0 %v585
    %v688 = vpop.f32.mrb[0].mxu0
    %v689 = vadd.f32 0.0, %v688
    %v690 = vpop.f32.mrb[0].mxu0
    %v691 = vadd.f32 0.0, %v690
    %692 = vmatprep.mubr.f32.mxu0 0.0
    %693 = vmatmul.mubr.f32.gmra.mrb[0].mxu0 %v586
    %v694 = vpop.f32.mrb[0].mxu0
    %v695 = vadd.f32 0.0, %v694
    %v696 = vpop.f32.mrb[0].mxu0
    %v697 = vadd.f32 0.0, %v696
    %698 = vmatprep.mubr.f32.mxu0 0.0
    %699 = vmatmul.mubr.f32.gmra.mrb[0].mxu0 %v587
    %v700 = vpop.f32.mrb[0].mxu0
    %v701 = vadd.f32 0.0, %v700
    %v702 = vpop.f32.mrb[0].mxu0
    %v703 = vadd.f32 0.0, %v702
    %704 = vmatprep.mubr.f32.mxu0 0.0
    %705 = vmatmul.mubr.f32.gmra.mrb[0].mxu0 %v588
    %v706 = vpop.f32.mrb[0].mxu0
    %v707 = vadd.f32 0.0, %v706
    %v708 = vpop.f32.mrb[0].mxu0
    %v709 = vadd.f32 0.0, %v708
    %710 = vdwg.mxu0
    %v711 = vadd.f32 %v577, %v689
    %v712 = vadd.f32 %v578, %v691
    %v713 = vadd.f32 %v579, %v695
    %v714 = vadd.f32 %v580, %v697
    %v715 = vadd.f32 %v581, %v701
    %v716 = vadd.f32 %v582, %v703
    %v717 = vadd.f32 %v583, %v707
    %v718 = vadd.f32 %v584, %v709
    %v719 = vmax.f32 %v711, %v712
    %v720 = vmax.f32 %v713, %v714
    %v721 = vmax.f32 %v715, %v716
    %v722 = vmax.f32 %v717, %v718
    %v723 = vlaneseq
    %v724 = vshrl.u32 %v723, 7
    %v725 = vsub.s32 0, %v724
    %v726 = vrot.slane %v64, %v725
    %v727 = vadd.f32 %v719, %v726
    %v728 = vadd.f32 %v720, %v726
    %v729 = vadd.f32 %v721, %v726
    %v730 = vadd.f32 %v722, %v726
    %v731 = vmax.f32 %v727, 0.0
    %v732 = vmax.f32 %v728, 0.0
    %v733 = vmax.f32 %v729, 0.0
    %v734 = vmax.f32 %v730, 0.0
    %735 = vst [vmem:[#allocation2] sm:$0xff] %v731
    %736 = vst [vmem:[#allocation2 + $0x8] sm:$0xff] %v732
    %737 = vst [vmem:[#allocation2 + $0x10] sm:$0xff] %v733
    %738 = vst [vmem:[#allocation2 + $0x18] sm:$0xf] %v734
    %v739 = vld [vmem:[#allocation2] ss:$2 sm:$0xff]
    %s740 = scalar_lea.vmem [#allocation2], 16
    %v741 = vld [vmem:[%s740] ss:$2 sm:$0x3f]
    %s742 = scalar_lea.vmem [#allocation2], 1
    %v743 = vld [vmem:[%s742] ss:$2 sm:$0xff]
    %s744 = scalar_lea.vmem [#allocation2], 17
    %v745 = vld [vmem:[%s744] ss:$2 sm:$0x3f]
    %v746 = vmax.f32 %v739, %v743
    %v747 = vmax.f32 %v741, %v745
    %748 = vst [vmem:[#allocation3] sm:$0xff] %v746
    %749 = vst [vmem:[#allocation3 + $0x8] sm:$0x3f] %v747
    %v750 = vld [vmem:[#allocation3] sm:$0xff]
    %v751 = vld [vmem:[#allocation3 + $0x8] sm:$0x3]
    %v752 = vld [vmem:[#allocation6] sm:$0xff]
    %v753 = vld [vmem:[#allocation6 + $0x8] sm:$0xff]
    %v754 = vld [vmem:[#allocation6 + $0x10] sm:$0xff]
    %v755 = vld [vmem:[#allocation6 + $0x18] sm:$0xff]
    %v756 = vld [vmem:[#allocation6 + $0x20] sm:$0xff]
    %v757 = vld [vmem:[#allocation6 + $0x28] sm:$0xff]
    %v758 = vld [vmem:[#allocation6 + $0x30] sm:$0xff]
    %v759 = vld [vmem:[#allocation6 + $0x38] sm:$0xff]
    %v760 = vld [vmem:[#allocation6 + $0x40] sm:$0xff]
    %v761 = vld [vmem:[#allocation6 + $0x48] sm:$0xff]
    %v762 = vld [vmem:[#allocation6 + $0x50] sm:$0xff]
    %v763 = vld [vmem:[#allocation6 + $0x58] sm:$0xff]
    %v764 = vld [vmem:[#allocation6 + $0x60] sm:$0xff]
    %v765 = vld [vmem:[#allocation6 + $0x68] sm:$0xff]
    %v766 = vld [vmem:[#allocation6 + $0x70] sm:$0xff]
    %v767 = vld [vmem:[#allocation6 + $0x78] sm:$0xff]
    %v768 = vld [vmem:[#allocation6 + $0x80] sm:$0xff]
    %v769 = vld [vmem:[#allocation6 + $0x88] sm:$0xff]
    %v770 = vld [vmem:[#allocation6 + $0x90] sm:$0xff]
    %v771 = vld [vmem:[#allocation6 + $0x98] sm:$0xff]
    %v772 = vld [vmem:[#allocation6 + $0xa0] sm:$0xff]
    %v773 = vld [vmem:[#allocation6 + $0xa8] sm:$0xff]
    %v774 = vld [vmem:[#allocation6 + $0xb0] sm:$0xff]
    %v775 = vld [vmem:[#allocation6 + $0xb8] sm:$0xff]
    %v776 = vld [vmem:[#allocation6 + $0xc0] sm:$0xff]
    %v777 = vld [vmem:[#allocation6 + $0xc8] sm:$0xff]
    %v778 = vld [vmem:[#allocation6 + $0xd0] sm:$0xff]
    %v779 = vld [vmem:[#allocation6 + $0xd8] sm:$0xff]
    %v780 = vld [vmem:[#allocation6 + $0xe0] sm:$0xff]
    %v781 = vld [vmem:[#allocation6 + $0xe8] sm:$0xff]
    %v782 = vld [vmem:[#allocation6 + $0xf0] sm:$0xff]
    %v783 = vld [vmem:[#allocation6 + $0xf8] sm:$0xff]
    %v784 = vld [vmem:[#allocation3 + $0x1] sm:$0xff]
    %v785 = vld [vmem:[#allocation3 + $0x9] sm:$0x3]
    %s786 = scalar_lea.vmem [#allocation6], 256
    %v787 = vld [vmem:[%s786] sm:$0xff]
    %v788 = vld [vmem:[%s786 + $0x8] sm:$0xff]
    %v789 = vld [vmem:[%s786 + $0x10] sm:$0xff]
    %v790 = vld [vmem:[%s786 + $0x18] sm:$0xff]
    %v791 = vld [vmem:[%s786 + $0x20] sm:$0xff]
    %v792 = vld [vmem:[%s786 + $0x28] sm:$0xff]
    %v793 = vld [vmem:[%s786 + $0x30] sm:$0xff]
    %v794 = vld [vmem:[%s786 + $0x38] sm:$0xff]
    %v795 = vld [vmem:[%s786 + $0x40] sm:$0xff]
    %v796 = vld [vmem:[%s786 + $0x48] sm:$0xff]
    %v797 = vld [vmem:[%s786 + $0x50] sm:$0xff]
    %v798 = vld [vmem:[%s786 + $0x58] sm:$0xff]
    %v799 = vld [vmem:[%s786 + $0x60] sm:$0xff]
    %v800 = vld [vmem:[%s786 + $0x68] sm:$0xff]
    %v801 = vld [vmem:[%s786 + $0x70] sm:$0xff]
    %v802 = vld [vmem:[%s786 + $0x78] sm:$0xff]
    %v803 = vld [vmem:[%s786 + $0x80] sm:$0xff]
    %v804 = vld [vmem:[%s786 + $0x88] sm:$0xff]
    %v805 = vld [vmem:[%s786 + $0x90] sm:$0xff]
    %v806 = vld [vmem:[%s786 + $0x98] sm:$0xff]
    %v807 = vld [vmem:[%s786 + $0xa0] sm:$0xff]
    %v808 = vld [vmem:[%s786 + $0xa8] sm:$0xff]
    %v809 = vld [vmem:[%s786 + $0xb0] sm:$0xff]
    %v810 = vld [vmem:[%s786 + $0xb8] sm:$0xff]
    %v811 = vld [vmem:[%s786 + $0xc0] sm:$0xff]
    %v812 = vld [vmem:[%s786 + $0xc8] sm:$0xff]
    %v813 = vld [vmem:[%s786 + $0xd0] sm:$0xff]
    %v814 = vld [vmem:[%s786 + $0xd8] sm:$0xff]
    %v815 = vld [vmem:[%s786 + $0xe0] sm:$0xff]
    %v816 = vld [vmem:[%s786 + $0xe8] sm:$0xff]
    %v817 = vld [vmem:[%s786 + $0xf0] sm:$0xff]
    %v818 = vld [vmem:[%s786 + $0xf8] sm:$0xff]
    %819 = vmatprep.subr.mxu0 %v788
    %820 = vmatpush1.msra.mxu0 %v787
    %821 = vmatprep.subr.mxu0 %v790
    %822 = vmatpush1.msra.mxu0 %v789
    %823 = vmatprep.subr.mxu0 %v792
    %824 = vmatpush1.msra.mxu0 %v791
    %825 = vmatprep.subr.mxu0 %v794
    %826 = vmatpush1.msra.mxu0 %v793
    %827 = vmatprep.subr.mxu0 %v796
    %828 = vmatpush1.msra.mxu0 %v795
    %829 = vmatprep.subr.mxu0 %v798
    %830 = vmatpush1.msra.mxu0 %v797
    %831 = vmatprep.subr.mxu0 %v800
    %832 = vmatpush1.msra.mxu0 %v799
    %833 = vmatprep.subr.mxu0 %v802
    %834 = vmatpush1.msra.mxu0 %v801
    %835 = vmatprep.subr.mxu0 %v804
    %836 = vmatpush1.msra.mxu0 %v803
    %837 = vmatprep.subr.mxu0 %v806
    %838 = vmatpush1.msra.mxu0 %v805
    %839 = vmatprep.subr.mxu0 %v808
    %840 = vmatpush1.msra.mxu0 %v807
    %841 = vmatprep.subr.mxu0 %v810
    %842 = vmatpush1.msra.mxu0 %v809
    %843 = vmatprep.subr.mxu0 %v812
    %844 = vmatpush1.msra.mxu0 %v811
    %845 = vmatprep.subr.mxu0 %v814
    %846 = vmatpush1.msra.mxu0 %v813
    %847 = vmatprep.subr.mxu0 %v816
    %848 = vmatpush1.msra.mxu0 %v815
    %849 = vmatprep.subr.mxu0 %v818
    %850 = vmatpush1.msra.mxu0 %v817
    %851 = vmatprep.subr.mxu0 0.0
    %852 = vmatpush1.msra.mxu0 0.0
    %853 = vmatprep.subr.mxu0 0.0
    %854 = vmatpush1.msra.mxu0 0.0
    %855 = vmatprep.subr.mxu0 0.0
    %856 = vmatpush1.msra.mxu0 0.0
    %857 = vmatprep.subr.mxu0 0.0
    %858 = vmatpush1.msra.mxu0 0.0
    %859 = vmatprep.subr.mxu0 0.0
    %860 = vmatpush1.msra.mxu0 0.0
    %861 = vmatprep.subr.mxu0 0.0
    %862 = vmatpush1.msra.mxu0 0.0
    %863 = vmatprep.subr.mxu0 0.0
    %864 = vmatpush1.msra.mxu0 0.0
    %865 = vmatprep.subr.mxu0 0.0
    %866 = vmatpush1.msra.mxu0 0.0
    %867 = vmatprep.subr.mxu0 0.0
    %868 = vmatpush1.msra.mxu0 0.0
    %869 = vmatprep.subr.mxu0 0.0
    %870 = vmatpush1.msra.mxu0 0.0
    %871 = vmatprep.subr.mxu0 0.0
    %872 = vmatpush1.msra.mxu0 0.0
    %873 = vmatprep.subr.mxu0 0.0
    %874 = vmatpush1.msra.mxu0 0.0
    %875 = vmatprep.subr.mxu0 0.0
    %876 = vmatpush1.msra.mxu0 0.0
    %877 = vmatprep.subr.mxu0 0.0
    %878 = vmatpush1.msra.mxu0 0.0
    %879 = vmatprep.subr.mxu0 0.0
    %880 = vmatpush1.msra.mxu0 0.0
    %881 = vmatprep.subr.mxu0 0.0
    %882 = vmatpush1.msra.mxu0 0.0
    %883 = vmatprep.mubr.f32.mxu0 0.0
    %884 = vmatmul.mubr.f32.gmra.mrb[0].mxu0 %v784
    %v885 = vpop.f32.mrb[0].mxu0
    %v886 = vadd.f32 0.0, %v885
    %v887 = vpop.f32.mrb[0].mxu0
    %v888 = vadd.f32 0.0, %v887
    %889 = vmatprep.mubr.f32.mxu0 0.0
    %890 = vmatmul.mubr.f32.gmra.mrb[0].mxu0 %v785
    %v891 = vpop.f32.mrb[0].mxu0
    %v892 = vadd.f32 0.0, %v891
    %v893 = vpop.f32.mrb[0].mxu0
    %v894 = vadd.f32 0.0, %v893
    %895 = vdwg.mxu0
    %896 = vmatprep.subr.mxu0 %v753
    %897 = vmatpush1.msra.mxu0 %v752
    %898 = vmatprep.subr.mxu0 %v755
    %899 = vmatpush1.msra.mxu0 %v754
    %900 = vmatprep.subr.mxu0 %v757
    %901 = vmatpush1.msra.mxu0 %v756
    %902 = vmatprep.subr.mxu0 %v759
    %903 = vmatpush1.msra.mxu0 %v758
    %904 = vmatprep.subr.mxu0 %v761
    %905 = vmatpush1.msra.mxu0 %v760
    %906 = vmatprep.subr.mxu0 %v763
    %907 = vmatpush1.msra.mxu0 %v762
    %908 = vmatprep.subr.mxu0 %v765
    %909 = vmatpush1.msra.mxu0 %v764
    %910 = vmatprep.subr.mxu0 %v767
    %911 = vmatpush1.msra.mxu0 %v766
    %912 = vmatprep.subr.mxu0 %v769
    %913 = vmatpush1.msra.mxu0 %v768
    %914 = vmatprep.subr.mxu0 %v771
    %915 = vmatpush1.msra.mxu0 %v770
    %916 = vmatprep.subr.mxu0 %v773
    %917 = vmatpush1.msra.mxu0 %v772
    %918 = vmatprep.subr.mxu0 %v775
    %919 = vmatpush1.msra.mxu0 %v774
    %920 = vmatprep.subr.mxu0 %v777
    %921 = vmatpush1.msra.mxu0 %v776
    %922 = vmatprep.subr.mxu0 %v779
    %923 = vmatpush1.msra.mxu0 %v778
    %924 = vmatprep.subr.mxu0 %v781
    %925 = vmatpush1.msra.mxu0 %v780
    %926 = vmatprep.subr.mxu0 %v783
    %927 = vmatpush1.msra.mxu0 %v782
    %928 = vmatprep.subr.mxu0 0.0
    %929 = vmatpush1.msra.mxu0 0.0
    %930 = vmatprep.subr.mxu0 0.0
    %931 = vmatpush1.msra.mxu0 0.0
    %932 = vmatprep.subr.mxu0 0.0
    %933 = vmatpush1.msra.mxu0 0.0
    %934 = vmatprep.subr.mxu0 0.0
    %935 = vmatpush1.msra.mxu0 0.0
    %936 = vmatprep.subr.mxu0 0.0
    %937 = vmatpush1.msra.mxu0 0.0
    %938 = vmatprep.subr.mxu0 0.0
    %939 = vmatpush1.msra.mxu0 0.0
    %940 = vmatprep.subr.mxu0 0.0
    %941 = vmatpush1.msra.mxu0 0.0
    %942 = vmatprep.subr.mxu0 0.0
    %943 = vmatpush1.msra.mxu0 0.0
    %944 = vmatprep.subr.mxu0 0.0
    %945 = vmatpush1.msra.mxu0 0.0
    %946 = vmatprep.subr.mxu0 0.0
    %947 = vmatpush1.msra.mxu0 0.0
    %948 = vmatprep.subr.mxu0 0.0
    %949 = vmatpush1.msra.mxu0 0.0
    %950 = vmatprep.subr.mxu0 0.0
    %951 = vmatpush1.msra.mxu0 0.0
    %952 = vmatprep.subr.mxu0 0.0
    %953 = vmatpush1.msra.mxu0 0.0
    %954 = vmatprep.subr.mxu0 0.0
    %955 = vmatpush1.msra.mxu0 0.0
    %956 = vmatprep.subr.mxu0 0.0
    %957 = vmatpush1.msra.mxu0 0.0
    %958 = vmatprep.subr.mxu0 0.0
    %959 = vmatpush1.msra.mxu0 0.0
    %960 = vmatprep.mubr.f32.mxu0 0.0
    %961 = vmatmul.mubr.f32.gmra.mrb[0].mxu0 %v750
    %v962 = vpop.f32.mrb[0].mxu0
    %v963 = vadd.f32 %v886, %v962
    %v964 = vpop.f32.mrb[0].mxu0
    %v965 = vadd.f32 %v888, %v964
    %966 = vmatprep.mubr.f32.mxu0 0.0
    %967 = vmatmul.mubr.f32.gmra.mrb[0].mxu0 %v751
    %v968 = vpop.f32.mrb[0].mxu0
    %v969 = vadd.f32 %v892, %v968
    %v970 = vpop.f32.mrb[0].mxu0
    %v971 = vadd.f32 %v894, %v970
    %972 = vdwg.mxu0
    %v973 = vld [vmem:[#allocation3 + $0x2] sm:$0xff]
    %v974 = vld [vmem:[#allocation3 + $0xa] sm:$0x3]
    %s975 = scalar_lea.vmem [#allocation6], 512
    %v976 = vld [vmem:[%s975] sm:$0xff]
    %v977 = vld [vmem:[%s975 + $0x8] sm:$0xff]
    %v978 = vld [vmem:[%s975 + $0x10] sm:$0xff]
    %v979 = vld [vmem:[%s975 + $0x18] sm:$0xff]
    %v980 = vld [vmem:[%s975 + $0x20] sm:$0xff]
    %v981 = vld [vmem:[%s975 + $0x28] sm:$0xff]
    %v982 = vld [vmem:[%s975 + $0x30] sm:$0xff]
    %v983 = vld [vmem:[%s975 + $0x38] sm:$0xff]
    %v984 = vld [vmem:[%s975 + $0x40] sm:$0xff]
    %v985 = vld [vmem:[%s975 + $0x48] sm:$0xff]
    %v986 = vld [vmem:[%s975 + $0x50] sm:$0xff]
    %v987 = vld [vmem:[%s975 + $0x58] sm:$0xff]
    %v988 = vld [vmem:[%s975 + $0x60] sm:$0xff]
    %v989 = vld [vmem:[%s975 + $0x68] sm:$0xff]
    %v990 = vld [vmem:[%s975 + $0x70] sm:$0xff]
    %v991 = vld [vmem:[%s975 + $0x78] sm:$0xff]
    %v992 = vld [vmem:[%s975 + $0x80] sm:$0xff]
    %v993 = vld [vmem:[%s975 + $0x88] sm:$0xff]
    %v994 = vld [vmem:[%s975 + $0x90] sm:$0xff]
    %v995 = vld [vmem:[%s975 + $0x98] sm:$0xff]
    %v996 = vld [vmem:[%s975 + $0xa0] sm:$0xff]
    %v997 = vld [vmem:[%s975 + $0xa8] sm:$0xff]
    %v998 = vld [vmem:[%s975 + $0xb0] sm:$0xff]
    %v999 = vld [vmem:[%s975 + $0xb8] sm:$0xff]
    %v1000 = vld [vmem:[%s975 + $0xc0] sm:$0xff]
    %v1001 = vld [vmem:[%s975 + $0xc8] sm:$0xff]
    %v1002 = vld [vmem:[%s975 + $0xd0] sm:$0xff]
    %v1003 = vld [vmem:[%s975 + $0xd8] sm:$0xff]
    %v1004 = vld [vmem:[%s975 + $0xe0] sm:$0xff]
    %v1005 = vld [vmem:[%s975 + $0xe8] sm:$0xff]
    %v1006 = vld [vmem:[%s975 + $0xf0] sm:$0xff]
    %v1007 = vld [vmem:[%s975 + $0xf8] sm:$0xff]
    %1008 = vmatprep.subr.mxu0 %v977
    %1009 = vmatpush1.msra.mxu0 %v976
    %1010 = vmatprep.subr.mxu0 %v979
    %1011 = vmatpush1.msra.mxu0 %v978
    %1012 = vmatprep.subr.mxu0 %v981
    %1013 = vmatpush1.msra.mxu0 %v980
    %1014 = vmatprep.subr.mxu0 %v983
    %1015 = vmatpush1.msra.mxu0 %v982
    %1016 = vmatprep.subr.mxu0 %v985
    %1017 = vmatpush1.msra.mxu0 %v984
    %1018 = vmatprep.subr.mxu0 %v987
    %1019 = vmatpush1.msra.mxu0 %v986
    %1020 = vmatprep.subr.mxu0 %v989
    %1021 = vmatpush1.msra.mxu0 %v988
    %1022 = vmatprep.subr.mxu0 %v991
    %1023 = vmatpush1.msra.mxu0 %v990
    %1024 = vmatprep.subr.mxu0 %v993
    %1025 = vmatpush1.msra.mxu0 %v992
    %1026 = vmatprep.subr.mxu0 %v995
    %1027 = vmatpush1.msra.mxu0 %v994
    %1028 = vmatprep.subr.mxu0 %v997
    %1029 = vmatpush1.msra.mxu0 %v996
    %1030 = vmatprep.subr.mxu0 %v999
    %1031 = vmatpush1.msra.mxu0 %v998
    %1032 = vmatprep.subr.mxu0 %v1001
    %1033 = vmatpush1.msra.mxu0 %v1000
    %1034 = vmatprep.subr.mxu0 %v1003
    %1035 = vmatpush1.msra.mxu0 %v1002
    %1036 = vmatprep.subr.mxu0 %v1005
    %1037 = vmatpush1.msra.mxu0 %v1004
    %1038 = vmatprep.subr.mxu0 %v1007
    %1039 = vmatpush1.msra.mxu0 %v1006
    %1040 = vmatprep.subr.mxu0 0.0
    %1041 = vmatpush1.msra.mxu0 0.0
    %1042 = vmatprep.subr.mxu0 0.0
    %1043 = vmatpush1.msra.mxu0 0.0
    %1044 = vmatprep.subr.mxu0 0.0
    %1045 = vmatpush1.msra.mxu0 0.0
    %1046 = vmatprep.subr.mxu0 0.0
    %1047 = vmatpush1.msra.mxu0 0.0
    %1048 = vmatprep.subr.mxu0 0.0
    %1049 = vmatpush1.msra.mxu0 0.0
    %1050 = vmatprep.subr.mxu0 0.0
    %1051 = vmatpush1.msra.mxu0 0.0
    %1052 = vmatprep.subr.mxu0 0.0
    %1053 = vmatpush1.msra.mxu0 0.0
    %1054 = vmatprep.subr.mxu0 0.0
    %1055 = vmatpush1.msra.mxu0 0.0
    %1056 = vmatprep.subr.mxu0 0.0
    %1057 = vmatpush1.msra.mxu0 0.0
    %1058 = vmatprep.subr.mxu0 0.0
    %1059 = vmatpush1.msra.mxu0 0.0
    %1060 = vmatprep.subr.mxu0 0.0
    %1061 = vmatpush1.msra.mxu0 0.0
    %1062 = vmatprep.subr.mxu0 0.0
    %1063 = vmatpush1.msra.mxu0 0.0
    %1064 = vmatprep.subr.mxu0 0.0
    %1065 = vmatpush1.msra.mxu0 0.0
    %1066 = vmatprep.subr.mxu0 0.0
    %1067 = vmatpush1.msra.mxu0 0.0
    %1068 = vmatprep.subr.mxu0 0.0
    %1069 = vmatpush1.msra.mxu0 0.0
    %1070 = vmatprep.subr.mxu0 0.0
    %1071 = vmatpush1.msra.mxu0 0.0
    %1072 = vmatprep.mubr.f32.mxu0 0.0
    %1073 = vmatmul.mubr.f32.gmra.mrb[0].mxu0 %v973
    %v1074 = vpop.f32.mrb[0].mxu0
    %v1075 = vadd.f32 0.0, %v1074
    %v1076 = vpop.f32.mrb[0].mxu0
    %v1077 = vadd.f32 0.0, %v1076
    %1078 = vmatprep.mubr.f32.mxu0 0.0
    %1079 = vmatmul.mubr.f32.gmra.mrb[0].mxu0 %v974
    %v1080 = vpop.f32.mrb[0].mxu0
    %v1081 = vadd.f32 0.0, %v1080
    %v1082 = vpop.f32.mrb[0].mxu0
    %v1083 = vadd.f32 0.0, %v1082
    %1084 = vdwg.mxu0
    %v1085 = vadd.f32 %v963, %v1075
    %v1086 = vadd.f32 %v965, %v1077
    %v1087 = vadd.f32 %v969, %v1081
    %v1088 = vadd.f32 %v971, %v1083
    %v1089 = vld [vmem:[#allocation3 + $0x3] sm:$0xff]
    %v1090 = vld [vmem:[#allocation3 + $0xb] sm:$0x3]
    %s1091 = scalar_lea.vmem [#allocation6], 768
    %v1092 = vld [vmem:[%s1091] sm:$0xff]
    %v1093 = vld [vmem:[%s1091 + $0x8] sm:$0xff]
    %v1094 = vld [vmem:[%s1091 + $0x10] sm:$0xff]
    %v1095 = vld [vmem:[%s1091 + $0x18] sm:$0xff]
    %v1096 = vld [vmem:[%s1091 + $0x20] sm:$0xff]
    %v1097 = vld [vmem:[%s1091 + $0x28] sm:$0xff]
    %v1098 = vld [vmem:[%s1091 + $0x30] sm:$0xff]
    %v1099 = vld [vmem:[%s1091 + $0x38] sm:$0xff]
    %v1100 = vld [vmem:[%s1091 + $0x40] sm:$0xff]
    %v1101 = vld [vmem:[%s1091 + $0x48] sm:$0xff]
    %v1102 = vld [vmem:[%s1091 + $0x50] sm:$0xff]
    %v1103 = vld [vmem:[%s1091 + $0x58] sm:$0xff]
    %v1104 = vld [vmem:[%s1091 + $0x60] sm:$0xff]
    %v1105 = vld [vmem:[%s1091 + $0x68] sm:$0xff]
    %v1106 = vld [vmem:[%s1091 + $0x70] sm:$0xff]
    %v1107 = vld [vmem:[%s1091 + $0x78] sm:$0xff]
    %v1108 = vld [vmem:[%s1091 + $0x80] sm:$0xff]
    %v1109 = vld [vmem:[%s1091 + $0x88] sm:$0xff]
    %v1110 = vld [vmem:[%s1091 + $0x90] sm:$0xff]
    %v1111 = vld [vmem:[%s1091 + $0x98] sm:$0xff]
    %v1112 = vld [vmem:[%s1091 + $0xa0] sm:$0xff]
    %v1113 = vld [vmem:[%s1091 + $0xa8] sm:$0xff]
    %v1114 = vld [vmem:[%s1091 + $0xb0] sm:$0xff]
    %v1115 = vld [vmem:[%s1091 + $0xb8] sm:$0xff]
    %v1116 = vld [vmem:[%s1091 + $0xc0] sm:$0xff]
    %v1117 = vld [vmem:[%s1091 + $0xc8] sm:$0xff]
    %v1118 = vld [vmem:[%s1091 + $0xd0] sm:$0xff]
    %v1119 = vld [vmem:[%s1091 + $0xd8] sm:$0xff]
    %v1120 = vld [vmem:[%s1091 + $0xe0] sm:$0xff]
    %v1121 = vld [vmem:[%s1091 + $0xe8] sm:$0xff]
    %v1122 = vld [vmem:[%s1091 + $0xf0] sm:$0xff]
    %v1123 = vld [vmem:[%s1091 + $0xf8] sm:$0xff]
    %1124 = vmatprep.subr.mxu0 %v1093
    %1125 = vmatpush1.msra.mxu0 %v1092
    %1126 = vmatprep.subr.mxu0 %v1095
    %1127 = vmatpush1.msra.mxu0 %v1094
    %1128 = vmatprep.subr.mxu0 %v1097
    %1129 = vmatpush1.msra.mxu0 %v1096
    %1130 = vmatprep.subr.mxu0 %v1099
    %1131 = vmatpush1.msra.mxu0 %v1098
    %1132 = vmatprep.subr.mxu0 %v1101
    %1133 = vmatpush1.msra.mxu0 %v1100
    %1134 = vmatprep.subr.mxu0 %v1103
    %1135 = vmatpush1.msra.mxu0 %v1102
    %1136 = vmatprep.subr.mxu0 %v1105
    %1137 = vmatpush1.msra.mxu0 %v1104
    %1138 = vmatprep.subr.mxu0 %v1107
    %1139 = vmatpush1.msra.mxu0 %v1106
    %1140 = vmatprep.subr.mxu0 %v1109
    %1141 = vmatpush1.msra.mxu0 %v1108
    %1142 = vmatprep.subr.mxu0 %v1111
    %1143 = vmatpush1.msra.mxu0 %v1110
    %1144 = vmatprep.subr.mxu0 %v1113
    %1145 = vmatpush1.msra.mxu0 %v1112
    %1146 = vmatprep.subr.mxu0 %v1115
    %1147 = vmatpush1.msra.mxu0 %v1114
    %1148 = vmatprep.subr.mxu0 %v1117
    %1149 = vmatpush1.msra.mxu0 %v1116
    %1150 = vmatprep.subr.mxu0 %v1119
    %1151 = vmatpush1.msra.mxu0 %v1118
    %1152 = vmatprep.subr.mxu0 %v1121
    %1153 = vmatpush1.msra.mxu0 %v1120
    %1154 = vmatprep.subr.mxu0 %v1123
    %1155 = vmatpush1.msra.mxu0 %v1122
    %1156 = vmatprep.subr.mxu0 0.0
    %1157 = vmatpush1.msra.mxu0 0.0
    %1158 = vmatprep.subr.mxu0 0.0
    %1159 = vmatpush1.msra.mxu0 0.0
    %1160 = vmatprep.subr.mxu0 0.0
    %1161 = vmatpush1.msra.mxu0 0.0
    %1162 = vmatprep.subr.mxu0 0.0
    %1163 = vmatpush1.msra.mxu0 0.0
    %1164 = vmatprep.subr.mxu0 0.0
    %1165 = vmatpush1.msra.mxu0 0.0
    %1166 = vmatprep.subr.mxu0 0.0
    %1167 = vmatpush1.msra.mxu0 0.0
    %1168 = vmatprep.subr.mxu0 0.0
    %1169 = vmatpush1.msra.mxu0 0.0
    %1170 = vmatprep.subr.mxu0 0.0
    %1171 = vmatpush1.msra.mxu0 0.0
    %1172 = vmatprep.subr.mxu0 0.0
    %1173 = vmatpush1.msra.mxu0 0.0
    %1174 = vmatprep.subr.mxu0 0.0
    %1175 = vmatpush1.msra.mxu0 0.0
    %1176 = vmatprep.subr.mxu0 0.0
    %1177 = vmatpush1.msra.mxu0 0.0
    %1178 = vmatprep.subr.mxu0 0.0
    %1179 = vmatpush1.msra.mxu0 0.0
    %1180 = vmatprep.subr.mxu0 0.0
    %1181 = vmatpush1.msra.mxu0 0.0
    %1182 = vmatprep.subr.mxu0 0.0
    %1183 = vmatpush1.msra.mxu0 0.0
    %1184 = vmatprep.subr.mxu0 0.0
    %1185 = vmatpush1.msra.mxu0 0.0
    %1186 = vmatprep.subr.mxu0 0.0
    %1187 = vmatpush1.msra.mxu0 0.0
    %1188 = vmatprep.mubr.f32.mxu0 0.0
    %1189 = vmatmul.mubr.f32.gmra.mrb[0].mxu0 %v1089
    %v1190 = vpop.f32.mrb[0].mxu0
    %v1191 = vadd.f32 0.0, %v1190
    %v1192 = vpop.f32.mrb[0].mxu0
    %v1193 = vadd.f32 0.0, %v1192
    %1194 = vmatprep.mubr.f32.mxu0 0.0
    %1195 = vmatmul.mubr.f32.gmra.mrb[0].mxu0 %v1090
    %v1196 = vpop.f32.mrb[0].mxu0
    %v1197 = vadd.f32 0.0, %v1196
    %v1198 = vpop.f32.mrb[0].mxu0
    %v1199 = vadd.f32 0.0, %v1198
    %1200 = vdwg.mxu0
    %v1201 = vadd.f32 %v1085, %v1191
    %v1202 = vadd.f32 %v1086, %v1193
    %v1203 = vadd.f32 %v1087, %v1197
    %v1204 = vadd.f32 %v1088, %v1199
    %v1205 = vld [vmem:[#allocation3 + $0x4] sm:$0xff]
    %v1206 = vld [vmem:[#allocation3 + $0xc] sm:$0x3]
    %s1207 = scalar_lea.vmem [#allocation6], 1024
    %v1208 = vld [vmem:[%s1207] sm:$0xff]
    %v1209 = vld [vmem:[%s1207 + $0x8] sm:$0xff]
    %v1210 = vld [vmem:[%s1207 + $0x10] sm:$0xff]
    %v1211 = vld [vmem:[%s1207 + $0x18] sm:$0xff]
    %v1212 = vld [vmem:[%s1207 + $0x20] sm:$0xff]
    %v1213 = vld [vmem:[%s1207 + $0x28] sm:$0xff]
    %v1214 = vld [vmem:[%s1207 + $0x30] sm:$0xff]
    %v1215 = vld [vmem:[%s1207 + $0x38] sm:$0xff]
    %v1216 = vld [vmem:[%s1207 + $0x40] sm:$0xff]
    %v1217 = vld [vmem:[%s1207 + $0x48] sm:$0xff]
    %v1218 = vld [vmem:[%s1207 + $0x50] sm:$0xff]
    %v1219 = vld [vmem:[%s1207 + $0x58] sm:$0xff]
    %v1220 = vld [vmem:[%s1207 + $0x60] sm:$0xff]
    %v1221 = vld [vmem:[%s1207 + $0x68] sm:$0xff]
    %v1222 = vld [vmem:[%s1207 + $0x70] sm:$0xff]
    %v1223 = vld [vmem:[%s1207 + $0x78] sm:$0xff]
    %v1224 = vld [vmem:[%s1207 + $0x80] sm:$0xff]
    %v1225 = vld [vmem:[%s1207 + $0x88] sm:$0xff]
    %v1226 = vld [vmem:[%s1207 + $0x90] sm:$0xff]
    %v1227 = vld [vmem:[%s1207 + $0x98] sm:$0xff]
    %v1228 = vld [vmem:[%s1207 + $0xa0] sm:$0xff]
    %v1229 = vld [vmem:[%s1207 + $0xa8] sm:$0xff]
    %v1230 = vld [vmem:[%s1207 + $0xb0] sm:$0xff]
    %v1231 = vld [vmem:[%s1207 + $0xb8] sm:$0xff]
    %v1232 = vld [vmem:[%s1207 + $0xc0] sm:$0xff]
    %v1233 = vld [vmem:[%s1207 + $0xc8] sm:$0xff]
    %v1234 = vld [vmem:[%s1207 + $0xd0] sm:$0xff]
    %v1235 = vld [vmem:[%s1207 + $0xd8] sm:$0xff]
    %v1236 = vld [vmem:[%s1207 + $0xe0] sm:$0xff]
    %v1237 = vld [vmem:[%s1207 + $0xe8] sm:$0xff]
    %v1238 = vld [vmem:[%s1207 + $0xf0] sm:$0xff]
    %v1239 = vld [vmem:[%s1207 + $0xf8] sm:$0xff]
    %1240 = vmatprep.subr.mxu0 %v1209
    %1241 = vmatpush1.msra.mxu0 %v1208
    %1242 = vmatprep.subr.mxu0 %v1211
    %1243 = vmatpush1.msra.mxu0 %v1210
    %1244 = vmatprep.subr.mxu0 %v1213
    %1245 = vmatpush1.msra.mxu0 %v1212
    %1246 = vmatprep.subr.mxu0 %v1215
    %1247 = vmatpush1.msra.mxu0 %v1214
    %1248 = vmatprep.subr.mxu0 %v1217
    %1249 = vmatpush1.msra.mxu0 %v1216
    %1250 = vmatprep.subr.mxu0 %v1219
    %1251 = vmatpush1.msra.mxu0 %v1218
    %1252 = vmatprep.subr.mxu0 %v1221
    %1253 = vmatpush1.msra.mxu0 %v1220
    %1254 = vmatprep.subr.mxu0 %v1223
    %1255 = vmatpush1.msra.mxu0 %v1222
    %1256 = vmatprep.subr.mxu0 %v1225
    %1257 = vmatpush1.msra.mxu0 %v1224
    %1258 = vmatprep.subr.mxu0 %v1227
    %1259 = vmatpush1.msra.mxu0 %v1226
    %1260 = vmatprep.subr.mxu0 %v1229
    %1261 = vmatpush1.msra.mxu0 %v1228
    %1262 = vmatprep.subr.mxu0 %v1231
    %1263 = vmatpush1.msra.mxu0 %v1230
    %1264 = vmatprep.subr.mxu0 %v1233
    %1265 = vmatpush1.msra.mxu0 %v1232
    %1266 = vmatprep.subr.mxu0 %v1235
    %1267 = vmatpush1.msra.mxu0 %v1234
    %1268 = vmatprep.subr.mxu0 %v1237
    %1269 = vmatpush1.msra.mxu0 %v1236
    %1270 = vmatprep.subr.mxu0 %v1239
    %1271 = vmatpush1.msra.mxu0 %v1238
    %1272 = vmatprep.subr.mxu0 0.0
    %1273 = vmatpush1.msra.mxu0 0.0
    %1274 = vmatprep.subr.mxu0 0.0
    %1275 = vmatpush1.msra.mxu0 0.0
    %1276 = vmatprep.subr.mxu0 0.0
    %1277 = vmatpush1.msra.mxu0 0.0
    %1278 = vmatprep.subr.mxu0 0.0
    %1279 = vmatpush1.msra.mxu0 0.0
    %1280 = vmatprep.subr.mxu0 0.0
    %1281 = vmatpush1.msra.mxu0 0.0
    %1282 = vmatprep.subr.mxu0 0.0
    %1283 = vmatpush1.msra.mxu0 0.0
    %1284 = vmatprep.subr.mxu0 0.0
    %1285 = vmatpush1.msra.mxu0 0.0
    %1286 = vmatprep.subr.mxu0 0.0
    %1287 = vmatpush1.msra.mxu0 0.0
    %1288 = vmatprep.subr.mxu0 0.0
    %1289 = vmatpush1.msra.mxu0 0.0
    %1290 = vmatprep.subr.mxu0 0.0
    %1291 = vmatpush1.msra.mxu0 0.0
    %1292 = vmatprep.subr.mxu0 0.0
    %1293 = vmatpush1.msra.mxu0 0.0
    %1294 = vmatprep.subr.mxu0 0.0
    %1295 = vmatpush1.msra.mxu0 0.0
    %1296 = vmatprep.subr.mxu0 0.0
    %1297 = vmatpush1.msra.mxu0 0.0
    %1298 = vmatprep.subr.mxu0 0.0
    %1299 = vmatpush1.msra.mxu0 0.0
    %1300 = vmatprep.subr.mxu0 0.0
    %1301 = vmatpush1.msra.mxu0 0.0
    %1302 = vmatprep.subr.mxu0 0.0
    %1303 = vmatpush1.msra.mxu0 0.0
    %1304 = vmatprep.mubr.f32.mxu0 0.0
    %1305 = vmatmul.mubr.f32.gmra.mrb[0].mxu0 %v1205
    %v1306 = vpop.f32.mrb[0].mxu0
    %v1307 = vadd.f32 0.0, %v1306
    %v1308 = vpop.f32.mrb[0].mxu0
    %v1309 = vadd.f32 0.0, %v1308
    %1310 = vmatprep.mubr.f32.mxu0 0.0
    %1311 = vmatmul.mubr.f32.gmra.mrb[0].mxu0 %v1206
    %v1312 = vpop.f32.mrb[0].mxu0
    %v1313 = vadd.f32 0.0, %v1312
    %v1314 = vpop.f32.mrb[0].mxu0
    %v1315 = vadd.f32 0.0, %v1314
    %1316 = vdwg.mxu0
    %v1317 = vadd.f32 %v1201, %v1307
    %v1318 = vadd.f32 %v1202, %v1309
    %v1319 = vadd.f32 %v1203, %v1313
    %v1320 = vadd.f32 %v1204, %v1315
    %v1321 = vmax.f32 %v1317, %v1318
    %v1322 = vmax.f32 %v1319, %v1320
    %v1323 = vlaneseq
    %v1324 = vshrl.u32 %v1323, 7
    %v1325 = vsub.s32 0, %v1324
    %v1326 = vrot.slane %v65, %v1325
    %v1327 = vadd.f32 %v1321, %v1326
    %v1328 = vadd.f32 %v1322, %v1326
    %v1329 = vmax.f32 %v1327, 0.0
    %v1330 = vmax.f32 %v1328, 0.0
    %1331 = vst [vmem:[#allocation4] sm:$0xff] %v1329
    %1332 = vst [vmem:[#allocation4 + $0x8] sm:$0x3] %v1330
    %v1333 = vld [vmem:[#allocation4] ss:$2 sm:$0x1f]
    %s1334 = scalar_lea.vmem [#allocation4], 1
    %v1335 = vld [vmem:[%s1334] ss:$2 sm:$0x1f]
    %v1336 = vmax.f32 %v1333, %v1335
    %1337 = vst [vmem:[#allocation5] sm:$0x1] %v1336
    %v1340 = vunpack.c.l.s4 1983009808
    %v1341 = vunpack.c.0.s8 %v1340
    %v1342 = vlaneseq
    %v1343 = vshrl.u32 %v1342, 7
    %v1344 = vsub.s32 %v1341, %v1343
    %v1345 = vrot.slane %v1336, %v1344
    %v1346 = vrot.slane %v1345, 7
    %v1347 = vrot.slane %v1346, 2
    %1349 = vst [vmem:[#allocation5 + $0x2] sm:$0x1] %v1347
    %v1350 = vcombine.high %v1345, %v1345
    %1352 = vst [vmem:[#allocation5 + $0x4] sm:$0x1] %v1350
    %v1353 = vrot.slane %v1350, 7
    %v1354 = vrot.slane %v1353, 2
    %1356 = vst [vmem:[#allocation5 + $0x6] sm:$0x1] %v1354
    %v1357 = vcombine.high %v1336, %v1336
    %v1359 = vunpack.c.l.s4 1983009808
    %v1360 = vunpack.c.0.s8 %v1359
    %v1361 = vlaneseq
    %v1362 = vshrl.u32 %v1361, 7
    %v1363 = vsub.s32 %v1360, %v1362
    %v1364 = vrot.slane %v1357, %v1363
    %1366 = vst [vmem:[#allocation5 + $0x8] sm:$0x1] %v1364
    %s1367 = scalar_lea.vmem %s0, 32
    %v1368 = vld [vmem:[%s1367] sm:$0xff]
    %v1369 = vld [vmem:[%s1367 + $0x8] sm:$0xff]
    %v1370 = vld [vmem:[%s1367 + $0x10] sm:$0xff]
    %v1371 = vld [vmem:[%s1367 + $0x18] sm:$0xf]
    %v1372 = vld [vmem:[%s1] sm:$0xff]
    %v1373 = vld [vmem:[%s1 + $0x8] sm:$0xff]
    %v1374 = vld [vmem:[%s1 + $0x10] sm:$0xff]
    %v1375 = vld [vmem:[%s1 + $0x18] sm:$0xff]
    %v1376 = vld [vmem:[%s1 + $0x20] sm:$0xff]
    %v1377 = vld [vmem:[%s1 + $0x28] sm:$0xff]
    %v1378 = vld [vmem:[%s1 + $0x30] sm:$0xff]
    %v1379 = vld [vmem:[%s1 + $0x38] sm:$0xff]
    %v1380 = vld [vmem:[%s1 + $0x40] sm:$0xff]
    %v1381 = vld [vmem:[%s1 + $0x48] sm:$0xff]
    %v1382 = vld [vmem:[%s1 + $0x50] sm:$0xff]
    %v1383 = vld [vmem:[%s1 + $0x58] sm:$0xff]
    %v1384 = vld [vmem:[%s1 + $0x60] sm:$0xff]
    %v1385 = vld [vmem:[%s1 + $0x68] sm:$0xff]
    %v1386 = vld [vmem:[%s1 + $0x70] sm:$0xff]
    %v1387 = vld [vmem:[%s1 + $0x78] sm:$0xff]
    %v1388 = vld [vmem:[%s1 + $0x80] sm:$0xff]
    %v1389 = vld [vmem:[%s1 + $0x88] sm:$0xff]
    %v1390 = vld [vmem:[%s1 + $0x90] sm:$0xff]
    %v1391 = vld [vmem:[%s1 + $0x98] sm:$0xff]
    %v1392 = vld [vmem:[%s1 + $0xa0] sm:$0xff]
    %v1393 = vld [vmem:[%s1 + $0xa8] sm:$0xff]
    %v1394 = vld [vmem:[%s1 + $0xb0] sm:$0xff]
    %v1395 = vld [vmem:[%s1 + $0xb8] sm:$0xff]
    %v1396 = vld [vmem:[%s1 + $0xc0] sm:$0xff]
    %v1397 = vld [vmem:[%s1 + $0xc8] sm:$0xff]
    %v1398 = vld [vmem:[%s1 + $0xd0] sm:$0xff]
    %v1399 = vld [vmem:[%s1 + $0xd8] sm:$0xff]
    %v1400 = vld [vmem:[%s1 + $0xe0] sm:$0xff]
    %v1401 = vld [vmem:[%s1 + $0xe8] sm:$0xff]
    %v1402 = vld [vmem:[%s1 + $0xf0] sm:$0xff]
    %v1403 = vld [vmem:[%s1 + $0xf8] sm:$0xff]
    %v1404 = vld [vmem:[%s1367 + $0x1] sm:$0xff]
    %v1405 = vld [vmem:[%s1367 + $0x9] sm:$0xff]
    %v1406 = vld [vmem:[%s1367 + $0x11] sm:$0xff]
    %v1407 = vld [vmem:[%s1367 + $0x19] sm:$0xf]
    %v1408 = vld [vmem:[%s106] sm:$0xff]
    %v1409 = vld [vmem:[%s106 + $0x8] sm:$0xff]
    %v1410 = vld [vmem:[%s106 + $0x10] sm:$0xff]
    %v1411 = vld [vmem:[%s106 + $0x18] sm:$0xff]
    %v1412 = vld [vmem:[%s106 + $0x20] sm:$0xff]
    %v1413 = vld [vmem:[%s106 + $0x28] sm:$0xff]
    %v1414 = vld [vmem:[%s106 + $0x30] sm:$0xff]
    %v1415 = vld [vmem:[%s106 + $0x38] sm:$0xff]
    %v1416 = vld [vmem:[%s106 + $0x40] sm:$0xff]
    %v1417 = vld [vmem:[%s106 + $0x48] sm:$0xff]
    %v1418 = vld [vmem:[%s106 + $0x50] sm:$0xff]
    %v1419 = vld [vmem:[%s106 + $0x58] sm:$0xff]
    %v1420 = vld [vmem:[%s106 + $0x60] sm:$0xff]
    %v1421 = vld [vmem:[%s106 + $0x68] sm:$0xff]
    %v1422 = vld [vmem:[%s106 + $0x70] sm:$0xff]
    %v1423 = vld [vmem:[%s106 + $0x78] sm:$0xff]
    %v1424 = vld [vmem:[%s106 + $0x80] sm:$0xff]
    %v1425 = vld [vmem:[%s106 + $0x88] sm:$0xff]
    %v1426 = vld [vmem:[%s106 + $0x90] sm:$0xff]
    %v1427 = vld [vmem:[%s106 + $0x98] sm:$0xff]
    %v1428 = vld [vmem:[%s106 + $0xa0] sm:$0xff]
    %v1429 = vld [vmem:[%s106 + $0xa8] sm:$0xff]
    %v1430 = vld [vmem:[%s106 + $0xb0] sm:$0xff]
    %v1431 = vld [vmem:[%s106 + $0xb8] sm:$0xff]
    %v1432 = vld [vmem:[%s106 + $0xc0] sm:$0xff]
    %v1433 = vld [vmem:[%s106 + $0xc8] sm:$0xff]
    %v1434 = vld [vmem:[%s106 + $0xd0] sm:$0xff]
    %v1435 = vld [vmem:[%s106 + $0xd8] sm:$0xff]
    %v1436 = vld [vmem:[%s106 + $0xe0] sm:$0xff]
    %v1437 = vld [vmem:[%s106 + $0xe8] sm:$0xff]
    %v1438 = vld [vmem:[%s106 + $0xf0] sm:$0xff]
    %v1439 = vld [vmem:[%s106 + $0xf8] sm:$0xff]
    %1440 = vmatprep.subr.mxu0 %v1409
    %1441 = vmatpush1.msra.mxu0 %v1408
    %1442 = vmatprep.subr.mxu0 %v1411
    %1443 = vmatpush1.msra.mxu0 %v1410
    %1444 = vmatprep.subr.mxu0 %v1413
    %1445 = vmatpush1.msra.mxu0 %v1412
    %1446 = vmatprep.subr.mxu0 %v1415
    %1447 = vmatpush1.msra.mxu0 %v1414
    %1448 = vmatprep.subr.mxu0 %v1417
    %1449 = vmatpush1.msra.mxu0 %v1416
    %1450 = vmatprep.subr.mxu0 %v1419
    %1451 = vmatpush1.msra.mxu0 %v1418
    %1452 = vmatprep.subr.mxu0 %v1421
    %1453 = vmatpush1.msra.mxu0 %v1420
    %1454 = vmatprep.subr.mxu0 %v1423
    %1455 = vmatpush1.msra.mxu0 %v1422
    %1456 = vmatprep.subr.mxu0 %v1425
    %1457 = vmatpush1.msra.mxu0 %v1424
    %1458 = vmatprep.subr.mxu0 %v1427
    %1459 = vmatpush1.msra.mxu0 %v1426
    %1460 = vmatprep.subr.mxu0 %v1429
    %1461 = vmatpush1.msra.mxu0 %v1428
    %1462 = vmatprep.subr.mxu0 %v1431
    %1463 = vmatpush1.msra.mxu0 %v1430
    %1464 = vmatprep.subr.mxu0 %v1433
    %1465 = vmatpush1.msra.mxu0 %v1432
    %1466 = vmatprep.subr.mxu0 %v1435
    %1467 = vmatpush1.msra.mxu0 %v1434
    %1468 = vmatprep.subr.mxu0 %v1437
    %1469 = vmatpush1.msra.mxu0 %v1436
    %1470 = vmatprep.subr.mxu0 %v1439
    %1471 = vmatpush1.msra.mxu0 %v1438
    %1472 = vmatprep.subr.mxu0 0.0
    %1473 = vmatpush1.msra.mxu0 0.0
    %1474 = vmatprep.subr.mxu0 0.0
    %1475 = vmatpush1.msra.mxu0 0.0
    %1476 = vmatprep.subr.mxu0 0.0
    %1477 = vmatpush1.msra.mxu0 0.0
    %1478 = vmatprep.subr.mxu0 0.0
    %1479 = vmatpush1.msra.mxu0 0.0
    %1480 = vmatprep.subr.mxu0 0.0
    %1481 = vmatpush1.msra.mxu0 0.0
    %1482 = vmatprep.subr.mxu0 0.0
    %1483 = vmatpush1.msra.mxu0 0.0
    %1484 = vmatprep.subr.mxu0 0.0
    %1485 = vmatpush1.msra.mxu0 0.0
    %1486 = vmatprep.subr.mxu0 0.0
    %1487 = vmatpush1.msra.mxu0 0.0
    %1488 = vmatprep.subr.mxu0 0.0
    %1489 = vmatpush1.msra.mxu0 0.0
    %1490 = vmatprep.subr.mxu0 0.0
    %1491 = vmatpush1.msra.mxu0 0.0
    %1492 = vmatprep.subr.mxu0 0.0
    %1493 = vmatpush1.msra.mxu0 0.0
    %1494 = vmatprep.subr.mxu0 0.0
    %1495 = vmatpush1.msra.mxu0 0.0
    %1496 = vmatprep.subr.mxu0 0.0
    %1497 = vmatpush1.msra.mxu0 0.0
    %1498 = vmatprep.subr.mxu0 0.0
    %1499 = vmatpush1.msra.mxu0 0.0
    %1500 = vmatprep.subr.mxu0 0.0
    %1501 = vmatpush1.msra.mxu0 0.0
    %1502 = vmatprep.subr.mxu0 0.0
    %1503 = vmatpush1.msra.mxu0 0.0
    %1504 = vmatprep.mubr.f32.mxu0 0.0
    %1505 = vmatmul.mubr.f32.gmra.mrb[0].mxu0 %v1404
    %v1506 = vpop.f32.mrb[0].mxu0
    %v1507 = vadd.f32 0.0, %v1506
    %v1508 = vpop.f32.mrb[0].mxu0
    %v1509 = vadd.f32 0.0, %v1508
    %1510 = vmatprep.mubr.f32.mxu0 0.0
    %1511 = vmatmul.mubr.f32.gmra.mrb[0].mxu0 %v1405
    %v1512 = vpop.f32.mrb[0].mxu0
    %v1513 = vadd.f32 0.0, %v1512
    %v1514 = vpop.f32.mrb[0].mxu0
    %v1515 = vadd.f32 0.0, %v1514
    %1516 = vmatprep.mubr.f32.mxu0 0.0
    %1517 = vmatmul.mubr.f32.gmra.mrb[0].mxu0 %v1406
    %v1518 = vpop.f32.mrb[0].mxu0
    %v1519 = vadd.f32 0.0, %v1518
    %v1520 = vpop.f32.mrb[0].mxu0
    %v1521 = vadd.f32 0.0, %v1520
    %1522 = vmatprep.mubr.f32.mxu0 0.0
    %1523 = vmatmul.mubr.f32.gmra.mrb[0].mxu0 %v1407
    %v1524 = vpop.f32.mrb[0].mxu0
    %v1525 = vadd.f32 0.0, %v1524
    %v1526 = vpop.f32.mrb[0].mxu0
    %v1527 = vadd.f32 0.0, %v1526
    %1528 = vdwg.mxu0
    %1529 = vmatprep.subr.mxu0 %v1373
    %1530 = vmatpush1.msra.mxu0 %v1372
    %1531 = vmatprep.subr.mxu0 %v1375
    %1532 = vmatpush1.msra.mxu0 %v1374
    %1533 = vmatprep.subr.mxu0 %v1377
    %1534 = vmatpush1.msra.mxu0 %v1376
    %1535 = vmatprep.subr.mxu0 %v1379
    %1536 = vmatpush1.msra.mxu0 %v1378
    %1537 = vmatprep.subr.mxu0 %v1381
    %1538 = vmatpush1.msra.mxu0 %v1380
    %1539 = vmatprep.subr.mxu0 %v1383
    %1540 = vmatpush1.msra.mxu0 %v1382
    %1541 = vmatprep.subr.mxu0 %v1385
    %1542 = vmatpush1.msra.mxu0 %v1384
    %1543 = vmatprep.subr.mxu0 %v1387
    %1544 = vmatpush1.msra.mxu0 %v1386
    %1545 = vmatprep.subr.mxu0 %v1389
    %1546 = vmatpush1.msra.mxu0 %v1388
    %1547 = vmatprep.subr.mxu0 %v1391
    %1548 = vmatpush1.msra.mxu0 %v1390
    %1549 = vmatprep.subr.mxu0 %v1393
    %1550 = vmatpush1.msra.mxu0 %v1392
    %1551 = vmatprep.subr.mxu0 %v1395
    %1552 = vmatpush1.msra.mxu0 %v1394
    %1553 = vmatprep.subr.mxu0 %v1397
    %1554 = vmatpush1.msra.mxu0 %v1396
    %1555 = vmatprep.subr.mxu0 %v1399
    %1556 = vmatpush1.msra.mxu0 %v1398
    %1557 = vmatprep.subr.mxu0 %v1401
    %1558 = vmatpush1.msra.mxu0 %v1400
    %1559 = vmatprep.subr.mxu0 %v1403
    %1560 = vmatpush1.msra.mxu0 %v1402
    %1561 = vmatprep.subr.mxu0 0.0
    %1562 = vmatpush1.msra.mxu0 0.0
    %1563 = vmatprep.subr.mxu0 0.0
    %1564 = vmatpush1.msra.mxu0 0.0
    %1565 = vmatprep.subr.mxu0 0.0
    %1566 = vmatpush1.msra.mxu0 0.0
    %1567 = vmatprep.subr.mxu0 0.0
    %1568 = vmatpush1.msra.mxu0 0.0
    %1569 = vmatprep.subr.mxu0 0.0
    %1570 = vmatpush1.msra.mxu0 0.0
    %1571 = vmatprep.subr.mxu0 0.0
    %1572 = vmatpush1.msra.mxu0 0.0
    %1573 = vmatprep.subr.mxu0 0.0
    %1574 = vmatpush1.msra.mxu0 0.0
    %1575 = vmatprep.subr.mxu0 0.0
    %1576 = vmatpush1.msra.mxu0 0.0
    %1577 = vmatprep.subr.mxu0 0.0
    %1578 = vmatpush1.msra.mxu0 0.0
    %1579 = vmatprep.subr.mxu0 0.0
    %1580 = vmatpush1.msra.mxu0 0.0
    %1581 = vmatprep.subr.mxu0 0.0
    %1582 = vmatpush1.msra.mxu0 0.0
    %1583 = vmatprep.subr.mxu0 0.0
    %1584 = vmatpush1.msra.mxu0 0.0
    %1585 = vmatprep.subr.mxu0 0.0
    %1586 = vmatpush1.msra.mxu0 0.0
    %1587 = vmatprep.subr.mxu0 0.0
    %1588 = vmatpush1.msra.mxu0 0.0
    %1589 = vmatprep.subr.mxu0 0.0
    %1590 = vmatpush1.msra.mxu0 0.0
    %1591 = vmatprep.subr.mxu0 0.0
    %1592 = vmatpush1.msra.mxu0 0.0
    %1593 = vmatprep.mubr.f32.mxu0 0.0
    %1594 = vmatmul.mubr.f32.gmra.mrb[0].mxu0 %v1368
    %v1595 = vpop.f32.mrb[0].mxu0
    %v1596 = vadd.f32 %v1507, %v1595
    %v1597 = vpop.f32.mrb[0].mxu0
    %v1598 = vadd.f32 %v1509, %v1597
    %1599 = vmatprep.mubr.f32.mxu0 0.0
    %1600 = vmatmul.mubr.f32.gmra.mrb[0].mxu0 %v1369
    %v1601 = vpop.f32.mrb[0].mxu0
    %v1602 = vadd.f32 %v1513, %v1601
    %v1603 = vpop.f32.mrb[0].mxu0
    %v1604 = vadd.f32 %v1515, %v1603
    %1605 = vmatprep.mubr.f32.mxu0 0.0
    %1606 = vmatmul.mubr.f32.gmra.mrb[0].mxu0 %v1370
    %v1607 = vpop.f32.mrb[0].mxu0
    %v1608 = vadd.f32 %v1519, %v1607
    %v1609 = vpop.f32.mrb[0].mxu0
    %v1610 = vadd.f32 %v1521, %v1609
    %1611 = vmatprep.mubr.f32.mxu0 0.0
    %1612 = vmatmul.mubr.f32.gmra.mrb[0].mxu0 %v1371
    %v1613 = vpop.f32.mrb[0].mxu0
    %v1614 = vadd.f32 %v1525, %v1613
    %v1615 = vpop.f32.mrb[0].mxu0
    %v1616 = vadd.f32 %v1527, %v1615
    %1617 = vdwg.mxu0
    %v1618 = vld [vmem:[%s1367 + $0x2] sm:$0xff]
    %v1619 = vld [vmem:[%s1367 + $0xa] sm:$0xff]
    %v1620 = vld [vmem:[%s1367 + $0x12] sm:$0xff]
    %v1621 = vld [vmem:[%s1367 + $0x1a] sm:$0xf]
    %v1622 = vld [vmem:[%s321] sm:$0xff]
    %v1623 = vld [vmem:[%s321 + $0x8] sm:$0xff]
    %v1624 = vld [vmem:[%s321 + $0x10] sm:$0xff]
    %v1625 = vld [vmem:[%s321 + $0x18] sm:$0xff]
    %v1626 = vld [vmem:[%s321 + $0x20] sm:$0xff]
    %v1627 = vld [vmem:[%s321 + $0x28] sm:$0xff]
    %v1628 = vld [vmem:[%s321 + $0x30] sm:$0xff]
    %v1629 = vld [vmem:[%s321 + $0x38] sm:$0xff]
    %v1630 = vld [vmem:[%s321 + $0x40] sm:$0xff]
    %v1631 = vld [vmem:[%s321 + $0x48] sm:$0xff]
    %v1632 = vld [vmem:[%s321 + $0x50] sm:$0xff]
    %v1633 = vld [vmem:[%s321 + $0x58] sm:$0xff]
    %v1634 = vld [vmem:[%s321 + $0x60] sm:$0xff]
    %v1635 = vld [vmem:[%s321 + $0x68] sm:$0xff]
    %v1636 = vld [vmem:[%s321 + $0x70] sm:$0xff]
    %v1637 = vld [vmem:[%s321 + $0x78] sm:$0xff]
    %v1638 = vld [vmem:[%s321 + $0x80] sm:$0xff]
    %v1639 = vld [vmem:[%s321 + $0x88] sm:$0xff]
    %v1640 = vld [vmem:[%s321 + $0x90] sm:$0xff]
    %v1641 = vld [vmem:[%s321 + $0x98] sm:$0xff]
    %v1642 = vld [vmem:[%s321 + $0xa0] sm:$0xff]
    %v1643 = vld [vmem:[%s321 + $0xa8] sm:$0xff]
    %v1644 = vld [vmem:[%s321 + $0xb0] sm:$0xff]
    %v1645 = vld [vmem:[%s321 + $0xb8] sm:$0xff]
    %v1646 = vld [vmem:[%s321 + $0xc0] sm:$0xff]
    %v1647 = vld [vmem:[%s321 + $0xc8] sm:$0xff]
    %v1648 = vld [vmem:[%s321 + $0xd0] sm:$0xff]
    %v1649 = vld [vmem:[%s321 + $0xd8] sm:$0xff]
    %v1650 = vld [vmem:[%s321 + $0xe0] sm:$0xff]
    %v1651 = vld [vmem:[%s321 + $0xe8] sm:$0xff]
    %v1652 = vld [vmem:[%s321 + $0xf0] sm:$0xff]
    %v1653 = vld [vmem:[%s321 + $0xf8] sm:$0xff]
    %1654 = vmatprep.subr.mxu0 %v1623
    %1655 = vmatpush1.msra.mxu0 %v1622
    %1656 = vmatprep.subr.mxu0 %v1625
    %1657 = vmatpush1.msra.mxu0 %v1624
    %1658 = vmatprep.subr.mxu0 %v1627
    %1659 = vmatpush1.msra.mxu0 %v1626
    %1660 = vmatprep.subr.mxu0 %v1629
    %1661 = vmatpush1.msra.mxu0 %v1628
    %1662 = vmatprep.subr.mxu0 %v1631
    %1663 = vmatpush1.msra.mxu0 %v1630
    %1664 = vmatprep.subr.mxu0 %v1633
    %1665 = vmatpush1.msra.mxu0 %v1632
    %1666 = vmatprep.subr.mxu0 %v1635
    %1667 = vmatpush1.msra.mxu0 %v1634
    %1668 = vmatprep.subr.mxu0 %v1637
    %1669 = vmatpush1.msra.mxu0 %v1636
    %1670 = vmatprep.subr.mxu0 %v1639
    %1671 = vmatpush1.msra.mxu0 %v1638
    %1672 = vmatprep.subr.mxu0 %v1641
    %1673 = vmatpush1.msra.mxu0 %v1640
    %1674 = vmatprep.subr.mxu0 %v1643
    %1675 = vmatpush1.msra.mxu0 %v1642
    %1676 = vmatprep.subr.mxu0 %v1645
    %1677 = vmatpush1.msra.mxu0 %v1644
    %1678 = vmatprep.subr.mxu0 %v1647
    %1679 = vmatpush1.msra.mxu0 %v1646
    %1680 = vmatprep.subr.mxu0 %v1649
    %1681 = vmatpush1.msra.mxu0 %v1648
    %1682 = vmatprep.subr.mxu0 %v1651
    %1683 = vmatpush1.msra.mxu0 %v1650
    %1684 = vmatprep.subr.mxu0 %v1653
    %1685 = vmatpush1.msra.mxu0 %v1652
    %1686 = vmatprep.subr.mxu0 0.0
    %1687 = vmatpush1.msra.mxu0 0.0
    %1688 = vmatprep.subr.mxu0 0.0
    %1689 = vmatpush1.msra.mxu0 0.0
    %1690 = vmatprep.subr.mxu0 0.0
    %1691 = vmatpush1.msra.mxu0 0.0
    %1692 = vmatprep.subr.mxu0 0.0
    %1693 = vmatpush1.msra.mxu0 0.0
    %1694 = vmatprep.subr.mxu0 0.0
    %1695 = vmatpush1.msra.mxu0 0.0
    %1696 = vmatprep.subr.mxu0 0.0
    %1697 = vmatpush1.msra.mxu0 0.0
    %1698 = vmatprep.subr.mxu0 0.0
    %1699 = vmatpush1.msra.mxu0 0.0
    %1700 = vmatprep.subr.mxu0 0.0
    %1701 = vmatpush1.msra.mxu0 0.0
    %1702 = vmatprep.subr.mxu0 0.0
    %1703 = vmatpush1.msra.mxu0 0.0
    %1704 = vmatprep.subr.mxu0 0.0
    %1705 = vmatpush1.msra.mxu0 0.0
    %1706 = vmatprep.subr.mxu0 0.0
    %1707 = vmatpush1.msra.mxu0 0.0
    %1708 = vmatprep.subr.mxu0 0.0
    %1709 = vmatpush1.msra.mxu0 0.0
    %1710 = vmatprep.subr.mxu0 0.0
    %1711 = vmatpush1.msra.mxu0 0.0
    %1712 = vmatprep.subr.mxu0 0.0
    %1713 = vmatpush1.msra.mxu0 0.0
    %1714 = vmatprep.subr.mxu0 0.0
    %1715 = vmatpush1.msra.mxu0 0.0
    %1716 = vmatprep.subr.mxu0 0.0
    %1717 = vmatpush1.msra.mxu0 0.0
    %1718 = vmatprep.mubr.f32.mxu0 0.0
    %1719 = vmatmul.mubr.f32.gmra.mrb[0].mxu0 %v1618
    %v1720 = vpop.f32.mrb[0].mxu0
    %v1721 = vadd.f32 0.0, %v1720
    %v1722 = vpop.f32.mrb[0].mxu0
    %v1723 = vadd.f32 0.0, %v1722
    %1724 = vmatprep.mubr.f32.mxu0 0.0
    %1725 = vmatmul.mubr.f32.gmra.mrb[0].mxu0 %v1619
    %v1726 = vpop.f32.mrb[0].mxu0
    %v1727 = vadd.f32 0.0, %v1726
    %v1728 = vpop.f32.mrb[0].mxu0
    %v1729 = vadd.f32 0.0, %v1728
    %1730 = vmatprep.mubr.f32.mxu0 0.0
    %1731 = vmatmul.mubr.f32.gmra.mrb[0].mxu0 %v1620
    %v1732 = vpop.f32.mrb[0].mxu0
    %v1733 = vadd.f32 0.0, %v1732
    %v1734 = vpop.f32.mrb[0].mxu0
    %v1735 = vadd.f32 0.0, %v1734
    %1736 = vmatprep.mubr.f32.mxu0 0.0
    %1737 = vmatmul.mubr.f32.gmra.mrb[0].mxu0 %v1621
    %v1738 = vpop.f32.mrb[0].mxu0
    %v1739 = vadd.f32 0.0, %v1738
    %v1740 = vpop.f32.mrb[0].mxu0
    %v1741 = vadd.f32 0.0, %v1740
    %1742 = vdwg.mxu0
    %v1743 = vadd.f32 %v1596, %v1721
    %v1744 = vadd.f32 %v1598, %v1723
    %v1745 = vadd.f32 %v1602, %v1727
    %v1746 = vadd.f32 %v1604, %v1729
    %v1747 = vadd.f32 %v1608, %v1733
    %v1748 = vadd.f32 %v1610, %v1735
    %v1749 = vadd.f32 %v1614, %v1739
    %v1750 = vadd.f32 %v1616, %v1741
    %v1751 = vld [vmem:[%s1367 + $0x3] sm:$0xff]
    %v1752 = vld [vmem:[%s1367 + $0xb] sm:$0xff]
    %v1753 = vld [vmem:[%s1367 + $0x13] sm:$0xff]
    %v1754 = vld [vmem:[%s1367 + $0x1b] sm:$0xf]
    %v1755 = vld [vmem:[%s455] sm:$0xff]
    %v1756 = vld [vmem:[%s455 + $0x8] sm:$0xff]
    %v1757 = vld [vmem:[%s455 + $0x10] sm:$0xff]
    %v1758 = vld [vmem:[%s455 + $0x18] sm:$0xff]
    %v1759 = vld [vmem:[%s455 + $0x20] sm:$0xff]
    %v1760 = vld [vmem:[%s455 + $0x28] sm:$0xff]
    %v1761 = vld [vmem:[%s455 + $0x30] sm:$0xff]
    %v1762 = vld [vmem:[%s455 + $0x38] sm:$0xff]
    %v1763 = vld [vmem:[%s455 + $0x40] sm:$0xff]
    %v1764 = vld [vmem:[%s455 + $0x48] sm:$0xff]
    %v1765 = vld [vmem:[%s455 + $0x50] sm:$0xff]
    %v1766 = vld [vmem:[%s455 + $0x58] sm:$0xff]
    %v1767 = vld [vmem:[%s455 + $0x60] sm:$0xff]
    %v1768 = vld [vmem:[%s455 + $0x68] sm:$0xff]
    %v1769 = vld [vmem:[%s455 + $0x70] sm:$0xff]
    %v1770 = vld [vmem:[%s455 + $0x78] sm:$0xff]
    %v1771 = vld [vmem:[%s455 + $0x80] sm:$0xff]
    %v1772 = vld [vmem:[%s455 + $0x88] sm:$0xff]
    %v1773 = vld [vmem:[%s455 + $0x90] sm:$0xff]
    %v1774 = vld [vmem:[%s455 + $0x98] sm:$0xff]
    %v1775 = vld [vmem:[%s455 + $0xa0] sm:$0xff]
    %v1776 = vld [vmem:[%s455 + $0xa8] sm:$0xff]
    %v1777 = vld [vmem:[%s455 + $0xb0] sm:$0xff]
    %v1778 = vld [vmem:[%s455 + $0xb8] sm:$0xff]
    %v1779 = vld [vmem:[%s455 + $0xc0] sm:$0xff]
    %v1780 = vld [vmem:[%s455 + $0xc8] sm:$0xff]
    %v1781 = vld [vmem:[%s455 + $0xd0] sm:$0xff]
    %v1782 = vld [vmem:[%s455 + $0xd8] sm:$0xff]
    %v1783 = vld [vmem:[%s455 + $0xe0] sm:$0xff]
    %v1784 = vld [vmem:[%s455 + $0xe8] sm:$0xff]
    %v1785 = vld [vmem:[%s455 + $0xf0] sm:$0xff]
    %v1786 = vld [vmem:[%s455 + $0xf8] sm:$0xff]
    %1787 = vmatprep.subr.mxu0 %v1756
    %1788 = vmatpush1.msra.mxu0 %v1755
    %1789 = vmatprep.subr.mxu0 %v1758
    %1790 = vmatpush1.msra.mxu0 %v1757
    %1791 = vmatprep.subr.mxu0 %v1760
    %1792 = vmatpush1.msra.mxu0 %v1759
    %1793 = vmatprep.subr.mxu0 %v1762
    %1794 = vmatpush1.msra.mxu0 %v1761
    %1795 = vmatprep.subr.mxu0 %v1764
    %1796 = vmatpush1.msra.mxu0 %v1763
    %1797 = vmatprep.subr.mxu0 %v1766
    %1798 = vmatpush1.msra.mxu0 %v1765
    %1799 = vmatprep.subr.mxu0 %v1768
    %1800 = vmatpush1.msra.mxu0 %v1767
    %1801 = vmatprep.subr.mxu0 %v1770
    %1802 = vmatpush1.msra.mxu0 %v1769
    %1803 = vmatprep.subr.mxu0 %v1772
    %1804 = vmatpush1.msra.mxu0 %v1771
    %1805 = vmatprep.subr.mxu0 %v1774
    %1806 = vmatpush1.msra.mxu0 %v1773
    %1807 = vmatprep.subr.mxu0 %v1776
    %1808 = vmatpush1.msra.mxu0 %v1775
    %1809 = vmatprep.subr.mxu0 %v1778
    %1810 = vmatpush1.msra.mxu0 %v1777
    %1811 = vmatprep.subr.mxu0 %v1780
    %1812 = vmatpush1.msra.mxu0 %v1779
    %1813 = vmatprep.subr.mxu0 %v1782
    %1814 = vmatpush1.msra.mxu0 %v1781
    %1815 = vmatprep.subr.mxu0 %v1784
    %1816 = vmatpush1.msra.mxu0 %v1783
    %1817 = vmatprep.subr.mxu0 %v1786
    %1818 = vmatpush1.msra.mxu0 %v1785
    %1819 = vmatprep.subr.mxu0 0.0
    %1820 = vmatpush1.msra.mxu0 0.0
    %1821 = vmatprep.subr.mxu0 0.0
    %1822 = vmatpush1.msra.mxu0 0.0
    %1823 = vmatprep.subr.mxu0 0.0
    %1824 = vmatpush1.msra.mxu0 0.0
    %1825 = vmatprep.subr.mxu0 0.0
    %1826 = vmatpush1.msra.mxu0 0.0
    %1827 = vmatprep.subr.mxu0 0.0
    %1828 = vmatpush1.msra.mxu0 0.0
    %1829 = vmatprep.subr.mxu0 0.0
    %1830 = vmatpush1.msra.mxu0 0.0
    %1831 = vmatprep.subr.mxu0 0.0
    %1832 = vmatpush1.msra.mxu0 0.0
    %1833 = vmatprep.subr.mxu0 0.0
    %1834 = vmatpush1.msra.mxu0 0.0
    %1835 = vmatprep.subr.mxu0 0.0
    %1836 = vmatpush1.msra.mxu0 0.0
    %1837 = vmatprep.subr.mxu0 0.0
    %1838 = vmatpush1.msra.mxu0 0.0
    %1839 = vmatprep.subr.mxu0 0.0
    %1840 = vmatpush1.msra.mxu0 0.0
    %1841 = vmatprep.subr.mxu0 0.0
    %1842 = vmatpush1.msra.mxu0 0.0
    %1843 = vmatprep.subr.mxu0 0.0
    %1844 = vmatpush1.msra.mxu0 0.0
    %1845 = vmatprep.subr.mxu0 0.0
    %1846 = vmatpush1.msra.mxu0 0.0
    %1847 = vmatprep.subr.mxu0 0.0
    %1848 = vmatpush1.msra.mxu0 0.0
    %1849 = vmatprep.subr.mxu0 0.0
    %1850 = vmatpush1.msra.mxu0 0.0
    %1851 = vmatprep.mubr.f32.mxu0 0.0
    %1852 = vmatmul.mubr.f32.gmra.mrb[0].mxu0 %v1751
    %v1853 = vpop.f32.mrb[0].mxu0
    %v1854 = vadd.f32 0.0, %v1853
    %v1855 = vpop.f32.mrb[0].mxu0
    %v1856 = vadd.f32 0.0, %v1855
    %1857 = vmatprep.mubr.f32.mxu0 0.0
    %1858 = vmatmul.mubr.f32.gmra.mrb[0].mxu0 %v1752
    %v1859 = vpop.f32.mrb[0].mxu0
    %v1860 = vadd.f32 0.0, %v1859
    %v1861 = vpop.f32.mrb[0].mxu0
    %v1862 = vadd.f32 0.0, %v1861
    %1863 = vmatprep.mubr.f32.mxu0 0.0
    %1864 = vmatmul.mubr.f32.gmra.mrb[0].mxu0 %v1753
    %v1865 = vpop.f32.mrb[0].mxu0
    %v1866 = vadd.f32 0.0, %v1865
    %v1867 = vpop.f32.mrb[0].mxu0
    %v1868 = vadd.f32 0.0, %v1867
    %1869 = vmatprep.mubr.f32.mxu0 0.0
    %1870 = vmatmul.mubr.f32.gmra.mrb[0].mxu0 %v1754
    %v1871 = vpop.f32.mrb[0].mxu0
    %v1872 = vadd.f32 0.0, %v1871
    %v1873 = vpop.f32.mrb[0].mxu0
    %v1874 = vadd.f32 0.0, %v1873
    %1875 = vdwg.mxu0
    %v1876 = vadd.f32 %v1743, %v1854
    %v1877 = vadd.f32 %v1744, %v1856
    %v1878 = vadd.f32 %v1745, %v1860
    %v1879 = vadd.f32 %v1746, %v1862
    %v1880 = vadd.f32 %v1747, %v1866
    %v1881 = vadd.f32 %v1748, %v1868
    %v1882 = vadd.f32 %v1749, %v1872
    %v1883 = vadd.f32 %v1750, %v1874
    %v1884 = vld [vmem:[%s1367 + $0x4] sm:$0xff]
    %v1885 = vld [vmem:[%s1367 + $0xc] sm:$0xff]
    %v1886 = vld [vmem:[%s1367 + $0x14] sm:$0xff]
    %v1887 = vld [vmem:[%s1367 + $0x1c] sm:$0xf]
    %v1888 = vld [vmem:[%s589] sm:$0xff]
    %v1889 = vld [vmem:[%s589 + $0x8] sm:$0xff]
    %v1890 = vld [vmem:[%s589 + $0x10] sm:$0xff]
    %v1891 = vld [vmem:[%s589 + $0x18] sm:$0xff]
    %v1892 = vld [vmem:[%s589 + $0x20] sm:$0xff]
    %v1893 = vld [vmem:[%s589 + $0x28] sm:$0xff]
    %v1894 = vld [vmem:[%s589 + $0x30] sm:$0xff]
    %v1895 = vld [vmem:[%s589 + $0x38] sm:$0xff]
    %v1896 = vld [vmem:[%s589 + $0x40] sm:$0xff]
    %v1897 = vld [vmem:[%s589 + $0x48] sm:$0xff]
    %v1898 = vld [vmem:[%s589 + $0x50] sm:$0xff]
    %v1899 = vld [vmem:[%s589 + $0x58] sm:$0xff]
    %v1900 = vld [vmem:[%s589 + $0x60] sm:$0xff]
    %v1901 = vld [vmem:[%s589 + $0x68] sm:$0xff]
    %v1902 = vld [vmem:[%s589 + $0x70] sm:$0xff]
    %v1903 = vld [vmem:[%s589 + $0x78] sm:$0xff]
    %v1904 = vld [vmem:[%s589 + $0x80] sm:$0xff]
    %v1905 = vld [vmem:[%s589 + $0x88] sm:$0xff]
    %v1906 = vld [vmem:[%s589 + $0x90] sm:$0xff]
    %v1907 = vld [vmem:[%s589 + $0x98] sm:$0xff]
    %v1908 = vld [vmem:[%s589 + $0xa0] sm:$0xff]
    %v1909 = vld [vmem:[%s589 + $0xa8] sm:$0xff]
    %v1910 = vld [vmem:[%s589 + $0xb0] sm:$0xff]
    %v1911 = vld [vmem:[%s589 + $0xb8] sm:$0xff]
    %v1912 = vld [vmem:[%s589 + $0xc0] sm:$0xff]
    %v1913 = vld [vmem:[%s589 + $0xc8] sm:$0xff]
    %v1914 = vld [vmem:[%s589 + $0xd0] sm:$0xff]
    %v1915 = vld [vmem:[%s589 + $0xd8] sm:$0xff]
    %v1916 = vld [vmem:[%s589 + $0xe0] sm:$0xff]
    %v1917 = vld [vmem:[%s589 + $0xe8] sm:$0xff]
    %v1918 = vld [vmem:[%s589 + $0xf0] sm:$0xff]
    %v1919 = vld [vmem:[%s589 + $0xf8] sm:$0xff]
    %1920 = vmatprep.subr.mxu0 %v1889
    %1921 = vmatpush1.msra.mxu0 %v1888
    %1922 = vmatprep.subr.mxu0 %v1891
    %1923 = vmatpush1.msra.mxu0 %v1890
    %1924 = vmatprep.subr.mxu0 %v1893
    %1925 = vmatpush1.msra.mxu0 %v1892
    %1926 = vmatprep.subr.mxu0 %v1895
    %1927 = vmatpush1.msra.mxu0 %v1894
    %1928 = vmatprep.subr.mxu0 %v1897
    %1929 = vmatpush1.msra.mxu0 %v1896
    %1930 = vmatprep.subr.mxu0 %v1899
    %1931 = vmatpush1.msra.mxu0 %v1898
    %1932 = vmatprep.subr.mxu0 %v1901
    %1933 = vmatpush1.msra.mxu0 %v1900
    %1934 = vmatprep.subr.mxu0 %v1903
    %1935 = vmatpush1.msra.mxu0 %v1902
    %1936 = vmatprep.subr.mxu0 %v1905
    %1937 = vmatpush1.msra.mxu0 %v1904
    %1938 = vmatprep.subr.mxu0 %v1907
    %1939 = vmatpush1.msra.mxu0 %v1906
    %1940 = vmatprep.subr.mxu0 %v1909
    %1941 = vmatpush1.msra.mxu0 %v1908
    %1942 = vmatprep.subr.mxu0 %v1911
    %1943 = vmatpush1.msra.mxu0 %v1910
    %1944 = vmatprep.subr.mxu0 %v1913
    %1945 = vmatpush1.msra.mxu0 %v1912
    %1946 = vmatprep.subr.mxu0 %v1915
    %1947 = vmatpush1.msra.mxu0 %v1914
    %1948 = vmatprep.subr.mxu0 %v1917
    %1949 = vmatpush1.msra.mxu0 %v1916
    %1950 = vmatprep.subr.mxu0 %v1919
    %1951 = vmatpush1.msra.mxu0 %v1918
    %1952 = vmatprep.subr.mxu0 0.0
    %1953 = vmatpush1.msra.mxu0 0.0
    %1954 = vmatprep.subr.mxu0 0.0
    %1955 = vmatpush1.msra.mxu0 0.0
    %1956 = vmatprep.subr.mxu0 0.0
    %1957 = vmatpush1.msra.mxu0 0.0
    %1958 = vmatprep.subr.mxu0 0.0
    %1959 = vmatpush1.msra.mxu0 0.0
    %1960 = vmatprep.subr.mxu0 0.0
    %1961 = vmatpush1.msra.mxu0 0.0
    %1962 = vmatprep.subr.mxu0 0.0
    %1963 = vmatpush1.msra.mxu0 0.0
    %1964 = vmatprep.subr.mxu0 0.0
    %1965 = vmatpush1.msra.mxu0 0.0
    %1966 = vmatprep.subr.mxu0 0.0
    %1967 = vmatpush1.msra.mxu0 0.0
    %1968 = vmatprep.subr.mxu0 0.0
    %1969 = vmatpush1.msra.mxu0 0.0
    %1970 = vmatprep.subr.mxu0 0.0
    %1971 = vmatpush1.msra.mxu0 0.0
    %1972 = vmatprep.subr.mxu0 0.0
    %1973 = vmatpush1.msra.mxu0 0.0
    %1974 = vmatprep.subr.mxu0 0.0
    %1975 = vmatpush1.msra.mxu0 0.0
    %1976 = vmatprep.subr.mxu0 0.0
    %1977 = vmatpush1.msra.mxu0 0.0
    %1978 = vmatprep.subr.mxu0 0.0
    %1979 = vmatpush1.msra.mxu0 0.0
    %1980 = vmatprep.subr.mxu0 0.0
    %1981 = vmatpush1.msra.mxu0 0.0
    %1982 = vmatprep.subr.mxu0 0.0
    %1983 = vmatpush1.msra.mxu0 0.0
    %1984 = vmatprep.mubr.f32.mxu0 0.0
    %1985 = vmatmul.mubr.f32.gmra.mrb[0].mxu0 %v1884
    %v1986 = vpop.f32.mrb[0].mxu0
    %v1987 = vadd.f32 0.0, %v1986
    %v1988 = vpop.f32.mrb[0].mxu0
    %v1989 = vadd.f32 0.0, %v1988
    %1990 = vmatprep.mubr.f32.mxu0 0.0
    %1991 = vmatmul.mubr.f32.gmra.mrb[0].mxu0 %v1885
    %v1992 = vpop.f32.mrb[0].mxu0
    %v1993 = vadd.f32 0.0, %v1992
    %v1994 = vpop.f32.mrb[0].mxu0
    %v1995 = vadd.f32 0.0, %v1994
    %1996 = vmatprep.mubr.f32.mxu0 0.0
    %1997 = vmatmul.mubr.f32.gmra.mrb[0].mxu0 %v1886
    %v1998 = vpop.f32.mrb[0].mxu0
    %v1999 = vadd.f32 0.0, %v1998
    %v2000 = vpop.f32.mrb[0].mxu0
    %v2001 = vadd.f32 0.0, %v2000
    %2002 = vmatprep.mubr.f32.mxu0 0.0
    %2003 = vmatmul.mubr.f32.gmra.mrb[0].mxu0 %v1887
    %v2004 = vpop.f32.mrb[0].mxu0
    %v2005 = vadd.f32 0.0, %v2004
    %v2006 = vpop.f32.mrb[0].mxu0
    %v2007 = vadd.f32 0.0, %v2006
    %2008 = vdwg.mxu0
    %v2009 = vadd.f32 %v1876, %v1987
    %v2010 = vadd.f32 %v1877, %v1989
    %v2011 = vadd.f32 %v1878, %v1993
    %v2012 = vadd.f32 %v1879, %v1995
    %v2013 = vadd.f32 %v1880, %v1999
    %v2014 = vadd.f32 %v1881, %v2001
    %v2015 = vadd.f32 %v1882, %v2005
    %v2016 = vadd.f32 %v1883, %v2007
    %v2017 = vmax.f32 %v2009, %v2010
    %v2018 = vmax.f32 %v2011, %v2012
    %v2019 = vmax.f32 %v2013, %v2014
    %v2020 = vmax.f32 %v2015, %v2016
    %v2021 = vadd.f32 %v2017, %v726
    %v2022 = vadd.f32 %v2018, %v726
    %v2023 = vadd.f32 %v2019, %v726
    %v2024 = vadd.f32 %v2020, %v726
    %v2025 = vmax.f32 %v2021, 0.0
    %v2026 = vmax.f32 %v2022, 0.0
    %v2027 = vmax.f32 %v2023, 0.0
    %v2028 = vmax.f32 %v2024, 0.0
    %2029 = vst [vmem:[#allocation2] sm:$0xff] %v2025
    %2030 = vst [vmem:[#allocation2 + $0x8] sm:$0xff] %v2026
    %2031 = vst [vmem:[#allocation2 + $0x10] sm:$0xff] %v2027
    %2032 = vst [vmem:[#allocation2 + $0x18] sm:$0xf] %v2028
    %v2033 = vld [vmem:[#allocation2] ss:$2 sm:$0xff]
    %v2034 = vld [vmem:[%s740] ss:$2 sm:$0x3f]
    %v2035 = vld [vmem:[%s742] ss:$2 sm:$0xff]
    %v2036 = vld [vmem:[%s744] ss:$2 sm:$0x3f]
    %v2037 = vmax.f32 %v2033, %v2035
    %v2038 = vmax.f32 %v2034, %v2036
    %2039 = vst [vmem:[#allocation3] sm:$0xff] %v2037
    %2040 = vst [vmem:[#allocation3 + $0x8] sm:$0x3f] %v2038
    %v2041 = vld [vmem:[#allocation3] sm:$0xff]
    %v2042 = vld [vmem:[#allocation3 + $0x8] sm:$0x3]
    %v2043 = vld [vmem:[#allocation6] sm:$0xff]
    %v2044 = vld [vmem:[#allocation6 + $0x8] sm:$0xff]
    %v2045 = vld [vmem:[#allocation6 + $0x10] sm:$0xff]
    %v2046 = vld [vmem:[#allocation6 + $0x18] sm:$0xff]
    %v2047 = vld [vmem:[#allocation6 + $0x20] sm:$0xff]
    %v2048 = vld [vmem:[#allocation6 + $0x28] sm:$0xff]
    %v2049 = vld [vmem:[#allocation6 + $0x30] sm:$0xff]
    %v2050 = vld [vmem:[#allocation6 + $0x38] sm:$0xff]
    %v2051 = vld [vmem:[#allocation6 + $0x40] sm:$0xff]
    %v2052 = vld [vmem:[#allocation6 + $0x48] sm:$0xff]
    %v2053 = vld [vmem:[#allocation6 + $0x50] sm:$0xff]
    %v2054 = vld [vmem:[#allocation6 + $0x58] sm:$0xff]
    %v2055 = vld [vmem:[#allocation6 + $0x60] sm:$0xff]
    %v2056 = vld [vmem:[#allocation6 + $0x68] sm:$0xff]
    %v2057 = vld [vmem:[#allocation6 + $0x70] sm:$0xff]
    %v2058 = vld [vmem:[#allocation6 + $0x78] sm:$0xff]
    %v2059 = vld [vmem:[#allocation6 + $0x80] sm:$0xff]
    %v2060 = vld [vmem:[#allocation6 + $0x88] sm:$0xff]
    %v2061 = vld [vmem:[#allocation6 + $0x90] sm:$0xff]
    %v2062 = vld [vmem:[#allocation6 + $0x98] sm:$0xff]
    %v2063 = vld [vmem:[#allocation6 + $0xa0] sm:$0xff]
    %v2064 = vld [vmem:[#allocation6 + $0xa8] sm:$0xff]
    %v2065 = vld [vmem:[#allocation6 + $0xb0] sm:$0xff]
    %v2066 = vld [vmem:[#allocation6 + $0xb8] sm:$0xff]
    %v2067 = vld [vmem:[#allocation6 + $0xc0] sm:$0xff]
    %v2068 = vld [vmem:[#allocation6 + $0xc8] sm:$0xff]
    %v2069 = vld [vmem:[#allocation6 + $0xd0] sm:$0xff]
    %v2070 = vld [vmem:[#allocation6 + $0xd8] sm:$0xff]
    %v2071 = vld [vmem:[#allocation6 + $0xe0] sm:$0xff]
    %v2072 = vld [vmem:[#allocation6 + $0xe8] sm:$0xff]
    %v2073 = vld [vmem:[#allocation6 + $0xf0] sm:$0xff]
    %v2074 = vld [vmem:[#allocation6 + $0xf8] sm:$0xff]
    %v2075 = vld [vmem:[#allocation3 + $0x1] sm:$0xff]
    %v2076 = vld [vmem:[#allocation3 + $0x9] sm:$0x3]
    %v2077 = vld [vmem:[%s786] sm:$0xff]
    %v2078 = vld [vmem:[%s786 + $0x8] sm:$0xff]
    %v2079 = vld [vmem:[%s786 + $0x10] sm:$0xff]
    %v2080 = vld [vmem:[%s786 + $0x18] sm:$0xff]
    %v2081 = vld [vmem:[%s786 + $0x20] sm:$0xff]
    %v2082 = vld [vmem:[%s786 + $0x28] sm:$0xff]
    %v2083 = vld [vmem:[%s786 + $0x30] sm:$0xff]
    %v2084 = vld [vmem:[%s786 + $0x38] sm:$0xff]
    %v2085 = vld [vmem:[%s786 + $0x40] sm:$0xff]
    %v2086 = vld [vmem:[%s786 + $0x48] sm:$0xff]
    %v2087 = vld [vmem:[%s786 + $0x50] sm:$0xff]
    %v2088 = vld [vmem:[%s786 + $0x58] sm:$0xff]
    %v2089 = vld [vmem:[%s786 + $0x60] sm:$0xff]
    %v2090 = vld [vmem:[%s786 + $0x68] sm:$0xff]
    %v2091 = vld [vmem:[%s786 + $0x70] sm:$0xff]
    %v2092 = vld [vmem:[%s786 + $0x78] sm:$0xff]
    %v2093 = vld [vmem:[%s786 + $0x80] sm:$0xff]
    %v2094 = vld [vmem:[%s786 + $0x88] sm:$0xff]
    %v2095 = vld [vmem:[%s786 + $0x90] sm:$0xff]
    %v2096 = vld [vmem:[%s786 + $0x98] sm:$0xff]
    %v2097 = vld [vmem:[%s786 + $0xa0] sm:$0xff]
    %v2098 = vld [vmem:[%s786 + $0xa8] sm:$0xff]
    %v2099 = vld [vmem:[%s786 + $0xb0] sm:$0xff]
    %v2100 = vld [vmem:[%s786 + $0xb8] sm:$0xff]
    %v2101 = vld [vmem:[%s786 + $0xc0] sm:$0xff]
    %v2102 = vld [vmem:[%s786 + $0xc8] sm:$0xff]
    %v2103 = vld [vmem:[%s786 + $0xd0] sm:$0xff]
    %v2104 = vld [vmem:[%s786 + $0xd8] sm:$0xff]
    %v2105 = vld [vmem:[%s786 + $0xe0] sm:$0xff]
    %v2106 = vld [vmem:[%s786 + $0xe8] sm:$0xff]
    %v2107 = vld [vmem:[%s786 + $0xf0] sm:$0xff]
    %v2108 = vld [vmem:[%s786 + $0xf8] sm:$0xff]
    %2109 = vmatprep.subr.mxu0 %v2078
    %2110 = vmatpush1.msra.mxu0 %v2077
    %2111 = vmatprep.subr.mxu0 %v2080
    %2112 = vmatpush1.msra.mxu0 %v2079
    %2113 = vmatprep.subr.mxu0 %v2082
    %2114 = vmatpush1.msra.mxu0 %v2081
    %2115 = vmatprep.subr.mxu0 %v2084
    %2116 = vmatpush1.msra.mxu0 %v2083
    %2117 = vmatprep.subr.mxu0 %v2086
    %2118 = vmatpush1.msra.mxu0 %v2085
    %2119 = vmatprep.subr.mxu0 %v2088
    %2120 = vmatpush1.msra.mxu0 %v2087
    %2121 = vmatprep.subr.mxu0 %v2090
    %2122 = vmatpush1.msra.mxu0 %v2089
    %2123 = vmatprep.subr.mxu0 %v2092
    %2124 = vmatpush1.msra.mxu0 %v2091
    %2125 = vmatprep.subr.mxu0 %v2094
    %2126 = vmatpush1.msra.mxu0 %v2093
    %2127 = vmatprep.subr.mxu0 %v2096
    %2128 = vmatpush1.msra.mxu0 %v2095
    %2129 = vmatprep.subr.mxu0 %v2098
    %2130 = vmatpush1.msra.mxu0 %v2097
    %2131 = vmatprep.subr.mxu0 %v2100
    %2132 = vmatpush1.msra.mxu0 %v2099
    %2133 = vmatprep.subr.mxu0 %v2102
    %2134 = vmatpush1.msra.mxu0 %v2101
    %2135 = vmatprep.subr.mxu0 %v2104
    %2136 = vmatpush1.msra.mxu0 %v2103
    %2137 = vmatprep.subr.mxu0 %v2106
    %2138 = vmatpush1.msra.mxu0 %v2105
    %2139 = vmatprep.subr.mxu0 %v2108
    %2140 = vmatpush1.msra.mxu0 %v2107
    %2141 = vmatprep.subr.mxu0 0.0
    %2142 = vmatpush1.msra.mxu0 0.0
    %2143 = vmatprep.subr.mxu0 0.0
    %2144 = vmatpush1.msra.mxu0 0.0
    %2145 = vmatprep.subr.mxu0 0.0
    %2146 = vmatpush1.msra.mxu0 0.0
    %2147 = vmatprep.subr.mxu0 0.0
    %2148 = vmatpush1.msra.mxu0 0.0
    %2149 = vmatprep.subr.mxu0 0.0
    %2150 = vmatpush1.msra.mxu0 0.0
    %2151 = vmatprep.subr.mxu0 0.0
    %2152 = vmatpush1.msra.mxu0 0.0
    %2153 = vmatprep.subr.mxu0 0.0
    %2154 = vmatpush1.msra.mxu0 0.0
    %2155 = vmatprep.subr.mxu0 0.0
    %2156 = vmatpush1.msra.mxu0 0.0
    %2157 = vmatprep.subr.mxu0 0.0
    %2158 = vmatpush1.msra.mxu0 0.0
    %2159 = vmatprep.subr.mxu0 0.0
    %2160 = vmatpush1.msra.mxu0 0.0
    %2161 = vmatprep.subr.mxu0 0.0
    %2162 = vmatpush1.msra.mxu0 0.0
    %2163 = vmatprep.subr.mxu0 0.0
    %2164 = vmatpush1.msra.mxu0 0.0
    %2165 = vmatprep.subr.mxu0 0.0
    %2166 = vmatpush1.msra.mxu0 0.0
    %2167 = vmatprep.subr.mxu0 0.0
    %2168 = vmatpush1.msra.mxu0 0.0
    %2169 = vmatprep.subr.mxu0 0.0
    %2170 = vmatpush1.msra.mxu0 0.0
    %2171 = vmatprep.subr.mxu0 0.0
    %2172 = vmatpush1.msra.mxu0 0.0
    %2173 = vmatprep.mubr.f32.mxu0 0.0
    %2174 = vmatmul.mubr.f32.gmra.mrb[0].mxu0 %v2075
    %v2175 = vpop.f32.mrb[0].mxu0
    %v2176 = vadd.f32 0.0, %v2175
    %v2177 = vpop.f32.mrb[0].mxu0
    %v2178 = vadd.f32 0.0, %v2177
    %2179 = vmatprep.mubr.f32.mxu0 0.0
    %2180 = vmatmul.mubr.f32.gmra.mrb[0].mxu0 %v2076
    %v2181 = vpop.f32.mrb[0].mxu0
    %v2182 = vadd.f32 0.0, %v2181
    %v2183 = vpop.f32.mrb[0].mxu0
    %v2184 = vadd.f32 0.0, %v2183
    %2185 = vdwg.mxu0
    %2186 = vmatprep.subr.mxu0 %v2044
    %2187 = vmatpush1.msra.mxu0 %v2043
    %2188 = vmatprep.subr.mxu0 %v2046
    %2189 = vmatpush1.msra.mxu0 %v2045
    %2190 = vmatprep.subr.mxu0 %v2048
    %2191 = vmatpush1.msra.mxu0 %v2047
    %2192 = vmatprep.subr.mxu0 %v2050
    %2193 = vmatpush1.msra.mxu0 %v2049
    %2194 = vmatprep.subr.mxu0 %v2052
    %2195 = vmatpush1.msra.mxu0 %v2051
    %2196 = vmatprep.subr.mxu0 %v2054
    %2197 = vmatpush1.msra.mxu0 %v2053
    %2198 = vmatprep.subr.mxu0 %v2056
    %2199 = vmatpush1.msra.mxu0 %v2055
    %2200 = vmatprep.subr.mxu0 %v2058
    %2201 = vmatpush1.msra.mxu0 %v2057
    %2202 = vmatprep.subr.mxu0 %v2060
    %2203 = vmatpush1.msra.mxu0 %v2059
    %2204 = vmatprep.subr.mxu0 %v2062
    %2205 = vmatpush1.msra.mxu0 %v2061
    %2206 = vmatprep.subr.mxu0 %v2064
    %2207 = vmatpush1.msra.mxu0 %v2063
    %2208 = vmatprep.subr.mxu0 %v2066
    %2209 = vmatpush1.msra.mxu0 %v2065
    %2210 = vmatprep.subr.mxu0 %v2068
    %2211 = vmatpush1.msra.mxu0 %v2067
    %2212 = vmatprep.subr.mxu0 %v2070
    %2213 = vmatpush1.msra.mxu0 %v2069
    %2214 = vmatprep.subr.mxu0 %v2072
    %2215 = vmatpush1.msra.mxu0 %v2071
    %2216 = vmatprep.subr.mxu0 %v2074
    %2217 = vmatpush1.msra.mxu0 %v2073
    %2218 = vmatprep.subr.mxu0 0.0
    %2219 = vmatpush1.msra.mxu0 0.0
    %2220 = vmatprep.subr.mxu0 0.0
    %2221 = vmatpush1.msra.mxu0 0.0
    %2222 = vmatprep.subr.mxu0 0.0
    %2223 = vmatpush1.msra.mxu0 0.0
    %2224 = vmatprep.subr.mxu0 0.0
    %2225 = vmatpush1.msra.mxu0 0.0
    %2226 = vmatprep.subr.mxu0 0.0
    %2227 = vmatpush1.msra.mxu0 0.0
    %2228 = vmatprep.subr.mxu0 0.0
    %2229 = vmatpush1.msra.mxu0 0.0
    %2230 = vmatprep.subr.mxu0 0.0
    %2231 = vmatpush1.msra.mxu0 0.0
    %2232 = vmatprep.subr.mxu0 0.0
    %2233 = vmatpush1.msra.mxu0 0.0
    %2234 = vmatprep.subr.mxu0 0.0
    %2235 = vmatpush1.msra.mxu0 0.0
    %2236 = vmatprep.subr.mxu0 0.0
    %2237 = vmatpush1.msra.mxu0 0.0
    %2238 = vmatprep.subr.mxu0 0.0
    %2239 = vmatpush1.msra.mxu0 0.0
    %2240 = vmatprep.subr.mxu0 0.0
    %2241 = vmatpush1.msra.mxu0 0.0
    %2242 = vmatprep.subr.mxu0 0.0
    %2243 = vmatpush1.msra.mxu0 0.0
    %2244 = vmatprep.subr.mxu0 0.0
    %2245 = vmatpush1.msra.mxu0 0.0
    %2246 = vmatprep.subr.mxu0 0.0
    %2247 = vmatpush1.msra.mxu0 0.0
    %2248 = vmatprep.subr.mxu0 0.0
    %2249 = vmatpush1.msra.mxu0 0.0
    %2250 = vmatprep.mubr.f32.mxu0 0.0
    %2251 = vmatmul.mubr.f32.gmra.mrb[0].mxu0 %v2041
    %v2252 = vpop.f32.mrb[0].mxu0
    %v2253 = vadd.f32 %v2176, %v2252
    %v2254 = vpop.f32.mrb[0].mxu0
    %v2255 = vadd.f32 %v2178, %v2254
    %2256 = vmatprep.mubr.f32.mxu0 0.0
    %2257 = vmatmul.mubr.f32.gmra.mrb[0].mxu0 %v2042
    %v2258 = vpop.f32.mrb[0].mxu0
    %v2259 = vadd.f32 %v2182, %v2258
    %v2260 = vpop.f32.mrb[0].mxu0
    %v2261 = vadd.f32 %v2184, %v2260
    %2262 = vdwg.mxu0
    %v2263 = vld [vmem:[#allocation3 + $0x2] sm:$0xff]
    %v2264 = vld [vmem:[#allocation3 + $0xa] sm:$0x3]
    %v2265 = vld [vmem:[%s975] sm:$0xff]
    %v2266 = vld [vmem:[%s975 + $0x8] sm:$0xff]
    %v2267 = vld [vmem:[%s975 + $0x10] sm:$0xff]
    %v2268 = vld [vmem:[%s975 + $0x18] sm:$0xff]
    %v2269 = vld [vmem:[%s975 + $0x20] sm:$0xff]
    %v2270 = vld [vmem:[%s975 + $0x28] sm:$0xff]
    %v2271 = vld [vmem:[%s975 + $0x30] sm:$0xff]
    %v2272 = vld [vmem:[%s975 + $0x38] sm:$0xff]
    %v2273 = vld [vmem:[%s975 + $0x40] sm:$0xff]
    %v2274 = vld [vmem:[%s975 + $0x48] sm:$0xff]
    %v2275 = vld [vmem:[%s975 + $0x50] sm:$0xff]
    %v2276 = vld [vmem:[%s975 + $0x58] sm:$0xff]
    %v2277 = vld [vmem:[%s975 + $0x60] sm:$0xff]
    %v2278 = vld [vmem:[%s975 + $0x68] sm:$0xff]
    %v2279 = vld [vmem:[%s975 + $0x70] sm:$0xff]
    %v2280 = vld [vmem:[%s975 + $0x78] sm:$0xff]
    %v2281 = vld [vmem:[%s975 + $0x80] sm:$0xff]
    %v2282 = vld [vmem:[%s975 + $0x88] sm:$0xff]
    %v2283 = vld [vmem:[%s975 + $0x90] sm:$0xff]
    %v2284 = vld [vmem:[%s975 + $0x98] sm:$0xff]
    %v2285 = vld [vmem:[%s975 + $0xa0] sm:$0xff]
    %v2286 = vld [vmem:[%s975 + $0xa8] sm:$0xff]
    %v2287 = vld [vmem:[%s975 + $0xb0] sm:$0xff]
    %v2288 = vld [vmem:[%s975 + $0xb8] sm:$0xff]
    %v2289 = vld [vmem:[%s975 + $0xc0] sm:$0xff]
    %v2290 = vld [vmem:[%s975 + $0xc8] sm:$0xff]
    %v2291 = vld [vmem:[%s975 + $0xd0] sm:$0xff]
    %v2292 = vld [vmem:[%s975 + $0xd8] sm:$0xff]
    %v2293 = vld [vmem:[%s975 + $0xe0] sm:$0xff]
    %v2294 = vld [vmem:[%s975 + $0xe8] sm:$0xff]
    %v2295 = vld [vmem:[%s975 + $0xf0] sm:$0xff]
    %v2296 = vld [vmem:[%s975 + $0xf8] sm:$0xff]
    %2297 = vmatprep.subr.mxu0 %v2266
    %2298 = vmatpush1.msra.mxu0 %v2265
    %2299 = vmatprep.subr.mxu0 %v2268
    %2300 = vmatpush1.msra.mxu0 %v2267
    %2301 = vmatprep.subr.mxu0 %v2270
    %2302 = vmatpush1.msra.mxu0 %v2269
    %2303 = vmatprep.subr.mxu0 %v2272
    %2304 = vmatpush1.msra.mxu0 %v2271
    %2305 = vmatprep.subr.mxu0 %v2274
    %2306 = vmatpush1.msra.mxu0 %v2273
    %2307 = vmatprep.subr.mxu0 %v2276
    %2308 = vmatpush1.msra.mxu0 %v2275
    %2309 = vmatprep.subr.mxu0 %v2278
    %2310 = vmatpush1.msra.mxu0 %v2277
    %2311 = vmatprep.subr.mxu0 %v2280
    %2312 = vmatpush1.msra.mxu0 %v2279
    %2313 = vmatprep.subr.mxu0 %v2282
    %2314 = vmatpush1.msra.mxu0 %v2281
    %2315 = vmatprep.subr.mxu0 %v2284
    %2316 = vmatpush1.msra.mxu0 %v2283
    %2317 = vmatprep.subr.mxu0 %v2286
    %2318 = vmatpush1.msra.mxu0 %v2285
    %2319 = vmatprep.subr.mxu0 %v2288
    %2320 = vmatpush1.msra.mxu0 %v2287
    %2321 = vmatprep.subr.mxu0 %v2290
    %2322 = vmatpush1.msra.mxu0 %v2289
    %2323 = vmatprep.subr.mxu0 %v2292
    %2324 = vmatpush1.msra.mxu0 %v2291
    %2325 = vmatprep.subr.mxu0 %v2294
    %2326 = vmatpush1.msra.mxu0 %v2293
    %2327 = vmatprep.subr.mxu0 %v2296
    %2328 = vmatpush1.msra.mxu0 %v2295
    %2329 = vmatprep.subr.mxu0 0.0
    %2330 = vmatpush1.msra.mxu0 0.0
    %2331 = vmatprep.subr.mxu0 0.0
    %2332 = vmatpush1.msra.mxu0 0.0
    %2333 = vmatprep.subr.mxu0 0.0
    %2334 = vmatpush1.msra.mxu0 0.0
    %2335 = vmatprep.subr.mxu0 0.0
    %2336 = vmatpush1.msra.mxu0 0.0
    %2337 = vmatprep.subr.mxu0 0.0
    %2338 = vmatpush1.msra.mxu0 0.0
    %2339 = vmatprep.subr.mxu0 0.0
    %2340 = vmatpush1.msra.mxu0 0.0
    %2341 = vmatprep.subr.mxu0 0.0
    %2342 = vmatpush1.msra.mxu0 0.0
    %2343 = vmatprep.subr.mxu0 0.0
    %2344 = vmatpush1.msra.mxu0 0.0
    %2345 = vmatprep.subr.mxu0 0.0
    %2346 = vmatpush1.msra.mxu0 0.0
    %2347 = vmatprep.subr.mxu0 0.0
    %2348 = vmatpush1.msra.mxu0 0.0
    %2349 = vmatprep.subr.mxu0 0.0
    %2350 = vmatpush1.msra.mxu0 0.0
    %2351 = vmatprep.subr.mxu0 0.0
    %2352 = vmatpush1.msra.mxu0 0.0
    %2353 = vmatprep.subr.mxu0 0.0
    %2354 = vmatpush1.msra.mxu0 0.0
    %2355 = vmatprep.subr.mxu0 0.0
    %2356 = vmatpush1.msra.mxu0 0.0
    %2357 = vmatprep.subr.mxu0 0.0
    %2358 = vmatpush1.msra.mxu0 0.0
    %2359 = vmatprep.subr.mxu0 0.0
    %2360 = vmatpush1.msra.mxu0 0.0
    %2361 = vmatprep.mubr.f32.mxu0 0.0
    %2362 = vmatmul.mubr.f32.gmra.mrb[0].mxu0 %v2263
    %v2363 = vpop.f32.mrb[0].mxu0
    %v2364 = vadd.f32 0.0, %v2363
    %v2365 = vpop.f32.mrb[0].mxu0
    %v2366 = vadd.f32 0.0, %v2365
    %2367 = vmatprep.mubr.f32.mxu0 0.0
    %2368 = vmatmul.mubr.f32.gmra.mrb[0].mxu0 %v2264
    %v2369 = vpop.f32.mrb[0].mxu0
    %v2370 = vadd.f32 0.0, %v2369
    %v2371 = vpop.f32.mrb[0].mxu0
    %v2372 = vadd.f32 0.0, %v2371
    %2373 = vdwg.mxu0
    %v2374 = vadd.f32 %v2253, %v2364
    %v2375 = vadd.f32 %v2255, %v2366
    %v2376 = vadd.f32 %v2259, %v2370
    %v2377 = vadd.f32 %v2261, %v2372
    %v2378 = vld [vmem:[#allocation3 + $0x3] sm:$0xff]
    %v2379 = vld [vmem:[#allocation3 + $0xb] sm:$0x3]
    %v2380 = vld [vmem:[%s1091] sm:$0xff]
    %v2381 = vld [vmem:[%s1091 + $0x8] sm:$0xff]
    %v2382 = vld [vmem:[%s1091 + $0x10] sm:$0xff]
    %v2383 = vld [vmem:[%s1091 + $0x18] sm:$0xff]
    %v2384 = vld [vmem:[%s1091 + $0x20] sm:$0xff]
    %v2385 = vld [vmem:[%s1091 + $0x28] sm:$0xff]
    %v2386 = vld [vmem:[%s1091 + $0x30] sm:$0xff]
    %v2387 = vld [vmem:[%s1091 + $0x38] sm:$0xff]
    %v2388 = vld [vmem:[%s1091 + $0x40] sm:$0xff]
    %v2389 = vld [vmem:[%s1091 + $0x48] sm:$0xff]
    %v2390 = vld [vmem:[%s1091 + $0x50] sm:$0xff]
    %v2391 = vld [vmem:[%s1091 + $0x58] sm:$0xff]
    %v2392 = vld [vmem:[%s1091 + $0x60] sm:$0xff]
    %v2393 = vld [vmem:[%s1091 + $0x68] sm:$0xff]
    %v2394 = vld [vmem:[%s1091 + $0x70] sm:$0xff]
    %v2395 = vld [vmem:[%s1091 + $0x78] sm:$0xff]
    %v2396 = vld [vmem:[%s1091 + $0x80] sm:$0xff]
    %v2397 = vld [vmem:[%s1091 + $0x88] sm:$0xff]
    %v2398 = vld [vmem:[%s1091 + $0x90] sm:$0xff]
    %v2399 = vld [vmem:[%s1091 + $0x98] sm:$0xff]
    %v2400 = vld [vmem:[%s1091 + $0xa0] sm:$0xff]
    %v2401 = vld [vmem:[%s1091 + $0xa8] sm:$0xff]
    %v2402 = vld [vmem:[%s1091 + $0xb0] sm:$0xff]
    %v2403 = vld [vmem:[%s1091 + $0xb8] sm:$0xff]
    %v2404 = vld [vmem:[%s1091 + $0xc0] sm:$0xff]
    %v2405 = vld [vmem:[%s1091 + $0xc8] sm:$0xff]
    %v2406 = vld [vmem:[%s1091 + $0xd0] sm:$0xff]
    %v2407 = vld [vmem:[%s1091 + $0xd8] sm:$0xff]
    %v2408 = vld [vmem:[%s1091 + $0xe0] sm:$0xff]
    %v2409 = vld [vmem:[%s1091 + $0xe8] sm:$0xff]
    %v2410 = vld [vmem:[%s1091 + $0xf0] sm:$0xff]
    %v2411 = vld [vmem:[%s1091 + $0xf8] sm:$0xff]
    %2412 = vmatprep.subr.mxu0 %v2381
    %2413 = vmatpush1.msra.mxu0 %v2380
    %2414 = vmatprep.subr.mxu0 %v2383
    %2415 = vmatpush1.msra.mxu0 %v2382
    %2416 = vmatprep.subr.mxu0 %v2385
    %2417 = vmatpush1.msra.mxu0 %v2384
    %2418 = vmatprep.subr.mxu0 %v2387
    %2419 = vmatpush1.msra.mxu0 %v2386
    %2420 = vmatprep.subr.mxu0 %v2389
    %2421 = vmatpush1.msra.mxu0 %v2388
    %2422 = vmatprep.subr.mxu0 %v2391
    %2423 = vmatpush1.msra.mxu0 %v2390
    %2424 = vmatprep.subr.mxu0 %v2393
    %2425 = vmatpush1.msra.mxu0 %v2392
    %2426 = vmatprep.subr.mxu0 %v2395
    %2427 = vmatpush1.msra.mxu0 %v2394
    %2428 = vmatprep.subr.mxu0 %v2397
    %2429 = vmatpush1.msra.mxu0 %v2396
    %2430 = vmatprep.subr.mxu0 %v2399
    %2431 = vmatpush1.msra.mxu0 %v2398
    %2432 = vmatprep.subr.mxu0 %v2401
    %2433 = vmatpush1.msra.mxu0 %v2400
    %2434 = vmatprep.subr.mxu0 %v2403
    %2435 = vmatpush1.msra.mxu0 %v2402
    %2436 = vmatprep.subr.mxu0 %v2405
    %2437 = vmatpush1.msra.mxu0 %v2404
    %2438 = vmatprep.subr.mxu0 %v2407
    %2439 = vmatpush1.msra.mxu0 %v2406
    %2440 = vmatprep.subr.mxu0 %v2409
    %2441 = vmatpush1.msra.mxu0 %v2408
    %2442 = vmatprep.subr.mxu0 %v2411
    %2443 = vmatpush1.msra.mxu0 %v2410
    %2444 = vmatprep.subr.mxu0 0.0
    %2445 = vmatpush1.msra.mxu0 0.0
    %2446 = vmatprep.subr.mxu0 0.0
    %2447 = vmatpush1.msra.mxu0 0.0
    %2448 = vmatprep.subr.mxu0 0.0
    %2449 = vmatpush1.msra.mxu0 0.0
    %2450 = vmatprep.subr.mxu0 0.0
    %2451 = vmatpush1.msra.mxu0 0.0
    %2452 = vmatprep.subr.mxu0 0.0
    %2453 = vmatpush1.msra.mxu0 0.0
    %2454 = vmatprep.subr.mxu0 0.0
    %2455 = vmatpush1.msra.mxu0 0.0
    %2456 = vmatprep.subr.mxu0 0.0
    %2457 = vmatpush1.msra.mxu0 0.0
    %2458 = vmatprep.subr.mxu0 0.0
    %2459 = vmatpush1.msra.mxu0 0.0
    %2460 = vmatprep.subr.mxu0 0.0
    %2461 = vmatpush1.msra.mxu0 0.0
    %2462 = vmatprep.subr.mxu0 0.0
    %2463 = vmatpush1.msra.mxu0 0.0
    %2464 = vmatprep.subr.mxu0 0.0
    %2465 = vmatpush1.msra.mxu0 0.0
    %2466 = vmatprep.subr.mxu0 0.0
    %2467 = vmatpush1.msra.mxu0 0.0
    %2468 = vmatprep.subr.mxu0 0.0
    %2469 = vmatpush1.msra.mxu0 0.0
    %2470 = vmatprep.subr.mxu0 0.0
    %2471 = vmatpush1.msra.mxu0 0.0
    %2472 = vmatprep.subr.mxu0 0.0
    %2473 = vmatpush1.msra.mxu0 0.0
    %2474 = vmatprep.subr.mxu0 0.0
    %2475 = vmatpush1.msra.mxu0 0.0
    %2476 = vmatprep.mubr.f32.mxu0 0.0
    %2477 = vmatmul.mubr.f32.gmra.mrb[0].mxu0 %v2378
    %v2478 = vpop.f32.mrb[0].mxu0
    %v2479 = vadd.f32 0.0, %v2478
    %v2480 = vpop.f32.mrb[0].mxu0
    %v2481 = vadd.f32 0.0, %v2480
    %2482 = vmatprep.mubr.f32.mxu0 0.0
    %2483 = vmatmul.mubr.f32.gmra.mrb[0].mxu0 %v2379
    %v2484 = vpop.f32.mrb[0].mxu0
    %v2485 = vadd.f32 0.0, %v2484
    %v2486 = vpop.f32.mrb[0].mxu0
    %v2487 = vadd.f32 0.0, %v2486
    %2488 = vdwg.mxu0
    %v2489 = vadd.f32 %v2374, %v2479
    %v2490 = vadd.f32 %v2375, %v2481
    %v2491 = vadd.f32 %v2376, %v2485
    %v2492 = vadd.f32 %v2377, %v2487
    %v2493 = vld [vmem:[#allocation3 + $0x4] sm:$0xff]
    %v2494 = vld [vmem:[#allocation3 + $0xc] sm:$0x3]
    %v2495 = vld [vmem:[%s1207] sm:$0xff]
    %v2496 = vld [vmem:[%s1207 + $0x8] sm:$0xff]
    %v2497 = vld [vmem:[%s1207 + $0x10] sm:$0xff]
    %v2498 = vld [vmem:[%s1207 + $0x18] sm:$0xff]
    %v2499 = vld [vmem:[%s1207 + $0x20] sm:$0xff]
    %v2500 = vld [vmem:[%s1207 + $0x28] sm:$0xff]
    %v2501 = vld [vmem:[%s1207 + $0x30] sm:$0xff]
    %v2502 = vld [vmem:[%s1207 + $0x38] sm:$0xff]
    %v2503 = vld [vmem:[%s1207 + $0x40] sm:$0xff]
    %v2504 = vld [vmem:[%s1207 + $0x48] sm:$0xff]
    %v2505 = vld [vmem:[%s1207 + $0x50] sm:$0xff]
    %v2506 = vld [vmem:[%s1207 + $0x58] sm:$0xff]
    %v2507 = vld [vmem:[%s1207 + $0x60] sm:$0xff]
    %v2508 = vld [vmem:[%s1207 + $0x68] sm:$0xff]
    %v2509 = vld [vmem:[%s1207 + $0x70] sm:$0xff]
    %v2510 = vld [vmem:[%s1207 + $0x78] sm:$0xff]
    %v2511 = vld [vmem:[%s1207 + $0x80] sm:$0xff]
    %v2512 = vld [vmem:[%s1207 + $0x88] sm:$0xff]
    %v2513 = vld [vmem:[%s1207 + $0x90] sm:$0xff]
    %v2514 = vld [vmem:[%s1207 + $0x98] sm:$0xff]
    %v2515 = vld [vmem:[%s1207 + $0xa0] sm:$0xff]
    %v2516 = vld [vmem:[%s1207 + $0xa8] sm:$0xff]
    %v2517 = vld [vmem:[%s1207 + $0xb0] sm:$0xff]
    %v2518 = vld [vmem:[%s1207 + $0xb8] sm:$0xff]
    %v2519 = vld [vmem:[%s1207 + $0xc0] sm:$0xff]
    %v2520 = vld [vmem:[%s1207 + $0xc8] sm:$0xff]
    %v2521 = vld [vmem:[%s1207 + $0xd0] sm:$0xff]
    %v2522 = vld [vmem:[%s1207 + $0xd8] sm:$0xff]
    %v2523 = vld [vmem:[%s1207 + $0xe0] sm:$0xff]
    %v2524 = vld [vmem:[%s1207 + $0xe8] sm:$0xff]
    %v2525 = vld [vmem:[%s1207 + $0xf0] sm:$0xff]
    %v2526 = vld [vmem:[%s1207 + $0xf8] sm:$0xff]
    %2527 = vmatprep.subr.mxu0 %v2496
    %2528 = vmatpush1.msra.mxu0 %v2495
    %2529 = vmatprep.subr.mxu0 %v2498
    %2530 = vmatpush1.msra.mxu0 %v2497
    %2531 = vmatprep.subr.mxu0 %v2500
    %2532 = vmatpush1.msra.mxu0 %v2499
    %2533 = vmatprep.subr.mxu0 %v2502
    %2534 = vmatpush1.msra.mxu0 %v2501
    %2535 = vmatprep.subr.mxu0 %v2504
    %2536 = vmatpush1.msra.mxu0 %v2503
    %2537 = vmatprep.subr.mxu0 %v2506
    %2538 = vmatpush1.msra.mxu0 %v2505
    %2539 = vmatprep.subr.mxu0 %v2508
    %2540 = vmatpush1.msra.mxu0 %v2507
    %2541 = vmatprep.subr.mxu0 %v2510
    %2542 = vmatpush1.msra.mxu0 %v2509
    %2543 = vmatprep.subr.mxu0 %v2512
    %2544 = vmatpush1.msra.mxu0 %v2511
    %2545 = vmatprep.subr.mxu0 %v2514
    %2546 = vmatpush1.msra.mxu0 %v2513
    %2547 = vmatprep.subr.mxu0 %v2516
    %2548 = vmatpush1.msra.mxu0 %v2515
    %2549 = vmatprep.subr.mxu0 %v2518
    %2550 = vmatpush1.msra.mxu0 %v2517
    %2551 = vmatprep.subr.mxu0 %v2520
    %2552 = vmatpush1.msra.mxu0 %v2519
    %2553 = vmatprep.subr.mxu0 %v2522
    %2554 = vmatpush1.msra.mxu0 %v2521
    %2555 = vmatprep.subr.mxu0 %v2524
    %2556 = vmatpush1.msra.mxu0 %v2523
    %2557 = vmatprep.subr.mxu0 %v2526
    %2558 = vmatpush1.msra.mxu0 %v2525
    %2559 = vmatprep.subr.mxu0 0.0
    %2560 = vmatpush1.msra.mxu0 0.0
    %2561 = vmatprep.subr.mxu0 0.0
    %2562 = vmatpush1.msra.mxu0 0.0
    %2563 = vmatprep.subr.mxu0 0.0
    %2564 = vmatpush1.msra.mxu0 0.0
    %2565 = vmatprep.subr.mxu0 0.0
    %2566 = vmatpush1.msra.mxu0 0.0
    %2567 = vmatprep.subr.mxu0 0.0
    %2568 = vmatpush1.msra.mxu0 0.0
    %2569 = vmatprep.subr.mxu0 0.0
    %2570 = vmatpush1.msra.mxu0 0.0
    %2571 = vmatprep.subr.mxu0 0.0
    %2572 = vmatpush1.msra.mxu0 0.0
    %2573 = vmatprep.subr.mxu0 0.0
    %2574 = vmatpush1.msra.mxu0 0.0
    %2575 = vmatprep.subr.mxu0 0.0
    %2576 = vmatpush1.msra.mxu0 0.0
    %2577 = vmatprep.subr.mxu0 0.0
    %2578 = vmatpush1.msra.mxu0 0.0
    %2579 = vmatprep.subr.mxu0 0.0
    %2580 = vmatpush1.msra.mxu0 0.0
    %2581 = vmatprep.subr.mxu0 0.0
    %2582 = vmatpush1.msra.mxu0 0.0
    %2583 = vmatprep.subr.mxu0 0.0
    %2584 = vmatpush1.msra.mxu0 0.0
    %2585 = vmatprep.subr.mxu0 0.0
    %2586 = vmatpush1.msra.mxu0 0.0
    %2587 = vmatprep.subr.mxu0 0.0
    %2588 = vmatpush1.msra.mxu0 0.0
    %2589 = vmatprep.subr.mxu0 0.0
    %2590 = vmatpush1.msra.mxu0 0.0
    %2591 = vmatprep.mubr.f32.mxu0 0.0
    %2592 = vmatmul.mubr.f32.gmra.mrb[0].mxu0 %v2493
    %v2593 = vpop.f32.mrb[0].mxu0
    %v2594 = vadd.f32 0.0, %v2593
    %v2595 = vpop.f32.mrb[0].mxu0
    %v2596 = vadd.f32 0.0, %v2595
    %2597 = vmatprep.mubr.f32.mxu0 0.0
    %2598 = vmatmul.mubr.f32.gmra.mrb[0].mxu0 %v2494
    %v2599 = vpop.f32.mrb[0].mxu0
    %v2600 = vadd.f32 0.0, %v2599
    %v2601 = vpop.f32.mrb[0].mxu0
    %v2602 = vadd.f32 0.0, %v2601
    %2603 = vdwg.mxu0
    %v2604 = vadd.f32 %v2489, %v2594
    %v2605 = vadd.f32 %v2490, %v2596
    %v2606 = vadd.f32 %v2491, %v2600
    %v2607 = vadd.f32 %v2492, %v2602
    %v2608 = vmax.f32 %v2604, %v2605
    %v2609 = vmax.f32 %v2606, %v2607
    %v2610 = vadd.f32 %v2608, %v1326
    %v2611 = vadd.f32 %v2609, %v1326
    %v2612 = vmax.f32 %v2610, 0.0
    %v2613 = vmax.f32 %v2611, 0.0
    %2614 = vst [vmem:[#allocation4] sm:$0xff] %v2612
    %2615 = vst [vmem:[#allocation4 + $0x8] sm:$0x3] %v2613
    %v2616 = vld [vmem:[#allocation4] ss:$2 sm:$0x1f]
    %v2617 = vld [vmem:[%s1334] ss:$2 sm:$0x1f]
    %v2618 = vmax.f32 %v2616, %v2617
    %2619 = vst [vmem:[#allocation5 + $0x1] sm:$0x1] %v2618
    %v2622 = vunpack.c.l.s4 1983009808
    %v2623 = vunpack.c.0.s8 %v2622
    %v2624 = vlaneseq
    %v2625 = vshrl.u32 %v2624, 7
    %v2626 = vsub.s32 %v2623, %v2625
    %v2627 = vrot.slane %v2618, %v2626
    %v2628 = vrot.slane %v2627, 7
    %v2629 = vrot.slane %v2628, 2
    %2631 = vst [vmem:[#allocation5 + $0x3] sm:$0x1] %v2629
    %v2632 = vcombine.high %v2627, %v2627
    %2634 = vst [vmem:[#allocation5 + $0x5] sm:$0x1] %v2632
    %v2635 = vrot.slane %v2632, 7
    %v2636 = vrot.slane %v2635, 2
    %2638 = vst [vmem:[#allocation5 + $0x7] sm:$0x1] %v2636
    %v2639 = vcombine.high %v2618, %v2618
    %v2641 = vunpack.c.l.s4 1983009808
    %v2642 = vunpack.c.0.s8 %v2641
    %v2643 = vlaneseq
    %v2644 = vshrl.u32 %v2643, 7
    %v2645 = vsub.s32 %v2642, %v2644
    %v2646 = vrot.slane %v2639, %v2645
    %2648 = vst [vmem:[#allocation5 + $0x9] sm:$0x1] %v2646
    %v2649 = vld [vmem:[#allocation5] sm:$0xff]
    %v2650 = vld [vmem:[#allocation5 + $0x8] sm:$0x3]
    %v2651 = vld [vmem:[#allocation8] sm:$0xff]
    %v2652 = vld [vmem:[#allocation8 + $0x8] sm:$0xff]
    %v2653 = vld [vmem:[#allocation8 + $0x10] sm:$0xff]
    %v2654 = vld [vmem:[#allocation8 + $0x18] sm:$0xff]
    %v2655 = vld [vmem:[#allocation8 + $0x20] sm:$0xff]
    %v2656 = vld [vmem:[#allocation8 + $0x28] sm:$0xff]
    %v2657 = vld [vmem:[#allocation8 + $0x30] sm:$0xff]
    %v2658 = vld [vmem:[#allocation8 + $0x38] sm:$0xff]
    %v2659 = vld [vmem:[#allocation8 + $0x40] sm:$0xff]
    %v2660 = vld [vmem:[#allocation8 + $0x48] sm:$0xff]
    %v2661 = vld [vmem:[#allocation8 + $0x50] sm:$0xff]
    %v2662 = vld [vmem:[#allocation8 + $0x58] sm:$0xff]
    %v2663 = vld [vmem:[#allocation8 + $0x60] sm:$0xff]
    %v2664 = vld [vmem:[#allocation8 + $0x68] sm:$0xff]
    %v2665 = vld [vmem:[#allocation8 + $0x70] sm:$0xff]
    %v2666 = vld [vmem:[#allocation8 + $0x78] sm:$0xff]
    %v2667 = vld [vmem:[#allocation8 + $0x80] sm:$0xff]
    %v2668 = vld [vmem:[#allocation8 + $0x88] sm:$0xff]
    %v2669 = vld [vmem:[#allocation8 + $0x90] sm:$0xff]
    %v2670 = vld [vmem:[#allocation8 + $0x98] sm:$0xff]
    %v2671 = vld [vmem:[#allocation8 + $0xa0] sm:$0xff]
    %v2672 = vld [vmem:[#allocation8 + $0xa8] sm:$0xff]
    %v2673 = vld [vmem:[#allocation8 + $0xb0] sm:$0xff]
    %v2674 = vld [vmem:[#allocation8 + $0xb8] sm:$0xff]
    %v2675 = vld [vmem:[#allocation8 + $0xc0] sm:$0xff]
    %v2676 = vld [vmem:[#allocation8 + $0xc8] sm:$0xff]
    %v2677 = vld [vmem:[#allocation8 + $0xd0] sm:$0xff]
    %v2678 = vld [vmem:[#allocation8 + $0xd8] sm:$0xff]
    %v2679 = vld [vmem:[#allocation8 + $0xe0] sm:$0xff]
    %v2680 = vld [vmem:[#allocation8 + $0xe8] sm:$0xff]
    %v2681 = vld [vmem:[#allocation8 + $0xf0] sm:$0xff]
    %v2682 = vld [vmem:[#allocation8 + $0xf8] sm:$0xff]
    %v2683 = vld [vmem:[#allocation8 + $0x100] sm:$0xff]
    %v2684 = vld [vmem:[#allocation8 + $0x108] sm:$0xff]
    %v2685 = vld [vmem:[#allocation8 + $0x110] sm:$0xff]
    %v2686 = vld [vmem:[#allocation8 + $0x118] sm:$0xff]
    %v2687 = vld [vmem:[#allocation8 + $0x120] sm:$0xff]
    %v2688 = vld [vmem:[#allocation8 + $0x128] sm:$0xff]
    %v2689 = vld [vmem:[#allocation8 + $0x130] sm:$0xff]
    %v2690 = vld [vmem:[#allocation8 + $0x138] sm:$0xff]
    %v2691 = vld [vmem:[#allocation8 + $0x140] sm:$0xff]
    %v2692 = vld [vmem:[#allocation8 + $0x148] sm:$0xff]
    %v2693 = vld [vmem:[#allocation8 + $0x150] sm:$0xff]
    %v2694 = vld [vmem:[#allocation8 + $0x158] sm:$0xff]
    %v2695 = vld [vmem:[#allocation8 + $0x160] sm:$0xff]
    %v2696 = vld [vmem:[#allocation8 + $0x168] sm:$0xff]
    %v2697 = vld [vmem:[#allocation8 + $0x170] sm:$0xff]
    %v2698 = vld [vmem:[#allocation8 + $0x178] sm:$0xff]
    %v2699 = vld [vmem:[#allocation8 + $0x180] sm:$0xff]
    %v2700 = vld [vmem:[#allocation8 + $0x188] sm:$0xff]
    %v2701 = vld [vmem:[#allocation8 + $0x190] sm:$0xff]
    %v2702 = vld [vmem:[#allocation8 + $0x198] sm:$0xff]
    %v2703 = vld [vmem:[#allocation8 + $0x1a0] sm:$0xff]
    %v2704 = vld [vmem:[#allocation8 + $0x1a8] sm:$0xff]
    %v2705 = vld [vmem:[#allocation8 + $0x1b0] sm:$0xff]
    %v2706 = vld [vmem:[#allocation8 + $0x1b8] sm:$0xff]
    %v2707 = vld [vmem:[#allocation8 + $0x1c0] sm:$0xff]
    %v2708 = vld [vmem:[#allocation8 + $0x1c8] sm:$0xff]
    %v2709 = vld [vmem:[#allocation8 + $0x1d0] sm:$0xff]
    %v2710 = vld [vmem:[#allocation8 + $0x1d8] sm:$0xff]
    %v2711 = vld [vmem:[#allocation8 + $0x1e0] sm:$0xff]
    %v2712 = vld [vmem:[#allocation8 + $0x1e8] sm:$0xff]
    %v2713 = vld [vmem:[#allocation8 + $0x1f0] sm:$0xff]
    %v2714 = vld [vmem:[#allocation8 + $0x1f8] sm:$0xff]
    %v2715 = vld [vmem:[#allocation8 + $0x200] sm:$0xff]
    %v2716 = vld [vmem:[#allocation8 + $0x208] sm:$0xff]
    %v2717 = vld [vmem:[#allocation8 + $0x210] sm:$0xff]
    %v2718 = vld [vmem:[#allocation8 + $0x218] sm:$0xff]
    %v2719 = vld [vmem:[#allocation8 + $0x220] sm:$0xff]
    %v2720 = vld [vmem:[#allocation8 + $0x228] sm:$0xff]
    %v2721 = vld [vmem:[#allocation8 + $0x230] sm:$0xff]
    %v2722 = vld [vmem:[#allocation8 + $0x238] sm:$0xff]
    %v2723 = vld [vmem:[#allocation8 + $0x240] sm:$0xff]
    %v2724 = vld [vmem:[#allocation8 + $0x248] sm:$0xff]
    %v2725 = vld [vmem:[#allocation8 + $0x250] sm:$0xff]
    %v2726 = vld [vmem:[#allocation8 + $0x258] sm:$0xff]
    %v2727 = vld [vmem:[#allocation8 + $0x260] sm:$0xff]
    %v2728 = vld [vmem:[#allocation8 + $0x268] sm:$0xff]
    %v2729 = vld [vmem:[#allocation8 + $0x270] sm:$0xff]
    %v2730 = vld [vmem:[#allocation8 + $0x278] sm:$0xff]
    %v2731 = vld [vmem:[%s5 + $0x2] sm:$0x1]
    %v2732 = vlaneseq
    %v2733 = vshrl.u32 %v2732, 7
    %v2734 = vsub.s32 0, %v2733
    %v2735 = vrot.slane %v2731, %v2734
    %v2738 = vcombine.high %v2649, %v2649
    %v2740 = vunpack.c.l.s4 1983009808
    %v2741 = vunpack.c.0.s8 %v2740
    %v2742 = vlaneseq
    %v2743 = vshrl.u32 %v2742, 7
    %v2744 = vsub.s32 %v2741, %v2743
    %v2745 = vrot.slane %v2649, %v2744
    %v2747 = vunpack.c.l.s4 1983009808
    %v2748 = vunpack.c.0.s8 %v2747
    %v2749 = vlaneseq
    %v2750 = vshrl.u32 %v2749, 7
    %v2751 = vsub.s32 %v2748, %v2750
    %v2752 = vrot.slane %v2738, %v2751
    %v2753 = vcombine.high %v2745, %v2745
    %v2754 = vcombine.high %v2752, %v2752
    %v2756 = vunpack.c.l.s4 1983009808
    %v2757 = vunpack.c.0.s8 %v2756
    %v2758 = vlaneseq
    %v2759 = vshrl.u32 %v2758, 7
    %v2760 = vsub.s32 %v2757, %v2759
    %v2761 = vrot.slane %v2650, %v2760
    %2767 = vmatprep.subr.mxu0 0.0
    %2768 = vmatpush1.msra.mxu0 %v2651
    %2769 = vmatprep.subr.mxu0 0.0
    %2770 = vmatpush1.msra.mxu0 %v2652
    %2771 = vmatprep.subr.mxu0 0.0
    %2772 = vmatpush1.msra.mxu0 %v2653
    %2773 = vmatprep.subr.mxu0 0.0
    %2774 = vmatpush1.msra.mxu0 %v2654
    %2775 = vmatprep.subr.mxu0 0.0
    %2776 = vmatpush1.msra.mxu0 %v2655
    %2777 = vmatprep.subr.mxu0 0.0
    %2778 = vmatpush1.msra.mxu0 %v2656
    %2779 = vmatprep.subr.mxu0 0.0
    %2780 = vmatpush1.msra.mxu0 %v2657
    %2781 = vmatprep.subr.mxu0 0.0
    %2782 = vmatpush1.msra.mxu0 %v2658
    %2783 = vmatprep.subr.mxu0 0.0
    %2784 = vmatpush1.msra.mxu0 %v2659
    %2785 = vmatprep.subr.mxu0 0.0
    %2786 = vmatpush1.msra.mxu0 %v2660
    %2787 = vmatprep.subr.mxu0 0.0
    %2788 = vmatpush1.msra.mxu0 %v2661
    %2789 = vmatprep.subr.mxu0 0.0
    %2790 = vmatpush1.msra.mxu0 %v2662
    %2791 = vmatprep.subr.mxu0 0.0
    %2792 = vmatpush1.msra.mxu0 %v2663
    %2793 = vmatprep.subr.mxu0 0.0
    %2794 = vmatpush1.msra.mxu0 %v2664
    %2795 = vmatprep.subr.mxu0 0.0
    %2796 = vmatpush1.msra.mxu0 %v2665
    %2797 = vmatprep.subr.mxu0 0.0
    %2798 = vmatpush1.msra.mxu0 %v2666
    %2799 = vmatprep.subr.mxu0 0.0
    %2800 = vmatpush1.msra.mxu0 %v2667
    %2801 = vmatprep.subr.mxu0 0.0
    %2802 = vmatpush1.msra.mxu0 %v2668
    %2803 = vmatprep.subr.mxu0 0.0
    %2804 = vmatpush1.msra.mxu0 %v2669
    %2805 = vmatprep.subr.mxu0 0.0
    %2806 = vmatpush1.msra.mxu0 %v2670
    %2807 = vmatprep.subr.mxu0 0.0
    %2808 = vmatpush1.msra.mxu0 %v2671
    %2809 = vmatprep.subr.mxu0 0.0
    %2810 = vmatpush1.msra.mxu0 %v2672
    %2811 = vmatprep.subr.mxu0 0.0
    %2812 = vmatpush1.msra.mxu0 %v2673
    %2813 = vmatprep.subr.mxu0 0.0
    %2814 = vmatpush1.msra.mxu0 %v2674
    %2815 = vmatprep.subr.mxu0 0.0
    %2816 = vmatpush1.msra.mxu0 %v2675
    %2817 = vmatprep.subr.mxu0 0.0
    %2818 = vmatpush1.msra.mxu0 %v2676
    %2819 = vmatprep.subr.mxu0 0.0
    %2820 = vmatpush1.msra.mxu0 %v2677
    %2821 = vmatprep.subr.mxu0 0.0
    %2822 = vmatpush1.msra.mxu0 %v2678
    %2823 = vmatprep.subr.mxu0 0.0
    %2824 = vmatpush1.msra.mxu0 %v2679
    %2825 = vmatprep.subr.mxu0 0.0
    %2826 = vmatpush1.msra.mxu0 %v2680
    %2827 = vmatprep.subr.mxu0 0.0
    %2828 = vmatpush1.msra.mxu0 %v2681
    %2829 = vmatprep.subr.mxu0 0.0
    %2830 = vmatpush1.msra.mxu0 %v2682
    %2831 = vmatprep.mubr.f32.mxu0 %v2753
    %2832 = vmatmul.mubr.f32.gmra.mrb[0].mxu0 %v2745
    %v2833 = vpop.f32.mrb[0].mxu0
    %v2834 = vadd.f32 %v2735, %v2833
    %v2835 = vpop.f32.mrb[0].mxu0
    %2836 = vdwg.mxu0
    %2837 = vmatprep.subr.mxu0 0.0
    %2838 = vmatpush1.msra.mxu0 %v2683
    %2839 = vmatprep.subr.mxu0 0.0
    %2840 = vmatpush1.msra.mxu0 %v2684
    %2841 = vmatprep.subr.mxu0 0.0
    %2842 = vmatpush1.msra.mxu0 %v2685
    %2843 = vmatprep.subr.mxu0 0.0
    %2844 = vmatpush1.msra.mxu0 %v2686
    %2845 = vmatprep.subr.mxu0 0.0
    %2846 = vmatpush1.msra.mxu0 %v2687
    %2847 = vmatprep.subr.mxu0 0.0
    %2848 = vmatpush1.msra.mxu0 %v2688
    %2849 = vmatprep.subr.mxu0 0.0
    %2850 = vmatpush1.msra.mxu0 %v2689
    %2851 = vmatprep.subr.mxu0 0.0
    %2852 = vmatpush1.msra.mxu0 %v2690
    %2853 = vmatprep.subr.mxu0 0.0
    %2854 = vmatpush1.msra.mxu0 %v2691
    %2855 = vmatprep.subr.mxu0 0.0
    %2856 = vmatpush1.msra.mxu0 %v2692
    %2857 = vmatprep.subr.mxu0 0.0
    %2858 = vmatpush1.msra.mxu0 %v2693
    %2859 = vmatprep.subr.mxu0 0.0
    %2860 = vmatpush1.msra.mxu0 %v2694
    %2861 = vmatprep.subr.mxu0 0.0
    %2862 = vmatpush1.msra.mxu0 %v2695
    %2863 = vmatprep.subr.mxu0 0.0
    %2864 = vmatpush1.msra.mxu0 %v2696
    %2865 = vmatprep.subr.mxu0 0.0
    %2866 = vmatpush1.msra.mxu0 %v2697
    %2867 = vmatprep.subr.mxu0 0.0
    %2868 = vmatpush1.msra.mxu0 %v2698
    %2869 = vmatprep.subr.mxu0 0.0
    %2870 = vmatpush1.msra.mxu0 %v2699
    %2871 = vmatprep.subr.mxu0 0.0
    %2872 = vmatpush1.msra.mxu0 %v2700
    %2873 = vmatprep.subr.mxu0 0.0
    %2874 = vmatpush1.msra.mxu0 %v2701
    %2875 = vmatprep.subr.mxu0 0.0
    %2876 = vmatpush1.msra.mxu0 %v2702
    %2877 = vmatprep.subr.mxu0 0.0
    %2878 = vmatpush1.msra.mxu0 %v2703
    %2879 = vmatprep.subr.mxu0 0.0
    %2880 = vmatpush1.msra.mxu0 %v2704
    %2881 = vmatprep.subr.mxu0 0.0
    %2882 = vmatpush1.msra.mxu0 %v2705
    %2883 = vmatprep.subr.mxu0 0.0
    %2884 = vmatpush1.msra.mxu0 %v2706
    %2885 = vmatprep.subr.mxu0 0.0
    %2886 = vmatpush1.msra.mxu0 %v2707
    %2887 = vmatprep.subr.mxu0 0.0
    %2888 = vmatpush1.msra.mxu0 %v2708
    %2889 = vmatprep.subr.mxu0 0.0
    %2890 = vmatpush1.msra.mxu0 %v2709
    %2891 = vmatprep.subr.mxu0 0.0
    %2892 = vmatpush1.msra.mxu0 %v2710
    %2893 = vmatprep.subr.mxu0 0.0
    %2894 = vmatpush1.msra.mxu0 %v2711
    %2895 = vmatprep.subr.mxu0 0.0
    %2896 = vmatpush1.msra.mxu0 %v2712
    %2897 = vmatprep.subr.mxu0 0.0
    %2898 = vmatpush1.msra.mxu0 %v2713
    %2899 = vmatprep.subr.mxu0 0.0
    %2900 = vmatpush1.msra.mxu0 %v2714
    %2901 = vmatprep.mubr.f32.mxu0 %v2754
    %2902 = vmatmul.mubr.f32.gmra.mrb[0].mxu0 %v2752
    %v2903 = vpop.f32.mrb[0].mxu0
    %v2904 = vadd.f32 %v2834, %v2903
    %v2905 = vpop.f32.mrb[0].mxu0
    %2906 = vdwg.mxu0
    %2907 = vmatprep.subr.mxu0 0.0
    %2908 = vmatpush1.msra.mxu0 %v2715
    %2909 = vmatprep.subr.mxu0 0.0
    %2910 = vmatpush1.msra.mxu0 %v2716
    %2911 = vmatprep.subr.mxu0 0.0
    %2912 = vmatpush1.msra.mxu0 %v2717
    %2913 = vmatprep.subr.mxu0 0.0
    %2914 = vmatpush1.msra.mxu0 %v2718
    %2915 = vmatprep.subr.mxu0 0.0
    %2916 = vmatpush1.msra.mxu0 %v2719
    %2917 = vmatprep.subr.mxu0 0.0
    %2918 = vmatpush1.msra.mxu0 %v2720
    %2919 = vmatprep.subr.mxu0 0.0
    %2920 = vmatpush1.msra.mxu0 %v2721
    %2921 = vmatprep.subr.mxu0 0.0
    %2922 = vmatpush1.msra.mxu0 %v2722
    %2923 = vmatprep.subr.mxu0 0.0
    %2924 = vmatpush1.msra.mxu0 %v2723
    %2925 = vmatprep.subr.mxu0 0.0
    %2926 = vmatpush1.msra.mxu0 %v2724
    %2927 = vmatprep.subr.mxu0 0.0
    %2928 = vmatpush1.msra.mxu0 %v2725
    %2929 = vmatprep.subr.mxu0 0.0
    %2930 = vmatpush1.msra.mxu0 %v2726
    %2931 = vmatprep.subr.mxu0 0.0
    %2932 = vmatpush1.msra.mxu0 %v2727
    %2933 = vmatprep.subr.mxu0 0.0
    %2934 = vmatpush1.msra.mxu0 %v2728
    %2935 = vmatprep.subr.mxu0 0.0
    %2936 = vmatpush1.msra.mxu0 %v2729
    %2937 = vmatprep.subr.mxu0 0.0
    %2938 = vmatpush1.msra.mxu0 %v2730
    %2939 = vmatprep.subr.mxu0 0.0
    %2940 = vmatpush1.msra.mxu0 0.0
    %2941 = vmatprep.subr.mxu0 0.0
    %2942 = vmatpush1.msra.mxu0 0.0
    %2943 = vmatprep.subr.mxu0 0.0
    %2944 = vmatpush1.msra.mxu0 0.0
    %2945 = vmatprep.subr.mxu0 0.0
    %2946 = vmatpush1.msra.mxu0 0.0
    %2947 = vmatprep.subr.mxu0 0.0
    %2948 = vmatpush1.msra.mxu0 0.0
    %2949 = vmatprep.subr.mxu0 0.0
    %2950 = vmatpush1.msra.mxu0 0.0
    %2951 = vmatprep.subr.mxu0 0.0
    %2952 = vmatpush1.msra.mxu0 0.0
    %2953 = vmatprep.subr.mxu0 0.0
    %2954 = vmatpush1.msra.mxu0 0.0
    %2955 = vmatprep.subr.mxu0 0.0
    %2956 = vmatpush1.msra.mxu0 0.0
    %2957 = vmatprep.subr.mxu0 0.0
    %2958 = vmatpush1.msra.mxu0 0.0
    %2959 = vmatprep.subr.mxu0 0.0
    %2960 = vmatpush1.msra.mxu0 0.0
    %2961 = vmatprep.subr.mxu0 0.0
    %2962 = vmatpush1.msra.mxu0 0.0
    %2963 = vmatprep.subr.mxu0 0.0
    %2964 = vmatpush1.msra.mxu0 0.0
    %2965 = vmatprep.subr.mxu0 0.0
    %2966 = vmatpush1.msra.mxu0 0.0
    %2967 = vmatprep.subr.mxu0 0.0
    %2968 = vmatpush1.msra.mxu0 0.0
    %2969 = vmatprep.subr.mxu0 0.0
    %2970 = vmatpush1.msra.mxu0 0.0
    %2971 = vmatprep.mubr.f32.mxu0 0.0
    %2972 = vmatmul.mubr.f32.gmra.mrb[0].mxu0 %v2761
    %v2973 = vpop.f32.mrb[0].mxu0
    %v2974 = vadd.f32 %v2904, %v2973
    %v2975 = vpop.f32.mrb[0].mxu0
    %2976 = vdwg.mxu0
    %v2977 = vmax.f32 %v2974, 0.0
    %v2978 = vld [vmem:[#allocation10] sm:$0xff]
    %v2979 = vld [vmem:[#allocation10 + $0x10] sm:$0xff]
    %v2980 = vld [vmem:[#allocation10 + $0x20] sm:$0xff]
    %v2981 = vld [vmem:[#allocation10 + $0x30] sm:$0xff]
    %v2982 = vld [vmem:[#allocation10 + $0x40] sm:$0xff]
    %v2983 = vld [vmem:[#allocation10 + $0x50] sm:$0xff]
    %v2984 = vld [vmem:[#allocation10 + $0x60] sm:$0xff]
    %v2985 = vld [vmem:[#allocation10 + $0x70] sm:$0xff]
    %v2986 = vld [vmem:[#allocation10 + $0x80] sm:$0xff]
    %v2987 = vld [vmem:[#allocation10 + $0x90] sm:$0xff]
    %v2988 = vld [vmem:[#allocation10 + $0xa0] sm:$0xff]
    %v2989 = vld [vmem:[#allocation10 + $0xb0] sm:$0xff]
    %v2990 = vld [vmem:[#allocation10 + $0xc0] sm:$0xff]
    %v2991 = vld [vmem:[#allocation10 + $0xd0] sm:$0xff]
    %v2992 = vld [vmem:[#allocation10 + $0xe0] sm:$0xff]
    %v2993 = vld [vmem:[#allocation10 + $0xf0] sm:$0xff]
    %v2994 = vld [vmem:[%s5 + $0x3] sm:$0x1]
    %v2995 = vlaneseq
    %v2996 = vshrl.u32 %v2995, 7
    %v2997 = vsub.s32 0, %v2996
    %v2998 = vrot.slane %v2994, %v2997
    %2999 = vmatprep.subr.mxu0 0.0
    %3000 = vmatpush1.msra.mxu0 %v2978
    %3001 = vmatprep.subr.mxu0 0.0
    %3002 = vmatpush1.msra.mxu0 %v2979
    %3003 = vmatprep.subr.mxu0 0.0
    %3004 = vmatpush1.msra.mxu0 %v2980
    %3005 = vmatprep.subr.mxu0 0.0
    %3006 = vmatpush1.msra.mxu0 %v2981
    %3007 = vmatprep.subr.mxu0 0.0
    %3008 = vmatpush1.msra.mxu0 %v2982
    %3009 = vmatprep.subr.mxu0 0.0
    %3010 = vmatpush1.msra.mxu0 %v2983
    %3011 = vmatprep.subr.mxu0 0.0
    %3012 = vmatpush1.msra.mxu0 %v2984
    %3013 = vmatprep.subr.mxu0 0.0
    %3014 = vmatpush1.msra.mxu0 %v2985
    %3015 = vmatprep.subr.mxu0 0.0
    %3016 = vmatpush1.msra.mxu0 %v2986
    %3017 = vmatprep.subr.mxu0 0.0
    %3018 = vmatpush1.msra.mxu0 %v2987
    %3019 = vmatprep.subr.mxu0 0.0
    %3020 = vmatpush1.msra.mxu0 %v2988
    %3021 = vmatprep.subr.mxu0 0.0
    %3022 = vmatpush1.msra.mxu0 %v2989
    %3023 = vmatprep.subr.mxu0 0.0
    %3024 = vmatpush1.msra.mxu0 %v2990
    %3025 = vmatprep.subr.mxu0 0.0
    %3026 = vmatpush1.msra.mxu0 %v2991
    %3027 = vmatprep.subr.mxu0 0.0
    %3028 = vmatpush1.msra.mxu0 %v2992
    %3029 = vmatprep.subr.mxu0 0.0
    %3030 = vmatpush1.msra.mxu0 %v2993
    %3031 = vmatprep.subr.mxu0 0.0
    %3032 = vmatpush1.msra.mxu0 0.0
    %3033 = vmatprep.subr.mxu0 0.0
    %3034 = vmatpush1.msra.mxu0 0.0
    %3035 = vmatprep.subr.mxu0 0.0
    %3036 = vmatpush1.msra.mxu0 0.0
    %3037 = vmatprep.subr.mxu0 0.0
    %3038 = vmatpush1.msra.mxu0 0.0
    %3039 = vmatprep.subr.mxu0 0.0
    %3040 = vmatpush1.msra.mxu0 0.0
    %3041 = vmatprep.subr.mxu0 0.0
    %3042 = vmatpush1.msra.mxu0 0.0
    %3043 = vmatprep.subr.mxu0 0.0
    %3044 = vmatpush1.msra.mxu0 0.0
    %3045 = vmatprep.subr.mxu0 0.0
    %3046 = vmatpush1.msra.mxu0 0.0
    %3047 = vmatprep.subr.mxu0 0.0
    %3048 = vmatpush1.msra.mxu0 0.0
    %3049 = vmatprep.subr.mxu0 0.0
    %3050 = vmatpush1.msra.mxu0 0.0
    %3051 = vmatprep.subr.mxu0 0.0
    %3052 = vmatpush1.msra.mxu0 0.0
    %3053 = vmatprep.subr.mxu0 0.0
    %3054 = vmatpush1.msra.mxu0 0.0
    %3055 = vmatprep.subr.mxu0 0.0
    %3056 = vmatpush1.msra.mxu0 0.0
    %3057 = vmatprep.subr.mxu0 0.0
    %3058 = vmatpush1.msra.mxu0 0.0
    %3059 = vmatprep.subr.mxu0 0.0
    %3060 = vmatpush1.msra.mxu0 0.0
    %3061 = vmatprep.subr.mxu0 0.0
    %3062 = vmatpush1.msra.mxu0 0.0
    %3063 = vmatprep.mubr.f32.mxu0 0.0
    %3064 = vmatmul.mubr.f32.gmra.mrb[0].mxu0 %v2977
    %v3065 = vpop.f32.mrb[0].mxu0
    %v3066 = vadd.f32 %v2998, %v3065
    %v3067 = vpop.f32.mrb[0].mxu0
    %3068 = vdwg.mxu0
    %v3069 = vmax.f32 %v3066, 0.0
    %v3070 = vld [vmem:[#allocation10 + $0x8] sm:$0xff]
    %v3071 = vld [vmem:[#allocation10 + $0x18] sm:$0xff]
    %v3072 = vld [vmem:[#allocation10 + $0x28] sm:$0xff]
    %v3073 = vld [vmem:[#allocation10 + $0x38] sm:$0xff]
    %v3074 = vld [vmem:[#allocation10 + $0x48] sm:$0xff]
    %v3075 = vld [vmem:[#allocation10 + $0x58] sm:$0xff]
    %v3076 = vld [vmem:[#allocation10 + $0x68] sm:$0xff]
    %v3077 = vld [vmem:[#allocation10 + $0x78] sm:$0xff]
    %v3078 = vld [vmem:[#allocation10 + $0x88] sm:$0xff]
    %v3079 = vld [vmem:[#allocation10 + $0x98] sm:$0xff]
    %v3080 = vld [vmem:[#allocation10 + $0xa8] sm:$0xff]
    %v3081 = vld [vmem:[#allocation10 + $0xb8] sm:$0xff]
    %v3082 = vld [vmem:[#allocation10 + $0xc8] sm:$0xff]
    %v3083 = vld [vmem:[#allocation10 + $0xd8] sm:$0xff]
    %v3084 = vld [vmem:[#allocation10 + $0xe8] sm:$0xff]
    %v3085 = vld [vmem:[#allocation10 + $0xf8] sm:$0xff]
    %v3086 = vld [vmem:[%s5 + $0x4] sm:$0x1]
    %v3087 = vlaneseq
    %v3088 = vshrl.u32 %v3087, 7
    %v3089 = vsub.s32 0, %v3088
    %v3090 = vrot.slane %v3086, %v3089
    %3091 = vmatprep.subr.mxu0 0.0
    %3092 = vmatpush1.msra.mxu0 %v3070
    %3093 = vmatprep.subr.mxu0 0.0
    %3094 = vmatpush1.msra.mxu0 %v3071
    %3095 = vmatprep.subr.mxu0 0.0
    %3096 = vmatpush1.msra.mxu0 %v3072
    %3097 = vmatprep.subr.mxu0 0.0
    %3098 = vmatpush1.msra.mxu0 %v3073
    %3099 = vmatprep.subr.mxu0 0.0
    %3100 = vmatpush1.msra.mxu0 %v3074
    %3101 = vmatprep.subr.mxu0 0.0
    %3102 = vmatpush1.msra.mxu0 %v3075
    %3103 = vmatprep.subr.mxu0 0.0
    %3104 = vmatpush1.msra.mxu0 %v3076
    %3105 = vmatprep.subr.mxu0 0.0
    %3106 = vmatpush1.msra.mxu0 %v3077
    %3107 = vmatprep.subr.mxu0 0.0
    %3108 = vmatpush1.msra.mxu0 %v3078
    %3109 = vmatprep.subr.mxu0 0.0
    %3110 = vmatpush1.msra.mxu0 %v3079
    %3111 = vmatprep.subr.mxu0 0.0
    %3112 = vmatpush1.msra.mxu0 %v3080
    %3113 = vmatprep.subr.mxu0 0.0
    %3114 = vmatpush1.msra.mxu0 %v3081
    %3115 = vmatprep.subr.mxu0 0.0
    %3116 = vmatpush1.msra.mxu0 %v3082
    %3117 = vmatprep.subr.mxu0 0.0
    %3118 = vmatpush1.msra.mxu0 %v3083
    %3119 = vmatprep.subr.mxu0 0.0
    %3120 = vmatpush1.msra.mxu0 %v3084
    %3121 = vmatprep.subr.mxu0 0.0
    %3122 = vmatpush1.msra.mxu0 %v3085
    %3123 = vmatprep.subr.mxu0 0.0
    %3124 = vmatpush1.msra.mxu0 0.0
    %3125 = vmatprep.subr.mxu0 0.0
    %3126 = vmatpush1.msra.mxu0 0.0
    %3127 = vmatprep.subr.mxu0 0.0
    %3128 = vmatpush1.msra.mxu0 0.0
    %3129 = vmatprep.subr.mxu0 0.0
    %3130 = vmatpush1.msra.mxu0 0.0
    %3131 = vmatprep.subr.mxu0 0.0
    %3132 = vmatpush1.msra.mxu0 0.0
    %3133 = vmatprep.subr.mxu0 0.0
    %3134 = vmatpush1.msra.mxu0 0.0
    %3135 = vmatprep.subr.mxu0 0.0
    %3136 = vmatpush1.msra.mxu0 0.0
    %3137 = vmatprep.subr.mxu0 0.0
    %3138 = vmatpush1.msra.mxu0 0.0
    %3139 = vmatprep.subr.mxu0 0.0
    %3140 = vmatpush1.msra.mxu0 0.0
    %3141 = vmatprep.subr.mxu0 0.0
    %3142 = vmatpush1.msra.mxu0 0.0
    %3143 = vmatprep.subr.mxu0 0.0
    %3144 = vmatpush1.msra.mxu0 0.0
    %3145 = vmatprep.subr.mxu0 0.0
    %3146 = vmatpush1.msra.mxu0 0.0
    %3147 = vmatprep.subr.mxu0 0.0
    %3148 = vmatpush1.msra.mxu0 0.0
    %3149 = vmatprep.subr.mxu0 0.0
    %3150 = vmatpush1.msra.mxu0 0.0
    %3151 = vmatprep.subr.mxu0 0.0
    %3152 = vmatpush1.msra.mxu0 0.0
    %3153 = vmatprep.subr.mxu0 0.0
    %3154 = vmatpush1.msra.mxu0 0.0
    %3155 = vmatprep.mubr.f32.mxu0 0.0
    %3156 = vmatmul.mubr.f32.gmra.mrb[0].mxu0 %v3069
    %v3157 = vpop.f32.mrb[0].mxu0
    %v3158 = vadd.f32 %v3090, %v3157
    %v3159 = vpop.f32.mrb[0].mxu0
    %3160 = vdwg.mxu0
    %3161 = vst [vmem:[%s6] sm:$0x3] %v3158
    // Predicated region
    $region38: #{lenet_forward.1} parent=1 // pred_check
      _
    $region39: #{lenet_forward.1} parent=1 // pred_check_branch
      %3163 = sbr.rel (0) target = $region41
    $region40: #{lenet_forward.1} parent=1 // pred_region
      _
    $region41: #{lenet_forward.1} parent=1 // pred_fallthru
      _
    // Predicated region
    $region42: #{lenet_forward.1} parent=1 // pred_check
      _
    $region43: #{lenet_forward.1} parent=1 // pred_check_branch
      %3165 = sbr.rel (0) target = $region45
    $region44: #{lenet_forward.1} parent=1 // pred_region
      _
    $region45: #{lenet_forward.1} parent=1 // pred_fallthru
      _
    %3166 = vsyncpa [#allocation7], 1
    %3167 = vsyncpa [#allocation9], 1

</llo_original>
